<compile_context>
chip_gen: v7x
topology: tpu7x:2x2x1
jax: 0.10.0
libtpu: 0.0.40
codegen_flags: <defaults>
</compile_context>

<pallas_src>
import functools
import math

import jax
import jax.numpy as jnp
from jax.experimental import pallas as pl
from jax.experimental.pallas import tpu as pltpu


_MASK_VALUE = -1e30                      # large finite negative (NaN-safe vs -inf)
_VMEM_LIMIT_BYTES = 32 * 1024 * 1024     # headroom on v7x's 64 MiB physical VMEM


def _pick_tile(dim, cap, align):
    """Largest tile <= cap that divides `dim` and is a multiple of `align`.

    Falls back to the full dimension (always a legal block) if no aligned
    divisor fits under the cap.
    """
    if dim <= cap:
        return dim
    t = (cap // align) * align
    while t >= align:
        if dim % t == 0:
            return t
        t -= align
    return dim


# --------------------------- tiled linear (y = xW + b) ----------------------

def _linear_kernel(x_ref, w_ref, b_ref, o_ref, acc_ref, *, compute_dtype):
    k = pl.program_id(2)

    @pl.when(k == 0)
    def _():
        acc_ref[...] = jnp.zeros(acc_ref.shape, dtype=acc_ref.dtype)

    x = x_ref[...]
    w = w_ref[...]
    if compute_dtype is not None:
        x = x.astype(compute_dtype)
        w = w.astype(compute_dtype)
    acc_ref[...] += jnp.dot(x, w, preferred_element_type=jnp.float32)

    @pl.when(k == pl.num_programs(2) - 1)
    def _():
        o_ref[...] = (acc_ref[...] + b_ref[...].astype(jnp.float32)).astype(o_ref.dtype)


def pallas_linear(x, w, b, *, block_m=512, block_n=512, block_k=512,
                  compute_dtype=None):
    """x: (M, K), w: (K, N), b: (N,) -> (M, N)."""
    M, K = x.shape
    K2, N = w.shape
    assert K2 == K
    tm = _pick_tile(M, block_m, 8)
    tn = _pick_tile(N, block_n, 128)
    tk = _pick_tile(K, block_k, 128)
    grid = (M // tm, N // tn, K // tk)
    itemsize = jnp.dtype(x.dtype).itemsize

    kernel = functools.partial(_linear_kernel, compute_dtype=compute_dtype)
    return pl.pallas_call(
        kernel,
        out_shape=jax.ShapeDtypeStruct((M, N), x.dtype),
        grid_spec=pltpu.PrefetchScalarGridSpec(
            num_scalar_prefetch=0,
            grid=grid,
            in_specs=[
                pl.BlockSpec((tm, tk), lambda i, j, k: (i, k)),
                pl.BlockSpec((tk, tn), lambda i, j, k: (k, j)),
                pl.BlockSpec((1, tn), lambda i, j, k: (0, j)),
            ],
            out_specs=pl.BlockSpec((tm, tn), lambda i, j, k: (i, j)),
            scratch_shapes=[pltpu.VMEM((tm, tn), jnp.float32)],
        ),
        compiler_params=pltpu.CompilerParams(
            dimension_semantics=("parallel", "parallel", "arbitrary"),
            vmem_limit_bytes=_VMEM_LIMIT_BYTES),
        cost_estimate=pl.CostEstimate(
            flops=2 * M * N * K,
            transcendentals=0,
            bytes_accessed=(M * K + K * N + M * N + N) * itemsize),
    )(x, w, b.reshape(1, N))


# ---------------------- head-batched flash causal attention -----------------

def _flash_attn_kernel(q_ref, k_ref, v_ref, o_ref,
                       q_scr, m_ref, l_ref, acc_ref, *,
                       n_head, compute_dtype):
    # q_ref: (1, tq, C)  -- columns [0, C)  of the fused qkv tensor
    # k_ref/v_ref: (1, tkv, C) -- columns [C, 2C) / [2C, 3C)
    # o_ref: (1, tq, C) lane-dense output tile (heads packed along lanes)
    qi = pl.program_id(1)
    ki = pl.program_id(2)
    num_kv = pl.num_programs(2)

    _, tq, C = q_ref.shape
    _, tkv, _ = k_ref.shape
    H = n_head
    hd = C // H
    scale = 1.0 / math.sqrt(hd)

    q_start = qi * tq
    kv_start = ki * tkv

    @pl.when(ki == 0)
    def _():
        m_ref[...] = jnp.full(m_ref.shape, _MASK_VALUE, dtype=m_ref.dtype)
        l_ref[...] = jnp.zeros(l_ref.shape, dtype=l_ref.dtype)
        acc_ref[...] = jnp.zeros(acc_ref.shape, dtype=acc_ref.dtype)
        # Hoist the Q head split / transpose, the 1/sqrt(hd) scale and the MXU
        # operand cast out of the KV loop (done once per Q tile).
        q = jnp.transpose(q_ref[0].reshape(tq, H, hd), (1, 0, 2)) * scale
        q_scr[...] = q.astype(q_scr.dtype)                      # (H, tq, hd)

    def _attend(apply_mask):
        k = jnp.transpose(k_ref[0].reshape(tkv, H, hd), (1, 0, 2))   # (H, tkv, hd)
        v = jnp.transpose(v_ref[0].reshape(tkv, H, hd), (1, 0, 2))   # (H, tkv, hd)
        if compute_dtype is not None:
            k = k.astype(compute_dtype)
            v = v.astype(compute_dtype)

        # s[h, q, k] = sum_d q[h,q,d] * k[h,k,d]  (contract last dims, no k.T;
        # f32 accumulation on the MXU; 1/sqrt(hd) already folded into q_scr).
        s = jax.lax.dot_general(
            q_scr[...], k, (((2,), (2,)), ((0,), (0,))),
            preferred_element_type=jnp.float32)                 # (H, tq, tkv)

        if apply_mask:                                          # diagonal blocks only
            row = q_start + jax.lax.broadcasted_iota(jnp.int32, (tq, tkv), 0)
            col = kv_start + jax.lax.broadcasted_iota(jnp.int32, (tq, tkv), 1)
            s = jnp.where((col <= row)[None, :, :], s, _MASK_VALUE)

        # Online softmax update (f32 statistics, keepdims column vectors).
        m_prev = m_ref[...]                                     # (H, tq, 1)
        m_new = jnp.maximum(m_prev, jnp.max(s, axis=-1, keepdims=True))
        alpha = jnp.exp(m_prev - m_new)                         # (H, tq, 1)
        p = jnp.exp(s - m_new)                                  # (H, tq, tkv)

        l_ref[...] = alpha * l_ref[...] + jnp.sum(p, axis=-1, keepdims=True)
        # pv[h, q, d] = sum_k p[h,q,k] * v[h,k,d]   (p cast to MXU dtype).
        pv = jax.lax.dot_general(
            p.astype(v.dtype), v, (((2,), (1,)), ((0,), (0,))),
            preferred_element_type=jnp.float32)                 # (H, tq, hd)
        acc_ref[...] = alpha * acc_ref[...] + pv
        m_ref[...] = m_new

    # KV blocks entirely below the diagonal: no masking work at all.
    @pl.when(kv_start + (tkv - 1) <= q_start)
    def _():
        _attend(apply_mask=False)

    # Diagonal (straddling) KV blocks: partial causal mask.
    @pl.when(jnp.logical_and(kv_start <= q_start + (tq - 1),
                             kv_start + (tkv - 1) > q_start))
    def _():
        _attend(apply_mask=True)

    # (Blocks strictly above the diagonal are skipped entirely.)

    @pl.when(ki == num_kv - 1)
    def _():
        # Fold 1/l into the final accumulator scale (EUP approx reciprocal),
        # then emit one lane-dense (tq, C) tile (single transpose per Q tile).
        inv_l = pl.reciprocal(l_ref[...], approx=True)          # (H, tq, 1)
        out = acc_ref[...] * inv_l                              # (H, tq, hd)
        out = jnp.transpose(out, (1, 0, 2)).reshape(tq, C)      # (tq, C)
        o_ref[0] = out.astype(o_ref.dtype)


def pallas_flash_attention(qkv, n_head, *, block_q=128, block_kv=128,
                           compute_dtype=None):
    """qkv: (B, T, 3C) fused projection -> (B, T, C) causal attention output."""
    B, T, C3 = qkv.shape
    C = C3 // 3
    assert C % n_head == 0
    hd = C // n_head
    tq = _pick_tile(T, block_q, 8)
    tkv = _pick_tile(T, block_kv, 8)
    grid = (B, T // tq, T // tkv)
    itemsize = jnp.dtype(qkv.dtype).itemsize
    q_dtype = compute_dtype if compute_dtype is not None else qkv.dtype

    kernel = functools.partial(_flash_attn_kernel, n_head=n_head,
                               compute_dtype=compute_dtype)
    q_spec = pl.BlockSpec((1, tq, C), lambda b, qi, ki: (b, qi, 0))
    k_spec = pl.BlockSpec((1, tkv, C), lambda b, qi, ki: (b, ki, 1))
    v_spec = pl.BlockSpec((1, tkv, C), lambda b, qi, ki: (b, ki, 2))
    o_spec = pl.BlockSpec((1, tq, C), lambda b, qi, ki: (b, qi, 0))

    return pl.pallas_call(
        kernel,
        out_shape=jax.ShapeDtypeStruct((B, T, C), qkv.dtype),
        grid_spec=pltpu.PrefetchScalarGridSpec(
            num_scalar_prefetch=0,
            grid=grid,
            in_specs=[q_spec, k_spec, v_spec],
            out_specs=o_spec,
            scratch_shapes=[
                pltpu.VMEM((n_head, tq, hd), q_dtype),        # hoisted scaled Q
                pltpu.VMEM((n_head, tq, 1), jnp.float32),     # running max m
                pltpu.VMEM((n_head, tq, 1), jnp.float32),     # running sum l
                pltpu.VMEM((n_head, tq, hd), jnp.float32),    # output accumulator
            ],
        ),
        compiler_params=pltpu.CompilerParams(
            dimension_semantics=("parallel", "parallel", "arbitrary"),
            vmem_limit_bytes=_VMEM_LIMIT_BYTES),
        cost_estimate=pl.CostEstimate(
            flops=2 * B * T * T * C,                 # ~causal half of 4*B*T*T*C
            transcendentals=B * n_head * T * T // 2,
            bytes_accessed=4 * B * T * C * itemsize),
    )(qkv, qkv, qkv)


# ------------------------------ full forward ---------------------------------

def causal_self_attention(x, w_attn, b_attn, w_proj, b_proj, n_head, *,
                          block_q=128, block_kv=128, compute_dtype=None):
    """Forward pass of CausalSelfAttention (eval mode, rotary=None, mask=None)."""
    B, T, C = x.shape
    assert C % n_head == 0

    # Fused QKV projection (tiled Pallas matmul).
    qkv = pallas_linear(x.reshape(B * T, C), w_attn, b_attn,
                        compute_dtype=compute_dtype)               # (B*T, 3C)
    qkv = qkv.reshape(B, T, 3 * C)                                 # free reshape

    # Causal flash attention; head split/merge lives in BlockSpecs + kernel.
    y = pallas_flash_attention(qkv, n_head, block_q=block_q, block_kv=block_kv,
                               compute_dtype=compute_dtype)        # (B, T, C)

    # Output projection (tiled Pallas matmul).
    y = pallas_linear(y.reshape(B * T, C), w_proj, b_proj,
                      compute_dtype=compute_dtype)                 # (B*T, C)
    return y.reshape(B, T, C)


# ------------------------------ pure-JAX reference ---------------------------

def reference_attention(x, w_attn, b_attn, w_proj, b_proj, n_head):
    B, T, C = x.shape
    hd = C // n_head
    qkv = x.reshape(B * T, C) @ w_attn + b_attn
    q, k, v = jnp.split(qkv, 3, axis=-1)
    q = q.reshape(B, T, n_head, hd).transpose(0, 2, 1, 3)
    k = k.reshape(B, T, n_head, hd).transpose(0, 2, 1, 3)
    v = v.reshape(B, T, n_head, hd).transpose(0, 2, 1, 3)
    s = jnp.einsum("bhqd,bhkd->bhqk", q, k) / math.sqrt(hd)
    mask = jnp.tril(jnp.ones((T, T), dtype=bool))
    s = jnp.where(mask[None, None], s, -jnp.inf)
    p = jax.nn.softmax(s, axis=-1)
    y = jnp.einsum("bhqk,bhkd->bhqd", p, v)
    y = y.transpose(0, 2, 1, 3).reshape(B * T, C)
    y = y @ w_proj + b_proj
    return y.reshape(B, T, C)


# ---------------------------------- main --------------------------------------

if __name__ == "__main__":
    # Small, tile-aligned config (C multiple of 128 keeps blocks lane-dense).
    B, T, C, n_head = 2, 32, 128, 4

    key = jax.random.PRNGKey(0)
    kx, kw1, kb1, kw2, kb2 = jax.random.split(key, 5)

    x = jax.random.normal(kx, (B, T, C), dtype=jnp.float32)
    # c_attn: Linear(C, 3C); c_proj: Linear(C, C). Stored as (in, out) so the
    # kernel computes x @ W + b (== PyTorch x @ W.T + b).
    w_attn = jax.random.normal(kw1, (C, 3 * C), dtype=jnp.float32) * 0.02
    b_attn = jax.random.normal(kb1, (3 * C,), dtype=jnp.float32) * 0.02
    w_proj = jax.random.normal(kw2, (C, C), dtype=jnp.float32) * 0.02
    b_proj = jax.random.normal(kb2, (C,), dtype=jnp.float32) * 0.02

    y_ref = reference_attention(x, w_attn, b_attn, w_proj, b_proj, n_head)

    # Small attention blocks so the flash loop, causal skipping and the
    # diagonal-masking branch are all exercised (grid = (2, 4, 4)).
    fwd = jax.jit(functools.partial(causal_self_attention, n_head=n_head,
                                    block_q=8, block_kv=8, compute_dtype=None))
    y = jax.block_until_ready(fwd(x, w_attn, b_attn, w_proj, b_proj))
    assert y.shape == (B, T, C)
    max_err = float(jnp.max(jnp.abs(y - y_ref)))
    # Tolerance accounts for the EUP approx reciprocal in the softmax scale.
    assert jnp.allclose(y, y_ref, rtol=1e-2, atol=2e-3), (
        f"mismatch vs reference (max abs err {max_err})")

    # Also exercise the bf16 MXU-operand path (f32 accumulation / statistics).
    fwd_bf16 = jax.jit(functools.partial(causal_self_attention, n_head=n_head,
                                         block_q=8, block_kv=8,
                                         compute_dtype=jnp.bfloat16))
    y_bf16 = jax.block_until_ready(fwd_bf16(x, w_attn, b_attn, w_proj, b_proj))
    assert y_bf16.shape == (B, T, C)
    assert bool(jnp.all(jnp.isfinite(y_bf16)))
    assert jnp.allclose(y_bf16, y_ref, rtol=5e-2, atol=5e-2), (
        f"bf16 path mismatch (max abs err "
        f"{float(jnp.max(jnp.abs(y_bf16 - y_ref)))})")

    print("KERNEL_OK")
</pallas_src>

<mosaic_0001>
module attributes {stable_mosaic.version = 11 : i64} {
  func.func @_linear_kernel(%arg0: i32, %arg1: i32, %arg2: i32, %arg3: memref<64x128xf32, #tpu.memory_space<vmem>>, %arg4: memref<128x128xf32, #tpu.memory_space<vmem>>, %arg5: memref<1x128xf32, #tpu.memory_space<vmem>>, %arg6: memref<64x128xf32, #tpu.memory_space<vmem>>, %arg7: memref<64x128xf32, #tpu.memory_space<vmem>>) attributes {dimension_semantics = [#tpu.dimension_semantics<parallel>, #tpu.dimension_semantics<parallel>, #tpu.dimension_semantics<arbitrary>], iteration_bounds = array<i64: 1, 1, 1>, scalar_prefetch = 0 : i64, scratch_operands = 1 : i64, tpu.core_type = #tpu.core_type<tc>, window_params = [{transform_indices = @transform_0, window_bounds = array<i64: 64, 128>}, {transform_indices = @transform_1, window_bounds = array<i64: 128, 128>}, {transform_indices = @transform_2, window_bounds = array<i64: 1, 128>}, {transform_indices = @transform_3, window_bounds = array<i64: 64, 128>}]} {
    %c0_i32 = arith.constant 0 : i32
    %0 = arith.cmpi eq, %arg2, %c0_i32 : i32
    %1 = arith.extui %0 : i1 to i32
    %c0_i32_0 = arith.constant 0 : i32
    %2 = arith.cmpi ne, %1, %c0_i32_0 : i32
    scf.if %2 {
      %cst_10 = arith.constant 0.000000e+00 : f32
      %12 = vector.broadcast %cst_10 : f32 to vector<64x128xf32>
      %c0_11 = arith.constant 0 : index
      %c0_12 = arith.constant 0 : index
      %13 = vector.load %arg7[%c0_11, %c0_12] : memref<64x128xf32, #tpu.memory_space<vmem>>, vector<64x128xf32>
      tpu.vector_store %arg7[%c0_11, %c0_12], %12 {strides = array<i32>} : memref<64x128xf32, #tpu.memory_space<vmem>>, vector<64x128xf32>,
    } else {
    }
    %c0 = arith.constant 0 : index
    %c0_1 = arith.constant 0 : index
    %3 = vector.load %arg3[%c0, %c0_1] : memref<64x128xf32, #tpu.memory_space<vmem>>, vector<64x128xf32>
    %c0_2 = arith.constant 0 : index
    %c0_3 = arith.constant 0 : index
    %4 = vector.load %arg4[%c0_2, %c0_3] : memref<128x128xf32, #tpu.memory_space<vmem>>, vector<128x128xf32>
    %c0_4 = arith.constant 0 : index
    %c0_5 = arith.constant 0 : index
    %5 = vector.load %arg7[%c0_4, %c0_5] : memref<64x128xf32, #tpu.memory_space<vmem>>, vector<64x128xf32>
    %cst = arith.constant dense<0.000000e+00> : vector<64x128xf32>
    %6 = tpu.matmul %3, %4, %cst {dimension_numbers = #tpu.dot_dimension_numbers<[1], [0], [0], [1], [0, 0, 1, 1], [], []>} : vector<64x128xf32>, vector<128x128xf32>, vector<64x128xf32> -> vector<64x128xf32>
    %7 = arith.addf %5, %6 : vector<64x128xf32>
    %c0_6 = arith.constant 0 : index
    %c0_7 = arith.constant 0 : index
    %8 = vector.load %arg7[%c0_6, %c0_7] : memref<64x128xf32, #tpu.memory_space<vmem>>, vector<64x128xf32>
    tpu.vector_store %arg7[%c0_6, %c0_7], %7 {strides = array<i32>} : memref<64x128xf32, #tpu.memory_space<vmem>>, vector<64x128xf32>,
    %c0_i32_8 = arith.constant 0 : i32
    %9 = arith.cmpi eq, %arg2, %c0_i32_8 : i32
    %10 = arith.extui %9 : i1 to i32
    %c0_i32_9 = arith.constant 0 : i32
    %11 = arith.cmpi ne, %10, %c0_i32_9 : i32
    scf.if %11 {
      %c0_10 = arith.constant 0 : index
      %c0_11 = arith.constant 0 : index
      %12 = vector.load %arg7[%c0_10, %c0_11] : memref<64x128xf32, #tpu.memory_space<vmem>>, vector<64x128xf32>
      %c0_12 = arith.constant 0 : index
      %c0_13 = arith.constant 0 : index
      %13 = vector.load %arg5[%c0_12, %c0_13] : memref<1x128xf32, #tpu.memory_space<vmem>>, vector<1x128xf32>
      %14 = vector.broadcast %13 : vector<1x128xf32> to vector<64x128xf32>
      %15 = arith.addf %12, %14 : vector<64x128xf32>
      %c0_14 = arith.constant 0 : index
      %c0_15 = arith.constant 0 : index
      %16 = vector.load %arg6[%c0_14, %c0_15] : memref<64x128xf32, #tpu.memory_space<vmem>>, vector<64x128xf32>
      tpu.vector_store %arg6[%c0_14, %c0_15], %15 {strides = array<i32>} : memref<64x128xf32, #tpu.memory_space<vmem>>, vector<64x128xf32>,
    } else {
    }
    return
  }
  func.func @transform_0(%arg0: i32, %arg1: i32, %arg2: i32) -> (i32, i32) {
    %c0_i32 = arith.constant 0 : i32
    return %arg0, %arg2 : i32, i32
  }
  func.func @transform_1(%arg0: i32, %arg1: i32, %arg2: i32) -> (i32, i32) {
    %c0_i32 = arith.constant 0 : i32
    return %arg2, %arg1 : i32, i32
  }
  func.func @transform_2(%arg0: i32, %arg1: i32, %arg2: i32) -> (i32, i32) {
    %c0_i32 = arith.constant 0 : i32
    %c0_i32_0 = arith.constant 0 : i32
    return %c0_i32, %arg1 : i32, i32
  }
  func.func @transform_3(%arg0: i32, %arg1: i32, %arg2: i32) -> (i32, i32) {
    %c0_i32 = arith.constant 0 : i32
    return %arg0, %arg1 : i32, i32
  }
}

module attributes {stable_mosaic.version = 11 : i64} {
  func.func @_linear_kernel(%arg0: i32, %arg1: i32, %arg2: i32, %arg3: memref<64x128xf32, #tpu.memory_space<vmem>>, %arg4: memref<128x384xf32, #tpu.memory_space<vmem>>, %arg5: memref<1x384xf32, #tpu.memory_space<vmem>>, %arg6: memref<64x384xf32, #tpu.memory_space<vmem>>, %arg7: memref<64x384xf32, #tpu.memory_space<vmem>>) attributes {dimension_semantics = [#tpu.dimension_semantics<parallel>, #tpu.dimension_semantics<parallel>, #tpu.dimension_semantics<arbitrary>], iteration_bounds = array<i64: 1, 1, 1>, scalar_prefetch = 0 : i64, scratch_operands = 1 : i64, tpu.core_type = #tpu.core_type<tc>, window_params = [{transform_indices = @transform_0, window_bounds = array<i64: 64, 128>}, {transform_indices = @transform_1, window_bounds = array<i64: 128, 384>}, {transform_indices = @transform_2, window_bounds = array<i64: 1, 384>}, {transform_indices = @transform_3, window_bounds = array<i64: 64, 384>}]} {
    %c0_i32 = arith.constant 0 : i32
    %0 = arith.cmpi eq, %arg2, %c0_i32 : i32
    %1 = arith.extui %0 : i1 to i32
    %c0_i32_0 = arith.constant 0 : i32
    %2 = arith.cmpi ne, %1, %c0_i32_0 : i32
    scf.if %2 {
      %cst_10 = arith.constant 0.000000e+00 : f32
      %12 = vector.broadcast %cst_10 : f32 to vector<64x384xf32>
      %c0_11 = arith.constant 0 : index
      %c0_12 = arith.constant 0 : index
      %13 = vector.load %arg7[%c0_11, %c0_12] : memref<64x384xf32, #tpu.memory_space<vmem>>, vector<64x384xf32>
      tpu.vector_store %arg7[%c0_11, %c0_12], %12 {strides = array<i32>} : memref<64x384xf32, #tpu.memory_space<vmem>>, vector<64x384xf32>,
    } else {
    }
    %c0 = arith.constant 0 : index
    %c0_1 = arith.constant 0 : index
    %3 = vector.load %arg3[%c0, %c0_1] : memref<64x128xf32, #tpu.memory_space<vmem>>, vector<64x128xf32>
    %c0_2 = arith.constant 0 : index
    %c0_3 = arith.constant 0 : index
    %4 = vector.load %arg4[%c0_2, %c0_3] : memref<128x384xf32, #tpu.memory_space<vmem>>, vector<128x384xf32>
    %c0_4 = arith.constant 0 : index
    %c0_5 = arith.constant 0 : index
    %5 = vector.load %arg7[%c0_4, %c0_5] : memref<64x384xf32, #tpu.memory_space<vmem>>, vector<64x384xf32>
    %cst = arith.constant dense<0.000000e+00> : vector<64x384xf32>
    %6 = tpu.matmul %3, %4, %cst {dimension_numbers = #tpu.dot_dimension_numbers<[1], [0], [0], [1], [0, 0, 1, 1], [], []>} : vector<64x128xf32>, vector<128x384xf32>, vector<64x384xf32> -> vector<64x384xf32>
    %7 = arith.addf %5, %6 : vector<64x384xf32>
    %c0_6 = arith.constant 0 : index
    %c0_7 = arith.constant 0 : index
    %8 = vector.load %arg7[%c0_6, %c0_7] : memref<64x384xf32, #tpu.memory_space<vmem>>, vector<64x384xf32>
    tpu.vector_store %arg7[%c0_6, %c0_7], %7 {strides = array<i32>} : memref<64x384xf32, #tpu.memory_space<vmem>>, vector<64x384xf32>,
    %c0_i32_8 = arith.constant 0 : i32
    %9 = arith.cmpi eq, %arg2, %c0_i32_8 : i32
    %10 = arith.extui %9 : i1 to i32
    %c0_i32_9 = arith.constant 0 : i32
    %11 = arith.cmpi ne, %10, %c0_i32_9 : i32
    scf.if %11 {
      %c0_10 = arith.constant 0 : index
      %c0_11 = arith.constant 0 : index
      %12 = vector.load %arg7[%c0_10, %c0_11] : memref<64x384xf32, #tpu.memory_space<vmem>>, vector<64x384xf32>
      %c0_12 = arith.constant 0 : index
      %c0_13 = arith.constant 0 : index
      %13 = vector.load %arg5[%c0_12, %c0_13] : memref<1x384xf32, #tpu.memory_space<vmem>>, vector<1x384xf32>
      %14 = vector.broadcast %13 : vector<1x384xf32> to vector<64x384xf32>
      %15 = arith.addf %12, %14 : vector<64x384xf32>
      %c0_14 = arith.constant 0 : index
      %c0_15 = arith.constant 0 : index
      %16 = vector.load %arg6[%c0_14, %c0_15] : memref<64x384xf32, #tpu.memory_space<vmem>>, vector<64x384xf32>
      tpu.vector_store %arg6[%c0_14, %c0_15], %15 {strides = array<i32>} : memref<64x384xf32, #tpu.memory_space<vmem>>, vector<64x384xf32>,
    } else {
    }
    return
  }
  func.func @transform_0(%arg0: i32, %arg1: i32, %arg2: i32) -> (i32, i32) {
    %c0_i32 = arith.constant 0 : i32
    return %arg0, %arg2 : i32, i32
  }
  func.func @transform_1(%arg0: i32, %arg1: i32, %arg2: i32) -> (i32, i32) {
    %c0_i32 = arith.constant 0 : i32
    return %arg2, %arg1 : i32, i32
  }
  func.func @transform_2(%arg0: i32, %arg1: i32, %arg2: i32) -> (i32, i32) {
    %c0_i32 = arith.constant 0 : i32
    %c0_i32_0 = arith.constant 0 : i32
    return %c0_i32, %arg1 : i32, i32
  }
  func.func @transform_3(%arg0: i32, %arg1: i32, %arg2: i32) -> (i32, i32) {
    %c0_i32 = arith.constant 0 : i32
    return %arg0, %arg1 : i32, i32
  }
}

module attributes {stable_mosaic.version = 11 : i64} {
  func.func @_flash_attn_kernel(%arg0: i32, %arg1: i32, %arg2: i32, %arg3: memref<1x8x128xf32, #tpu.memory_space<vmem>>, %arg4: memref<1x8x128xf32, #tpu.memory_space<vmem>>, %arg5: memref<1x8x128xf32, #tpu.memory_space<vmem>>, %arg6: memref<1x8x128xf32, #tpu.memory_space<vmem>>, %arg7: memref<4x8x32xf32, #tpu.memory_space<vmem>>, %arg8: memref<4x8x1xf32, #tpu.memory_space<vmem>>, %arg9: memref<4x8x1xf32, #tpu.memory_space<vmem>>, %arg10: memref<4x8x32xf32, #tpu.memory_space<vmem>>) attributes {dimension_semantics = [#tpu.dimension_semantics<parallel>, #tpu.dimension_semantics<parallel>, #tpu.dimension_semantics<arbitrary>], iteration_bounds = array<i64: 2, 4, 4>, scalar_prefetch = 0 : i64, scratch_operands = 4 : i64, tpu.core_type = #tpu.core_type<tc>, window_params = [{transform_indices = @transform_0, window_bounds = array<i64: 1, 8, 128>}, {transform_indices = @transform_1, window_bounds = array<i64: 1, 8, 128>}, {transform_indices = @transform_2, window_bounds = array<i64: 1, 8, 128>}, {transform_indices = @transform_3, window_bounds = array<i64: 1, 8, 128>}]} {
    %c8_i32 = arith.constant 8 : i32
    %0 = arith.muli %arg1, %c8_i32 : i32
    %c8_i32_0 = arith.constant 8 : i32
    %1 = arith.muli %arg2, %c8_i32_0 : i32
    %c0_i32 = arith.constant 0 : i32
    %2 = arith.cmpi eq, %arg2, %c0_i32 : i32
    %3 = arith.extui %2 : i1 to i32
    %c0_i32_1 = arith.constant 0 : i32
    %4 = arith.cmpi ne, %3, %c0_i32_1 : i32
    scf.if %4 {
      %cst = arith.constant -1.000000e+30 : f32
      %19 = vector.broadcast %cst : f32 to vector<4x8x1xf32>
      %c0 = arith.constant 0 : index
      %c0_7 = arith.constant 0 : index
      %c0_8 = arith.constant 0 : index
      %20 = vector.load %arg8[%c0, %c0_7, %c0_8] : memref<4x8x1xf32, #tpu.memory_space<vmem>>, vector<4x8x1xf32>
      tpu.vector_store %arg8[%c0, %c0_7, %c0_8], %19 {strides = array<i32>} : memref<4x8x1xf32, #tpu.memory_space<vmem>>, vector<4x8x1xf32>,
      %cst_9 = arith.constant 0.000000e+00 : f32
      %21 = vector.broadcast %cst_9 : f32 to vector<4x8x1xf32>
      %c0_10 = arith.constant 0 : index
      %c0_11 = arith.constant 0 : index
      %c0_12 = arith.constant 0 : index
      %22 = vector.load %arg9[%c0_10, %c0_11, %c0_12] : memref<4x8x1xf32, #tpu.memory_space<vmem>>, vector<4x8x1xf32>
      tpu.vector_store %arg9[%c0_10, %c0_11, %c0_12], %21 {strides = array<i32>} : memref<4x8x1xf32, #tpu.memory_space<vmem>>, vector<4x8x1xf32>,
      %cst_13 = arith.constant 0.000000e+00 : f32
      %23 = vector.broadcast %cst_13 : f32 to vector<4x8x32xf32>
      %c0_14 = arith.constant 0 : index
      %c0_15 = arith.constant 0 : index
      %c0_16 = arith.constant 0 : index
      %24 = vector.load %arg10[%c0_14, %c0_15, %c0_16] : memref<4x8x32xf32, #tpu.memory_space<vmem>>, vector<4x8x32xf32>
      tpu.vector_store %arg10[%c0_14, %c0_15, %c0_16], %23 {strides = array<i32>} : memref<4x8x32xf32, #tpu.memory_space<vmem>>, vector<4x8x32xf32>,
      %c0_17 = arith.constant 0 : index
      %c0_18 = arith.constant 0 : index
      %c0_19 = arith.constant 0 : index
      %25 = vector.load %arg3[%c0_17, %c0_18, %c0_19] : memref<1x8x128xf32, #tpu.memory_space<vmem>>, vector<1x8x128xf32>
      %26 = vector.shape_cast %25 : vector<1x8x128xf32> to vector<8x128xf32>
      %27 = vector.shape_cast %26 : vector<8x128xf32> to vector<8x4x32xf32>
      %28 = tpu.transpose %27, [1, 0, 2] : vector<8x4x32xf32> -> vector<4x8x32xf32>
      %cst_20 = arith.constant 0.176776692 : f32
      %29 = vector.broadcast %cst_20 : f32 to vector<4x8x32xf32>
      %30 = arith.mulf %28, %29 : vector<4x8x32xf32>
      %c0_21 = arith.constant 0 : index
      %c0_22 = arith.constant 0 : index
      %c0_23 = arith.constant 0 : index
      %31 = vector.load %arg7[%c0_21, %c0_22, %c0_23] : memref<4x8x32xf32, #tpu.memory_space<vmem>>, vector<4x8x32xf32>
      tpu.vector_store %arg7[%c0_21, %c0_22, %c0_23], %30 {strides = array<i32>} : memref<4x8x32xf32, #tpu.memory_space<vmem>>, vector<4x8x32xf32>,
    } else {
    }
    %c7_i32 = arith.constant 7 : i32
    %5 = arith.addi %1, %c7_i32 : i32
    %6 = arith.cmpi sle, %5, %0 : i32
    %7 = arith.extui %6 : i1 to i32
    %c0_i32_2 = arith.constant 0 : i32
    %8 = arith.cmpi ne, %7, %c0_i32_2 : i32
    scf.if %8 {
      %c0 = arith.constant 0 : index
      %c0_7 = arith.constant 0 : index
      %c0_8 = arith.constant 0 : index
      %19 = vector.load %arg4[%c0, %c0_7, %c0_8] : memref<1x8x128xf32, #tpu.memory_space<vmem>>, vector<1x8x128xf32>
      %20 = vector.shape_cast %19 : vector<1x8x128xf32> to vector<8x128xf32>
      %21 = vector.shape_cast %20 : vector<8x128xf32> to vector<8x4x32xf32>
      %22 = tpu.transpose %21, [1, 0, 2] : vector<8x4x32xf32> -> vector<4x8x32xf32>
      %c0_9 = arith.constant 0 : index
      %c0_10 = arith.constant 0 : index
      %c0_11 = arith.constant 0 : index
      %23 = vector.load %arg5[%c0_9, %c0_10, %c0_11] : memref<1x8x128xf32, #tpu.memory_space<vmem>>, vector<1x8x128xf32>
      %24 = vector.shape_cast %23 : vector<1x8x128xf32> to vector<8x128xf32>
      %25 = vector.shape_cast %24 : vector<8x128xf32> to vector<8x4x32xf32>
      %26 = tpu.transpose %25, [1, 0, 2] : vector<8x4x32xf32> -> vector<4x8x32xf32>
      %c0_12 = arith.constant 0 : index
      %c0_13 = arith.constant 0 : index
      %c0_14 = arith.constant 0 : index
      %27 = vector.load %arg7[%c0_12, %c0_13, %c0_14] : memref<4x8x32xf32, #tpu.memory_space<vmem>>, vector<4x8x32xf32>
      %cst = arith.constant dense<0.000000e+00> : vector<4x8x8xf32>
      %28 = tpu.matmul %27, %22, %cst {dimension_numbers = #tpu.dot_dimension_numbers<[2], [2], [1], [1], [0, 0, 0, 1, 1, 1], [0], [0]>} : vector<4x8x32xf32>, vector<4x8x32xf32>, vector<4x8x8xf32> -> vector<4x8x8xf32>
      %c0_15 = arith.constant 0 : index
      %c0_16 = arith.constant 0 : index
      %c0_17 = arith.constant 0 : index
      %29 = vector.load %arg8[%c0_15, %c0_16, %c0_17] : memref<4x8x1xf32, #tpu.memory_space<vmem>>, vector<4x8x1xf32>
      %cst_18 = arith.constant dense<0xFF800000> : vector<4x8xf32>
      %30 = vector.multi_reduction <maximumf>, %28, %cst_18 [2] : vector<4x8x8xf32> to vector<4x8xf32>
      %31 = vector.shape_cast %30 : vector<4x8xf32> to vector<4x8x1xf32>
      %32 = arith.maximumf %29, %31 : vector<4x8x1xf32>
      %33 = arith.subf %29, %32 : vector<4x8x1xf32>
      %34 = math.exp %33 : vector<4x8x1xf32>
      %35 = vector.broadcast %32 : vector<4x8x1xf32> to vector<4x8x8xf32>
      %36 = arith.subf %28, %35 : vector<4x8x8xf32>
      %37 = math.exp %36 : vector<4x8x8xf32>
      %c0_19 = arith.constant 0 : index
      %c0_20 = arith.constant 0 : index
      %c0_21 = arith.constant 0 : index
      %38 = vector.load %arg9[%c0_19, %c0_20, %c0_21] : memref<4x8x1xf32, #tpu.memory_space<vmem>>, vector<4x8x1xf32>
      %39 = arith.mulf %34, %38 : vector<4x8x1xf32>
      %cst_22 = arith.constant dense<0.000000e+00> : vector<4x8xf32>
      %40 = vector.multi_reduction <add>, %37, %cst_22 [2] : vector<4x8x8xf32> to vector<4x8xf32>
      %41 = vector.shape_cast %40 : vector<4x8xf32> to vector<4x8x1xf32>
      %42 = arith.addf %39, %41 : vector<4x8x1xf32>
      %c0_23 = arith.constant 0 : index
      %c0_24 = arith.constant 0 : index
      %c0_25 = arith.constant 0 : index
      %43 = vector.load %arg9[%c0_23, %c0_24, %c0_25] : memref<4x8x1xf32, #tpu.memory_space<vmem>>, vector<4x8x1xf32>
      tpu.vector_store %arg9[%c0_23, %c0_24, %c0_25], %42 {strides = array<i32>} : memref<4x8x1xf32, #tpu.memory_space<vmem>>, vector<4x8x1xf32>,
      %cst_26 = arith.constant dense<0.000000e+00> : vector<4x8x32xf32>
      %44 = tpu.matmul %37, %26, %cst_26 {dimension_numbers = #tpu.dot_dimension_numbers<[2], [1], [1], [2], [0, 0, 0, 1, 1, 2], [0], [0]>} : vector<4x8x8xf32>, vector<4x8x32xf32>, vector<4x8x32xf32> -> vector<4x8x32xf32>
      %c0_27 = arith.constant 0 : index
      %c0_28 = arith.constant 0 : index
      %c0_29 = arith.constant 0 : index
      %45 = vector.load %arg10[%c0_27, %c0_28, %c0_29] : memref<4x8x32xf32, #tpu.memory_space<vmem>>, vector<4x8x32xf32>
      %46 = vector.broadcast %34 : vector<4x8x1xf32> to vector<4x8x32xf32>
      %47 = arith.mulf %46, %45 : vector<4x8x32xf32>
      %48 = arith.addf %47, %44 : vector<4x8x32xf32>
      %c0_30 = arith.constant 0 : index
      %c0_31 = arith.constant 0 : index
      %c0_32 = arith.constant 0 : index
      %49 = vector.load %arg10[%c0_30, %c0_31, %c0_32] : memref<4x8x32xf32, #tpu.memory_space<vmem>>, vector<4x8x32xf32>
      tpu.vector_store %arg10[%c0_30, %c0_31, %c0_32], %48 {strides = array<i32>} : memref<4x8x32xf32, #tpu.memory_space<vmem>>, vector<4x8x32xf32>,
      %c0_33 = arith.constant 0 : index
      %c0_34 = arith.constant 0 : index
      %c0_35 = arith.constant 0 : index
      %50 = vector.load %arg8[%c0_33, %c0_34, %c0_35] : memref<4x8x1xf32, #tpu.memory_space<vmem>>, vector<4x8x1xf32>
      tpu.vector_store %arg8[%c0_33, %c0_34, %c0_35], %32 {strides = array<i32>} : memref<4x8x1xf32, #tpu.memory_space<vmem>>, vector<4x8x1xf32>,
    } else {
    }
    %c7_i32_3 = arith.constant 7 : i32
    %9 = arith.addi %0, %c7_i32_3 : i32
    %10 = arith.cmpi sle, %1, %9 : i32
    %c7_i32_4 = arith.constant 7 : i32
    %11 = arith.addi %1, %c7_i32_4 : i32
    %12 = arith.cmpi sgt, %11, %0 : i32
    %13 = arith.andi %10, %12 : i1
    %14 = arith.extui %13 : i1 to i32
    %c0_i32_5 = arith.constant 0 : i32
    %15 = arith.cmpi ne, %14, %c0_i32_5 : i32
    scf.if %15 {
      %c0 = arith.constant 0 : index
      %c0_7 = arith.constant 0 : index
      %c0_8 = arith.constant 0 : index
      %19 = vector.load %arg4[%c0, %c0_7, %c0_8] : memref<1x8x128xf32, #tpu.memory_space<vmem>>, vector<1x8x128xf32>
      %20 = vector.shape_cast %19 : vector<1x8x128xf32> to vector<8x128xf32>
      %21 = vector.shape_cast %20 : vector<8x128xf32> to vector<8x4x32xf32>
      %22 = tpu.transpose %21, [1, 0, 2] : vector<8x4x32xf32> -> vector<4x8x32xf32>
      %c0_9 = arith.constant 0 : index
      %c0_10 = arith.constant 0 : index
      %c0_11 = arith.constant 0 : index
      %23 = vector.load %arg5[%c0_9, %c0_10, %c0_11] : memref<1x8x128xf32, #tpu.memory_space<vmem>>, vector<1x8x128xf32>
      %24 = vector.shape_cast %23 : vector<1x8x128xf32> to vector<8x128xf32>
      %25 = vector.shape_cast %24 : vector<8x128xf32> to vector<8x4x32xf32>
      %26 = tpu.transpose %25, [1, 0, 2] : vector<8x4x32xf32> -> vector<4x8x32xf32>
      %c0_12 = arith.constant 0 : index
      %c0_13 = arith.constant 0 : index
      %c0_14 = arith.constant 0 : index
      %27 = vector.load %arg7[%c0_12, %c0_13, %c0_14] : memref<4x8x32xf32, #tpu.memory_space<vmem>>, vector<4x8x32xf32>
      %cst = arith.constant dense<0.000000e+00> : vector<4x8x8xf32>
      %28 = tpu.matmul %27, %22, %cst {dimension_numbers = #tpu.dot_dimension_numbers<[2], [2], [1], [1], [0, 0, 0, 1, 1, 1], [0], [0]>} : vector<4x8x32xf32>, vector<4x8x32xf32>, vector<4x8x8xf32> -> vector<4x8x8xf32>
      %29 = tpu.iota {dimensions = array<i32: 0>} : vector<8x8xi32>
      %30 = vector.broadcast %0 : i32 to vector<8x8xi32>
      %31 = arith.addi %30, %29 : vector<8x8xi32>
      %32 = tpu.iota {dimensions = array<i32: 1>} : vector<8x8xi32>
      %33 = vector.broadcast %1 : i32 to vector<8x8xi32>
      %34 = arith.addi %33, %32 : vector<8x8xi32>
      %35 = arith.cmpi sle, %34, %31 : vector<8x8xi32>
      %36 = vector.shape_cast %35 : vector<8x8xi1> to vector<1x8x8xi1>
      %cst_15 = arith.constant -1.000000e+30 : f32
      %37 = vector.shape_cast %36 : vector<1x8x8xi1> to vector<1x8x8xi1>
      %38 = vector.broadcast %37 : vector<1x8x8xi1> to vector<4x8x8xi1>
      %39 = vector.broadcast %cst_15 : f32 to vector<4x8x8xf32>
      %40 = arith.select %38, %28, %39 : vector<4x8x8xi1>, vector<4x8x8xf32>
      %c0_16 = arith.constant 0 : index
      %c0_17 = arith.constant 0 : index
      %c0_18 = arith.constant 0 : index
      %41 = vector.load %arg8[%c0_16, %c0_17, %c0_18] : memref<4x8x1xf32, #tpu.memory_space<vmem>>, vector<4x8x1xf32>
      %cst_19 = arith.constant dense<0xFF800000> : vector<4x8xf32>
      %42 = vector.multi_reduction <maximumf>, %40, %cst_19 [2] : vector<4x8x8xf32> to vector<4x8xf32>
      %43 = vector.shape_cast %42 : vector<4x8xf32> to vector<4x8x1xf32>
      %44 = arith.maximumf %41, %43 : vector<4x8x1xf32>
      %45 = arith.subf %41, %44 : vector<4x8x1xf32>
      %46 = math.exp %45 : vector<4x8x1xf32>
      %47 = vector.broadcast %44 : vector<4x8x1xf32> to vector<4x8x8xf32>
      %48 = arith.subf %40, %47 : vector<4x8x8xf32>
      %49 = math.exp %48 : vector<4x8x8xf32>
      %c0_20 = arith.constant 0 : index
      %c0_21 = arith.constant 0 : index
      %c0_22 = arith.constant 0 : index
      %50 = vector.load %arg9[%c0_20, %c0_21, %c0_22] : memref<4x8x1xf32, #tpu.memory_space<vmem>>, vector<4x8x1xf32>
      %51 = arith.mulf %46, %50 : vector<4x8x1xf32>
      %cst_23 = arith.constant dense<0.000000e+00> : vector<4x8xf32>
      %52 = vector.multi_reduction <add>, %49, %cst_23 [2] : vector<4x8x8xf32> to vector<4x8xf32>
      %53 = vector.shape_cast %52 : vector<4x8xf32> to vector<4x8x1xf32>
      %54 = arith.addf %51, %53 : vector<4x8x1xf32>
      %c0_24 = arith.constant 0 : index
      %c0_25 = arith.constant 0 : index
      %c0_26 = arith.constant 0 : index
      %55 = vector.load %arg9[%c0_24, %c0_25, %c0_26] : memref<4x8x1xf32, #tpu.memory_space<vmem>>, vector<4x8x1xf32>
      tpu.vector_store %arg9[%c0_24, %c0_25, %c0_26], %54 {strides = array<i32>} : memref<4x8x1xf32, #tpu.memory_space<vmem>>, vector<4x8x1xf32>,
      %cst_27 = arith.constant dense<0.000000e+00> : vector<4x8x32xf32>
      %56 = tpu.matmul %49, %26, %cst_27 {dimension_numbers = #tpu.dot_dimension_numbers<[2], [1], [1], [2], [0, 0, 0, 1, 1, 2], [0], [0]>} : vector<4x8x8xf32>, vector<4x8x32xf32>, vector<4x8x32xf32> -> vector<4x8x32xf32>
      %c0_28 = arith.constant 0 : index
      %c0_29 = arith.constant 0 : index
      %c0_30 = arith.constant 0 : index
      %57 = vector.load %arg10[%c0_28, %c0_29, %c0_30] : memref<4x8x32xf32, #tpu.memory_space<vmem>>, vector<4x8x32xf32>
      %58 = vector.broadcast %46 : vector<4x8x1xf32> to vector<4x8x32xf32>
      %59 = arith.mulf %58, %57 : vector<4x8x32xf32>
      %60 = arith.addf %59, %56 : vector<4x8x32xf32>
      %c0_31 = arith.constant 0 : index
      %c0_32 = arith.constant 0 : index
      %c0_33 = arith.constant 0 : index
      %61 = vector.load %arg10[%c0_31, %c0_32, %c0_33] : memref<4x8x32xf32, #tpu.memory_space<vmem>>, vector<4x8x32xf32>
      tpu.vector_store %arg10[%c0_31, %c0_32, %c0_33], %60 {strides = array<i32>} : memref<4x8x32xf32, #tpu.memory_space<vmem>>, vector<4x8x32xf32>,
      %c0_34 = arith.constant 0 : index
      %c0_35 = arith.constant 0 : index
      %c0_36 = arith.constant 0 : index
      %62 = vector.load %arg8[%c0_34, %c0_35, %c0_36] : memref<4x8x1xf32, #tpu.memory_space<vmem>>, vector<4x8x1xf32>
      tpu.vector_store %arg8[%c0_34, %c0_35, %c0_36], %44 {strides = array<i32>} : memref<4x8x1xf32, #tpu.memory_space<vmem>>, vector<4x8x1xf32>,
    } else {
    }
    %c3_i32 = arith.constant 3 : i32
    %16 = arith.cmpi eq, %arg2, %c3_i32 : i32
    %17 = arith.extui %16 : i1 to i32
    %c0_i32_6 = arith.constant 0 : i32
    %18 = arith.cmpi ne, %17, %c0_i32_6 : i32
    scf.if %18 {
      %c0 = arith.constant 0 : index
      %c0_7 = arith.constant 0 : index
      %c0_8 = arith.constant 0 : index
      %19 = vector.load %arg9[%c0, %c0_7, %c0_8] : memref<4x8x1xf32, #tpu.memory_space<vmem>>, vector<4x8x1xf32>
      %20 = tpu.reciprocal %19 {approx = true} : vector<4x8x1xf32> -> vector<4x8x1xf32>
      %c0_9 = arith.constant 0 : index
      %c0_10 = arith.constant 0 : index
      %c0_11 = arith.constant 0 : index
      %21 = vector.load %arg10[%c0_9, %c0_10, %c0_11] : memref<4x8x32xf32, #tpu.memory_space<vmem>>, vector<4x8x32xf32>
      %22 = vector.broadcast %20 : vector<4x8x1xf32> to vector<4x8x32xf32>
      %23 = arith.mulf %21, %22 : vector<4x8x32xf32>
      %24 = tpu.transpose %23, [1, 0, 2] : vector<4x8x32xf32> -> vector<8x4x32xf32>
      %25 = vector.shape_cast %24 : vector<8x4x32xf32> to vector<8x128xf32>
      %c0_12 = arith.constant 0 : index
      %c0_13 = arith.constant 0 : index
      %c0_14 = arith.constant 0 : index
      %26 = vector.load %arg6[%c0_12, %c0_13, %c0_14] : memref<1x8x128xf32, #tpu.memory_space<vmem>>, vector<1x8x128xf32>
      %27 = vector.shape_cast %26 : vector<1x8x128xf32> to vector<8x128xf32>
      %28 = vector.shape_cast %25 : vector<8x128xf32> to vector<1x8x128xf32>
      tpu.vector_store %arg6[%c0_12, %c0_13, %c0_14], %28 {strides = array<i32>} : memref<1x8x128xf32, #tpu.memory_space<vmem>>, vector<1x8x128xf32>,
    } else {
    }
    return
  }
  func.func @transform_0(%arg0: i32, %arg1: i32, %arg2: i32) -> (i32, i32, i32) {
    %c0_i32 = arith.constant 0 : i32
    %c0_i32_0 = arith.constant 0 : i32
    return %arg0, %arg1, %c0_i32 : i32, i32, i32
  }
  func.func @transform_1(%arg0: i32, %arg1: i32, %arg2: i32) -> (i32, i32, i32) {
    %c1_i32 = arith.constant 1 : i32
    %c0_i32 = arith.constant 0 : i32
    return %arg0, %arg2, %c1_i32 : i32, i32, i32
  }
  func.func @transform_2(%arg0: i32, %arg1: i32, %arg2: i32) -> (i32, i32, i32) {
    %c2_i32 = arith.constant 2 : i32
    %c0_i32 = arith.constant 0 : i32
    return %arg0, %arg2, %c2_i32 : i32, i32, i32
  }
  func.func @transform_3(%arg0: i32, %arg1: i32, %arg2: i32) -> (i32, i32, i32) {
    %c0_i32 = arith.constant 0 : i32
    %c0_i32_0 = arith.constant 0 : i32
    return %arg0, %arg1, %c0_i32 : i32, i32, i32
  }
}

</mosaic_0001>

<llo_original>
// kernel: causal_self_attention.5
$region0: #{causal_self_attention.5}
  #allocation0 [shape = 'u32[]', space=smem, size = 0x4, offset = 0x4, fixed_abs, tag = 'smem constant byte address 0x4 - core index']
  #allocation1 [shape = 'u32[144,128]{1,0:T(1,128)}', space=vmem, size = 0x12000, scoped, tag = 'internal scratch']
  #allocation2 [shape = 'f32[64,128]{1,0:T(8,128)}', space=vmem, size = 0x8000, scoped, tag = 'scratch operand']
  %s0 = inlined_call_operand.vmem [shape: f32[64,128], index: 0, kind: input, shape index: {}]
  %s1 = inlined_call_operand.vmem [shape: f32[128,128], index: 1, kind: input, shape index: {}]
  %s2 = inlined_call_operand.vmem [shape: f32[1,128], index: 2, kind: input, shape index: {}]
  %s3 = inlined_call_operand.hbm [shape: f32[64,128], index: 3, kind: output, shape index: {}]
  %s4 = sld [smem:[#allocation0]]
  $region30: #{causal_self_attention.5} parent=0
    _
  %s6 = ssub.s32 1, %s4
  %s7 = scalar_select 0, %s6, %s4
  $region1: #{causal_self_attention.5} parent=0
    #allocation3 [shape = 'u8[32768]{0}', space=vmem, size = 0x8000, scoped, tag = 'output window, operand 0, single buffered']
    #allocation4 [shape = 's32[1]{0}', space=sflag, size = 0x4, scoped, tag = 'scoped memory for causal_self_attention.5']
    %8 = vsyncpa [#allocation4], 0
    // Predicated region
    $region2: #{causal_self_attention.5} parent=1 // pred_check
      _
    $region3: #{causal_self_attention.5} parent=1 // pred_check_branch
      %10 = sbr.rel (0) target = $region5
    $region4: #{causal_self_attention.5} parent=1 // pred_region
      _
    $region5: #{causal_self_attention.5} parent=1 // pred_fallthru
      _
    // Predicated region
    $region6: #{causal_self_attention.5} parent=1 // pred_check
      _
    $region7: #{causal_self_attention.5} parent=1 // pred_check_branch
      %12 = sbr.rel (0) target = $region9
    $region8: #{causal_self_attention.5} parent=1 // pred_region
      _
    $region9: #{causal_self_attention.5} parent=1 // pred_fallthru
      _
    // Predicated region
    $region10: #{causal_self_attention.5} parent=1 // pred_check
      _
    $region11: #{causal_self_attention.5} parent=1 // pred_check_branch
      %14 = sbr.rel (0) target = $region13
    $region12: #{causal_self_attention.5} parent=1 // pred_region
      _
    $region13: #{causal_self_attention.5} parent=1 // pred_fallthru
      _
    %p15 = scmp.eq.s32.totalorder 0, 0
    // Predicated region
    $region14: #{causal_self_attention.5} parent=1 // pred_check
      %p16 = pneg %p15
    $region15: #{causal_self_attention.5} parent=1 // pred_check_branch
      %18 = sbr.rel (%p16) target = $region17
    $region16: #{causal_self_attention.5} parent=1 // pred_region
      %19 = vst [vmem:[#allocation2] sm:$0xff] 0.0
      %20 = vst [vmem:[#allocation2 + $0x8] sm:$0xff] 0.0
      %21 = vst [vmem:[#allocation2 + $0x10] sm:$0xff] 0.0
      %22 = vst [vmem:[#allocation2 + $0x18] sm:$0xff] 0.0
      %23 = vst [vmem:[#allocation2 + $0x20] sm:$0xff] 0.0
      %24 = vst [vmem:[#allocation2 + $0x28] sm:$0xff] 0.0
      %25 = vst [vmem:[#allocation2 + $0x30] sm:$0xff] 0.0
      %26 = vst [vmem:[#allocation2 + $0x38] sm:$0xff] 0.0
    $region17: #{causal_self_attention.5} parent=1 // pred_fallthru
      _
    %v27 = vld [vmem:[%s0] sm:$0xff]
    %v28 = vld [vmem:[%s0 + $0x8] sm:$0xff]
    %v29 = vld [vmem:[%s0 + $0x10] sm:$0xff]
    %v30 = vld [vmem:[%s0 + $0x18] sm:$0xff]
    %v31 = vld [vmem:[%s0 + $0x20] sm:$0xff]
    %v32 = vld [vmem:[%s0 + $0x28] sm:$0xff]
    %v33 = vld [vmem:[%s0 + $0x30] sm:$0xff]
    %v34 = vld [vmem:[%s0 + $0x38] sm:$0xff]
    %v35 = vld [vmem:[%s1] sm:$0xff]
    %v36 = vld [vmem:[%s1 + $0x8] sm:$0xff]
    %v37 = vld [vmem:[%s1 + $0x10] sm:$0xff]
    %v38 = vld [vmem:[%s1 + $0x18] sm:$0xff]
    %v39 = vld [vmem:[%s1 + $0x20] sm:$0xff]
    %v40 = vld [vmem:[%s1 + $0x28] sm:$0xff]
    %v41 = vld [vmem:[%s1 + $0x30] sm:$0xff]
    %v42 = vld [vmem:[%s1 + $0x38] sm:$0xff]
    %v43 = vld [vmem:[%s1 + $0x40] sm:$0xff]
    %v44 = vld [vmem:[%s1 + $0x48] sm:$0xff]
    %v45 = vld [vmem:[%s1 + $0x50] sm:$0xff]
    %v46 = vld [vmem:[%s1 + $0x58] sm:$0xff]
    %v47 = vld [vmem:[%s1 + $0x60] sm:$0xff]
    %v48 = vld [vmem:[%s1 + $0x68] sm:$0xff]
    %v49 = vld [vmem:[%s1 + $0x70] sm:$0xff]
    %v50 = vld [vmem:[%s1 + $0x78] sm:$0xff]
    %v51 = vld [vmem:[#allocation2] sm:$0xff]
    %v52 = vld [vmem:[#allocation2 + $0x8] sm:$0xff]
    %v53 = vld [vmem:[#allocation2 + $0x10] sm:$0xff]
    %v54 = vld [vmem:[#allocation2 + $0x18] sm:$0xff]
    %v55 = vld [vmem:[#allocation2 + $0x20] sm:$0xff]
    %v56 = vld [vmem:[#allocation2 + $0x28] sm:$0xff]
    %v57 = vld [vmem:[#allocation2 + $0x30] sm:$0xff]
    %v58 = vld [vmem:[#allocation2 + $0x38] sm:$0xff]
    %59 = vmatprep.subr.mxu0 0.0
    %60 = vmatpush1.msra.mxu0 %v35
    %61 = vmatprep.subr.mxu0 0.0
    %62 = vmatpush1.msra.mxu0 %v36
    %63 = vmatprep.subr.mxu0 0.0
    %64 = vmatpush1.msra.mxu0 %v37
    %65 = vmatprep.subr.mxu0 0.0
    %66 = vmatpush1.msra.mxu0 %v38
    %67 = vmatprep.subr.mxu0 0.0
    %68 = vmatpush1.msra.mxu0 %v39
    %69 = vmatprep.subr.mxu0 0.0
    %70 = vmatpush1.msra.mxu0 %v40
    %71 = vmatprep.subr.mxu0 0.0
    %72 = vmatpush1.msra.mxu0 %v41
    %73 = vmatprep.subr.mxu0 0.0
    %74 = vmatpush1.msra.mxu0 %v42
    %75 = vmatprep.subr.mxu0 0.0
    %76 = vmatpush1.msra.mxu0 %v43
    %77 = vmatprep.subr.mxu0 0.0
    %78 = vmatpush1.msra.mxu0 %v44
    %79 = vmatprep.subr.mxu0 0.0
    %80 = vmatpush1.msra.mxu0 %v45
    %81 = vmatprep.subr.mxu0 0.0
    %82 = vmatpush1.msra.mxu0 %v46
    %83 = vmatprep.subr.mxu0 0.0
    %84 = vmatpush1.msra.mxu0 %v47
    %85 = vmatprep.subr.mxu0 0.0
    %86 = vmatpush1.msra.mxu0 %v48
    %87 = vmatprep.subr.mxu0 0.0
    %88 = vmatpush1.msra.mxu0 %v49
    %89 = vmatprep.subr.mxu0 0.0
    %90 = vmatpush1.msra.mxu0 %v50
    %91 = vmatprep.subr.mxu0 0.0
    %92 = vmatpush1.msra.mxu0 0.0
    %93 = vmatprep.subr.mxu0 0.0
    %94 = vmatpush1.msra.mxu0 0.0
    %95 = vmatprep.subr.mxu0 0.0
    %96 = vmatpush1.msra.mxu0 0.0
    %97 = vmatprep.subr.mxu0 0.0
    %98 = vmatpush1.msra.mxu0 0.0
    %99 = vmatprep.subr.mxu0 0.0
    %100 = vmatpush1.msra.mxu0 0.0
    %101 = vmatprep.subr.mxu0 0.0
    %102 = vmatpush1.msra.mxu0 0.0
    %103 = vmatprep.subr.mxu0 0.0
    %104 = vmatpush1.msra.mxu0 0.0
    %105 = vmatprep.subr.mxu0 0.0
    %106 = vmatpush1.msra.mxu0 0.0
    %107 = vmatprep.subr.mxu0 0.0
    %108 = vmatpush1.msra.mxu0 0.0
    %109 = vmatprep.subr.mxu0 0.0
    %110 = vmatpush1.msra.mxu0 0.0
    %111 = vmatprep.subr.mxu0 0.0
    %112 = vmatpush1.msra.mxu0 0.0
    %113 = vmatprep.subr.mxu0 0.0
    %114 = vmatpush1.msra.mxu0 0.0
    %115 = vmatprep.subr.mxu0 0.0
    %116 = vmatpush1.msra.mxu0 0.0
    %117 = vmatprep.subr.mxu0 0.0
    %118 = vmatpush1.msra.mxu0 0.0
    %119 = vmatprep.subr.mxu0 0.0
    %120 = vmatpush1.msra.mxu0 0.0
    %121 = vmatprep.subr.mxu0 0.0
    %122 = vmatpush1.msra.mxu0 0.0
    %123 = vmatprep.mubr.f32.mxu0 0.0
    %124 = vmatmul.mubr.f32.gmra.mrb[0].mxu0 %v27
    %v125 = vpop.f32.mrb[0].mxu0
    %v126 = vadd.f32 0.0, %v125
    %v127 = vpop.f32.mrb[0].mxu0
    %128 = vmatprep.mubr.f32.mxu0 0.0
    %129 = vmatmul.mubr.f32.gmra.mrb[0].mxu0 %v28
    %v130 = vpop.f32.mrb[0].mxu0
    %v131 = vadd.f32 0.0, %v130
    %v132 = vpop.f32.mrb[0].mxu0
    %133 = vmatprep.mubr.f32.mxu0 0.0
    %134 = vmatmul.mubr.f32.gmra.mrb[0].mxu0 %v29
    %v135 = vpop.f32.mrb[0].mxu0
    %v136 = vadd.f32 0.0, %v135
    %v137 = vpop.f32.mrb[0].mxu0
    %138 = vmatprep.mubr.f32.mxu0 0.0
    %139 = vmatmul.mubr.f32.gmra.mrb[0].mxu0 %v30
    %v140 = vpop.f32.mrb[0].mxu0
    %v141 = vadd.f32 0.0, %v140
    %v142 = vpop.f32.mrb[0].mxu0
    %143 = vmatprep.mubr.f32.mxu0 0.0
    %144 = vmatmul.mubr.f32.gmra.mrb[0].mxu0 %v31
    %v145 = vpop.f32.mrb[0].mxu0
    %v146 = vadd.f32 0.0, %v145
    %v147 = vpop.f32.mrb[0].mxu0
    %148 = vmatprep.mubr.f32.mxu0 0.0
    %149 = vmatmul.mubr.f32.gmra.mrb[0].mxu0 %v32
    %v150 = vpop.f32.mrb[0].mxu0
    %v151 = vadd.f32 0.0, %v150
    %v152 = vpop.f32.mrb[0].mxu0
    %153 = vmatprep.mubr.f32.mxu0 0.0
    %154 = vmatmul.mubr.f32.gmra.mrb[0].mxu0 %v33
    %v155 = vpop.f32.mrb[0].mxu0
    %v156 = vadd.f32 0.0, %v155
    %v157 = vpop.f32.mrb[0].mxu0
    %158 = vmatprep.mubr.f32.mxu0 0.0
    %159 = vmatmul.mubr.f32.gmra.mrb[0].mxu0 %v34
    %v160 = vpop.f32.mrb[0].mxu0
    %v161 = vadd.f32 0.0, %v160
    %v162 = vpop.f32.mrb[0].mxu0
    %163 = vdwg.mxu0
    %v164 = vadd.f32 %v51, %v126
    %v165 = vadd.f32 %v52, %v131
    %v166 = vadd.f32 %v53, %v136
    %v167 = vadd.f32 %v54, %v141
    %v168 = vadd.f32 %v55, %v146
    %v169 = vadd.f32 %v56, %v151
    %v170 = vadd.f32 %v57, %v156
    %v171 = vadd.f32 %v58, %v161
    %172 = vst [vmem:[#allocation2] sm:$0xff] %v164
    %173 = vst [vmem:[#allocation2 + $0x8] sm:$0xff] %v165
    %174 = vst [vmem:[#allocation2 + $0x10] sm:$0xff] %v166
    %175 = vst [vmem:[#allocation2 + $0x18] sm:$0xff] %v167
    %176 = vst [vmem:[#allocation2 + $0x20] sm:$0xff] %v168
    %177 = vst [vmem:[#allocation2 + $0x28] sm:$0xff] %v169
    %178 = vst [vmem:[#allocation2 + $0x30] sm:$0xff] %v170
    %179 = vst [vmem:[#allocation2 + $0x38] sm:$0xff] %v171
    // Predicated region
    $region18: #{causal_self_attention.5} parent=1 // pred_check
      %p180 = pneg %p15
    $region19: #{causal_self_attention.5} parent=1 // pred_check_branch
      %182 = sbr.rel (%p180) target = $region21
    $region20: #{causal_self_attention.5} parent=1 // pred_region
      %v183 = vld [vmem:[#allocation2] sm:$0xff]
      %v184 = vld [vmem:[#allocation2 + $0x8] sm:$0xff]
      %v185 = vld [vmem:[#allocation2 + $0x10] sm:$0xff]
      %v186 = vld [vmem:[#allocation2 + $0x18] sm:$0xff]
      %v187 = vld [vmem:[#allocation2 + $0x20] sm:$0xff]
      %v188 = vld [vmem:[#allocation2 + $0x28] sm:$0xff]
      %v189 = vld [vmem:[#allocation2 + $0x30] sm:$0xff]
      %v190 = vld [vmem:[#allocation2 + $0x38] sm:$0xff]
      %v191 = vld [vmem:[%s2] sm:$0x1]
      %v193 = vlaneseq
      %v194 = vshrl.u32 %v193, 7
      %v195 = vsub.s32 0, %v194
      %v196 = vrot.slane %v191, %v195
      %v198 = vadd.f32 %v183, %v196
      %v199 = vadd.f32 %v184, %v196
      %v200 = vadd.f32 %v185, %v196
      %v201 = vadd.f32 %v186, %v196
      %v202 = vadd.f32 %v187, %v196
      %v203 = vadd.f32 %v188, %v196
      %v204 = vadd.f32 %v189, %v196
      %v205 = vadd.f32 %v190, %v196
      %206 = vst [vmem:[#allocation3] sm:$0xff] %v198
      %207 = vst [vmem:[#allocation3 + $0x8] sm:$0xff] %v199
      %208 = vst [vmem:[#allocation3 + $0x10] sm:$0xff] %v200
      %209 = vst [vmem:[#allocation3 + $0x18] sm:$0xff] %v201
      %210 = vst [vmem:[#allocation3 + $0x20] sm:$0xff] %v202
      %211 = vst [vmem:[#allocation3 + $0x28] sm:$0xff] %v203
      %212 = vst [vmem:[#allocation3 + $0x30] sm:$0xff] %v204
      %213 = vst [vmem:[#allocation3 + $0x38] sm:$0xff] %v205
    $region21: #{causal_self_attention.5} parent=1 // pred_fallthru
      _
    // Predicated region
    $region22: #{causal_self_attention.5} parent=1 // pred_check
      _
    $region23: #{causal_self_attention.5} parent=1 // pred_check_branch
      %215 = sbr.rel (0) target = $region25
    $region24: #{causal_self_attention.5} parent=1 // pred_region
      %s217 = ssub.s32 1024, 1024
      %218 = vsyncadd [#allocation4], %s217
      %s219 = sshll.u32 [#allocation3], 4
      %s220 = int_to_ptr.vmem [resolvable:$true] %s219
      %225 = dma.vmem_to_hbm [thread:$0]  %s220, 1024, %s3, [#allocation4], 128, 128, 8
    $region25: #{causal_self_attention.5} parent=1 // pred_fallthru
      _
    // Predicated region
    $region26: #{causal_self_attention.5} parent=1 // pred_check
      _
    $region27: #{causal_self_attention.5} parent=1 // pred_check_branch
      %227 = sbr.rel (0) target = $region29
    $region28: #{causal_self_attention.5} parent=1 // pred_region
      %228 = dma.done [#allocation4], 1024
    $region29: #{causal_self_attention.5} parent=1 // pred_fallthru
      _
    %229 = vsyncpa [#allocation4], 1

// kernel: causal_self_attention.3
$region0: #{causal_self_attention.3}
  #allocation0 [shape = 'u32[]', space=smem, size = 0x4, offset = 0x4, fixed_abs, tag = 'smem constant byte address 0x4 - core index']
  #allocation1 [shape = 'u32[144,128]{1,0:T(1,128)}', space=vmem, size = 0x12000, scoped, tag = 'internal scratch']
  #allocation2 [shape = 'f32[64,384]{1,0:T(8,128)}', space=vmem, size = 0x18000, scoped, tag = 'scratch operand']
  %s0 = inlined_call_operand.hbm [shape: f32[64,128], index: 0, kind: input, shape index: {}]
  %s1 = inlined_call_operand.hbm [shape: f32[128,384], index: 1, kind: input, shape index: {}]
  %s2 = inlined_call_operand.vmem [shape: f32[1,384], index: 2, kind: input, shape index: {}]
  %s3 = inlined_call_operand.vmem [shape: f32[64,384], index: 3, kind: output, shape index: {}]
  %s4 = sld [smem:[#allocation0]]
  $region38: #{causal_self_attention.3} parent=0
    _
  %s6 = ssub.s32 1, %s4
  %s7 = scalar_select 0, %s6, %s4
  $region1: #{causal_self_attention.3} parent=0
    #allocation3 [shape = 'u8[32768]{0}', space=vmem, size = 0x8000, scoped, tag = 'input window, operand 0, single buffered']
    #allocation4 [shape = 's32[1]{0}', space=sflag, size = 0x4, scoped, tag = 'scoped memory for causal_self_attention.3']
    #allocation5 [shape = 'u8[196608]{0}', space=vmem, size = 0x30000, scoped, tag = 'input window, operand 1, single buffered']
    #allocation6 [shape = 's32[1]{0}', space=sflag, size = 0x4, scoped, tag = 'scoped memory for causal_self_attention.3']
    %8 = vsyncpa [#allocation4], 0
    %9 = vsyncpa [#allocation6], 0
    // Predicated region
    $region2: #{causal_self_attention.3} parent=1 // pred_check
      _
    $region3: #{causal_self_attention.3} parent=1 // pred_check_branch
      %11 = sbr.rel (0) target = $region5
    $region4: #{causal_self_attention.3} parent=1 // pred_region
      %s13 = ssub.s32 1024, 1024
      %14 = vsyncadd [#allocation4], %s13
      %s15 = sshll.u32 [#allocation3], 4
      %s16 = int_to_ptr.vmem [resolvable:$true] %s15
      %21 = dma.hbm_to_vmem [thread:$0]  %s0, 1024, %s16, [#allocation4], 128, 128, 8
    $region5: #{causal_self_attention.3} parent=1 // pred_fallthru
      _
    // Predicated region
    $region6: #{causal_self_attention.3} parent=1 // pred_check
      _
    $region7: #{causal_self_attention.3} parent=1 // pred_check_branch
      %23 = sbr.rel (0) target = $region9
    $region8: #{causal_self_attention.3} parent=1 // pred_region
      %s25 = ssub.s32 6144, 6144
      %26 = vsyncadd [#allocation6], %s25
      %s27 = sshll.u32 [#allocation5], 4
      %s28 = int_to_ptr.vmem [resolvable:$true] %s27
      %33 = dma.hbm_to_vmem [thread:$0]  %s1, 6144, %s28, [#allocation6], 384, 384, 24
    $region9: #{causal_self_attention.3} parent=1 // pred_fallthru
      _
    // Predicated region
    $region10: #{causal_self_attention.3} parent=1 // pred_check
      _
    $region11: #{causal_self_attention.3} parent=1 // pred_check_branch
      %35 = sbr.rel (0) target = $region13
    $region12: #{causal_self_attention.3} parent=1 // pred_region
      _
    $region13: #{causal_self_attention.3} parent=1 // pred_fallthru
      _
    // Predicated region
    $region14: #{causal_self_attention.3} parent=1 // pred_check
      _
    $region15: #{causal_self_attention.3} parent=1 // pred_check_branch
      %37 = sbr.rel (0) target = $region17
    $region16: #{causal_self_attention.3} parent=1 // pred_region
      %38 = dma.done [#allocation4], 1024
    $region17: #{causal_self_attention.3} parent=1 // pred_fallthru
      _
    // Predicated region
    $region18: #{causal_self_attention.3} parent=1 // pred_check
      _
    $region19: #{causal_self_attention.3} parent=1 // pred_check_branch
      %40 = sbr.rel (0) target = $region21
    $region20: #{causal_self_attention.3} parent=1 // pred_region
      %41 = dma.done [#allocation6], 6144
    $region21: #{causal_self_attention.3} parent=1 // pred_fallthru
      _
    %p42 = scmp.eq.s32.totalorder 0, 0
    // Predicated region
    $region22: #{causal_self_attention.3} parent=1 // pred_check
      %p43 = pneg %p42
    $region23: #{causal_self_attention.3} parent=1 // pred_check_branch
      %45 = sbr.rel (%p43) target = $region25
    $region24: #{causal_self_attention.3} parent=1 // pred_region
      %46 = vst [vmem:[#allocation2] sm:$0xff] 0.0
      %47 = vst [vmem:[#allocation2 + $0x8] sm:$0xff] 0.0
      %48 = vst [vmem:[#allocation2 + $0x10] sm:$0xff] 0.0
      %49 = vst [vmem:[#allocation2 + $0x18] sm:$0xff] 0.0
      %50 = vst [vmem:[#allocation2 + $0x20] sm:$0xff] 0.0
      %51 = vst [vmem:[#allocation2 + $0x28] sm:$0xff] 0.0
      %52 = vst [vmem:[#allocation2 + $0x30] sm:$0xff] 0.0
      %53 = vst [vmem:[#allocation2 + $0x38] sm:$0xff] 0.0
      %54 = vst [vmem:[#allocation2 + $0x40] sm:$0xff] 0.0
      %55 = vst [vmem:[#allocation2 + $0x48] sm:$0xff] 0.0
      %56 = vst [vmem:[#allocation2 + $0x50] sm:$0xff] 0.0
      %57 = vst [vmem:[#allocation2 + $0x58] sm:$0xff] 0.0
      %58 = vst [vmem:[#allocation2 + $0x60] sm:$0xff] 0.0
      %59 = vst [vmem:[#allocation2 + $0x68] sm:$0xff] 0.0
      %60 = vst [vmem:[#allocation2 + $0x70] sm:$0xff] 0.0
      %61 = vst [vmem:[#allocation2 + $0x78] sm:$0xff] 0.0
      %62 = vst [vmem:[#allocation2 + $0x80] sm:$0xff] 0.0
      %63 = vst [vmem:[#allocation2 + $0x88] sm:$0xff] 0.0
      %64 = vst [vmem:[#allocation2 + $0x90] sm:$0xff] 0.0
      %65 = vst [vmem:[#allocation2 + $0x98] sm:$0xff] 0.0
      %66 = vst [vmem:[#allocation2 + $0xa0] sm:$0xff] 0.0
      %67 = vst [vmem:[#allocation2 + $0xa8] sm:$0xff] 0.0
      %68 = vst [vmem:[#allocation2 + $0xb0] sm:$0xff] 0.0
      %69 = vst [vmem:[#allocation2 + $0xb8] sm:$0xff] 0.0
    $region25: #{causal_self_attention.3} parent=1 // pred_fallthru
      _
    %v70 = vld [vmem:[#allocation3] sm:$0xff]
    %v71 = vld [vmem:[#allocation3 + $0x8] sm:$0xff]
    %v72 = vld [vmem:[#allocation3 + $0x10] sm:$0xff]
    %v73 = vld [vmem:[#allocation3 + $0x18] sm:$0xff]
    %v74 = vld [vmem:[#allocation3 + $0x20] sm:$0xff]
    %v75 = vld [vmem:[#allocation3 + $0x28] sm:$0xff]
    %v76 = vld [vmem:[#allocation3 + $0x30] sm:$0xff]
    %v77 = vld [vmem:[#allocation3 + $0x38] sm:$0xff]
    %v78 = vld [vmem:[#allocation5] sm:$0xff]
    %v79 = vld [vmem:[#allocation5 + $0x8] sm:$0xff]
    %v80 = vld [vmem:[#allocation5 + $0x10] sm:$0xff]
    %v81 = vld [vmem:[#allocation5 + $0x18] sm:$0xff]
    %v82 = vld [vmem:[#allocation5 + $0x20] sm:$0xff]
    %v83 = vld [vmem:[#allocation5 + $0x28] sm:$0xff]
    %v84 = vld [vmem:[#allocation5 + $0x30] sm:$0xff]
    %v85 = vld [vmem:[#allocation5 + $0x38] sm:$0xff]
    %v86 = vld [vmem:[#allocation5 + $0x40] sm:$0xff]
    %v87 = vld [vmem:[#allocation5 + $0x48] sm:$0xff]
    %v88 = vld [vmem:[#allocation5 + $0x50] sm:$0xff]
    %v89 = vld [vmem:[#allocation5 + $0x58] sm:$0xff]
    %v90 = vld [vmem:[#allocation5 + $0x60] sm:$0xff]
    %v91 = vld [vmem:[#allocation5 + $0x68] sm:$0xff]
    %v92 = vld [vmem:[#allocation5 + $0x70] sm:$0xff]
    %v93 = vld [vmem:[#allocation5 + $0x78] sm:$0xff]
    %v94 = vld [vmem:[#allocation5 + $0x80] sm:$0xff]
    %v95 = vld [vmem:[#allocation5 + $0x88] sm:$0xff]
    %v96 = vld [vmem:[#allocation5 + $0x90] sm:$0xff]
    %v97 = vld [vmem:[#allocation5 + $0x98] sm:$0xff]
    %v98 = vld [vmem:[#allocation5 + $0xa0] sm:$0xff]
    %v99 = vld [vmem:[#allocation5 + $0xa8] sm:$0xff]
    %v100 = vld [vmem:[#allocation5 + $0xb0] sm:$0xff]
    %v101 = vld [vmem:[#allocation5 + $0xb8] sm:$0xff]
    %v102 = vld [vmem:[#allocation5 + $0xc0] sm:$0xff]
    %v103 = vld [vmem:[#allocation5 + $0xc8] sm:$0xff]
    %v104 = vld [vmem:[#allocation5 + $0xd0] sm:$0xff]
    %v105 = vld [vmem:[#allocation5 + $0xd8] sm:$0xff]
    %v106 = vld [vmem:[#allocation5 + $0xe0] sm:$0xff]
    %v107 = vld [vmem:[#allocation5 + $0xe8] sm:$0xff]
    %v108 = vld [vmem:[#allocation5 + $0xf0] sm:$0xff]
    %v109 = vld [vmem:[#allocation5 + $0xf8] sm:$0xff]
    %v110 = vld [vmem:[#allocation5 + $0x100] sm:$0xff]
    %v111 = vld [vmem:[#allocation5 + $0x108] sm:$0xff]
    %v112 = vld [vmem:[#allocation5 + $0x110] sm:$0xff]
    %v113 = vld [vmem:[#allocation5 + $0x118] sm:$0xff]
    %v114 = vld [vmem:[#allocation5 + $0x120] sm:$0xff]
    %v115 = vld [vmem:[#allocation5 + $0x128] sm:$0xff]
    %v116 = vld [vmem:[#allocation5 + $0x130] sm:$0xff]
    %v117 = vld [vmem:[#allocation5 + $0x138] sm:$0xff]
    %v118 = vld [vmem:[#allocation5 + $0x140] sm:$0xff]
    %v119 = vld [vmem:[#allocation5 + $0x148] sm:$0xff]
    %v120 = vld [vmem:[#allocation5 + $0x150] sm:$0xff]
    %v121 = vld [vmem:[#allocation5 + $0x158] sm:$0xff]
    %v122 = vld [vmem:[#allocation5 + $0x160] sm:$0xff]
    %v123 = vld [vmem:[#allocation5 + $0x168] sm:$0xff]
    %v124 = vld [vmem:[#allocation5 + $0x170] sm:$0xff]
    %v125 = vld [vmem:[#allocation5 + $0x178] sm:$0xff]
    %v126 = vld [vmem:[#allocation2] sm:$0xff]
    %v127 = vld [vmem:[#allocation2 + $0x8] sm:$0xff]
    %v128 = vld [vmem:[#allocation2 + $0x10] sm:$0xff]
    %v129 = vld [vmem:[#allocation2 + $0x18] sm:$0xff]
    %v130 = vld [vmem:[#allocation2 + $0x20] sm:$0xff]
    %v131 = vld [vmem:[#allocation2 + $0x28] sm:$0xff]
    %v132 = vld [vmem:[#allocation2 + $0x30] sm:$0xff]
    %v133 = vld [vmem:[#allocation2 + $0x38] sm:$0xff]
    %v134 = vld [vmem:[#allocation2 + $0x40] sm:$0xff]
    %v135 = vld [vmem:[#allocation2 + $0x48] sm:$0xff]
    %v136 = vld [vmem:[#allocation2 + $0x50] sm:$0xff]
    %v137 = vld [vmem:[#allocation2 + $0x58] sm:$0xff]
    %v138 = vld [vmem:[#allocation2 + $0x60] sm:$0xff]
    %v139 = vld [vmem:[#allocation2 + $0x68] sm:$0xff]
    %v140 = vld [vmem:[#allocation2 + $0x70] sm:$0xff]
    %v141 = vld [vmem:[#allocation2 + $0x78] sm:$0xff]
    %v142 = vld [vmem:[#allocation2 + $0x80] sm:$0xff]
    %v143 = vld [vmem:[#allocation2 + $0x88] sm:$0xff]
    %v144 = vld [vmem:[#allocation2 + $0x90] sm:$0xff]
    %v145 = vld [vmem:[#allocation2 + $0x98] sm:$0xff]
    %v146 = vld [vmem:[#allocation2 + $0xa0] sm:$0xff]
    %v147 = vld [vmem:[#allocation2 + $0xa8] sm:$0xff]
    %v148 = vld [vmem:[#allocation2 + $0xb0] sm:$0xff]
    %v149 = vld [vmem:[#allocation2 + $0xb8] sm:$0xff]
    %150 = vmatprep.subr.mxu0 %v79
    %151 = vmatpush1.msra.mxu0 %v78
    %152 = vmatprep.subr.mxu0 %v82
    %153 = vmatpush1.msra.mxu0 %v81
    %154 = vmatprep.subr.mxu0 %v85
    %155 = vmatpush1.msra.mxu0 %v84
    %156 = vmatprep.subr.mxu0 %v88
    %157 = vmatpush1.msra.mxu0 %v87
    %158 = vmatprep.subr.mxu0 %v91
    %159 = vmatpush1.msra.mxu0 %v90
    %160 = vmatprep.subr.mxu0 %v94
    %161 = vmatpush1.msra.mxu0 %v93
    %162 = vmatprep.subr.mxu0 %v97
    %163 = vmatpush1.msra.mxu0 %v96
    %164 = vmatprep.subr.mxu0 %v100
    %165 = vmatpush1.msra.mxu0 %v99
    %166 = vmatprep.subr.mxu0 %v103
    %167 = vmatpush1.msra.mxu0 %v102
    %168 = vmatprep.subr.mxu0 %v106
    %169 = vmatpush1.msra.mxu0 %v105
    %170 = vmatprep.subr.mxu0 %v109
    %171 = vmatpush1.msra.mxu0 %v108
    %172 = vmatprep.subr.mxu0 %v112
    %173 = vmatpush1.msra.mxu0 %v111
    %174 = vmatprep.subr.mxu0 %v115
    %175 = vmatpush1.msra.mxu0 %v114
    %176 = vmatprep.subr.mxu0 %v118
    %177 = vmatpush1.msra.mxu0 %v117
    %178 = vmatprep.subr.mxu0 %v121
    %179 = vmatpush1.msra.mxu0 %v120
    %180 = vmatprep.subr.mxu0 %v124
    %181 = vmatpush1.msra.mxu0 %v123
    %182 = vmatprep.subr.mxu0 0.0
    %183 = vmatpush1.msra.mxu0 0.0
    %184 = vmatprep.subr.mxu0 0.0
    %185 = vmatpush1.msra.mxu0 0.0
    %186 = vmatprep.subr.mxu0 0.0
    %187 = vmatpush1.msra.mxu0 0.0
    %188 = vmatprep.subr.mxu0 0.0
    %189 = vmatpush1.msra.mxu0 0.0
    %190 = vmatprep.subr.mxu0 0.0
    %191 = vmatpush1.msra.mxu0 0.0
    %192 = vmatprep.subr.mxu0 0.0
    %193 = vmatpush1.msra.mxu0 0.0
    %194 = vmatprep.subr.mxu0 0.0
    %195 = vmatpush1.msra.mxu0 0.0
    %196 = vmatprep.subr.mxu0 0.0
    %197 = vmatpush1.msra.mxu0 0.0
    %198 = vmatprep.subr.mxu0 0.0
    %199 = vmatpush1.msra.mxu0 0.0
    %200 = vmatprep.subr.mxu0 0.0
    %201 = vmatpush1.msra.mxu0 0.0
    %202 = vmatprep.subr.mxu0 0.0
    %203 = vmatpush1.msra.mxu0 0.0
    %204 = vmatprep.subr.mxu0 0.0
    %205 = vmatpush1.msra.mxu0 0.0
    %206 = vmatprep.subr.mxu0 0.0
    %207 = vmatpush1.msra.mxu0 0.0
    %208 = vmatprep.subr.mxu0 0.0
    %209 = vmatpush1.msra.mxu0 0.0
    %210 = vmatprep.subr.mxu0 0.0
    %211 = vmatpush1.msra.mxu0 0.0
    %212 = vmatprep.subr.mxu0 0.0
    %213 = vmatpush1.msra.mxu0 0.0
    %214 = vmatprep.mubr.f32.mxu0 0.0
    %215 = vmatmul.mubr.f32.gmra.mrb[0].mxu0 %v70
    %v216 = vpop.f32.mrb[0].mxu0
    %v217 = vadd.f32 0.0, %v216
    %v218 = vpop.f32.mrb[0].mxu0
    %v219 = vadd.f32 0.0, %v218
    %220 = vmatprep.mubr.f32.mxu0 0.0
    %221 = vmatmul.mubr.f32.gmra.mrb[0].mxu0 %v71
    %v222 = vpop.f32.mrb[0].mxu0
    %v223 = vadd.f32 0.0, %v222
    %v224 = vpop.f32.mrb[0].mxu0
    %v225 = vadd.f32 0.0, %v224
    %226 = vmatprep.mubr.f32.mxu0 0.0
    %227 = vmatmul.mubr.f32.gmra.mrb[0].mxu0 %v72
    %v228 = vpop.f32.mrb[0].mxu0
    %v229 = vadd.f32 0.0, %v228
    %v230 = vpop.f32.mrb[0].mxu0
    %v231 = vadd.f32 0.0, %v230
    %232 = vmatprep.mubr.f32.mxu0 0.0
    %233 = vmatmul.mubr.f32.gmra.mrb[0].mxu0 %v73
    %v234 = vpop.f32.mrb[0].mxu0
    %v235 = vadd.f32 0.0, %v234
    %v236 = vpop.f32.mrb[0].mxu0
    %v237 = vadd.f32 0.0, %v236
    %238 = vmatprep.mubr.f32.mxu0 0.0
    %239 = vmatmul.mubr.f32.gmra.mrb[0].mxu0 %v74
    %v240 = vpop.f32.mrb[0].mxu0
    %v241 = vadd.f32 0.0, %v240
    %v242 = vpop.f32.mrb[0].mxu0
    %v243 = vadd.f32 0.0, %v242
    %244 = vmatprep.mubr.f32.mxu0 0.0
    %245 = vmatmul.mubr.f32.gmra.mrb[0].mxu0 %v75
    %v246 = vpop.f32.mrb[0].mxu0
    %v247 = vadd.f32 0.0, %v246
    %v248 = vpop.f32.mrb[0].mxu0
    %v249 = vadd.f32 0.0, %v248
    %250 = vmatprep.mubr.f32.mxu0 0.0
    %251 = vmatmul.mubr.f32.gmra.mrb[0].mxu0 %v76
    %v252 = vpop.f32.mrb[0].mxu0
    %v253 = vadd.f32 0.0, %v252
    %v254 = vpop.f32.mrb[0].mxu0
    %v255 = vadd.f32 0.0, %v254
    %256 = vmatprep.mubr.f32.mxu0 0.0
    %257 = vmatmul.mubr.f32.gmra.mrb[0].mxu0 %v77
    %v258 = vpop.f32.mrb[0].mxu0
    %v259 = vadd.f32 0.0, %v258
    %v260 = vpop.f32.mrb[0].mxu0
    %v261 = vadd.f32 0.0, %v260
    %262 = vdwg.mxu0
    %263 = vmatprep.subr.mxu0 0.0
    %264 = vmatpush1.msra.mxu0 %v80
    %265 = vmatprep.subr.mxu0 0.0
    %266 = vmatpush1.msra.mxu0 %v83
    %267 = vmatprep.subr.mxu0 0.0
    %268 = vmatpush1.msra.mxu0 %v86
    %269 = vmatprep.subr.mxu0 0.0
    %270 = vmatpush1.msra.mxu0 %v89
    %271 = vmatprep.subr.mxu0 0.0
    %272 = vmatpush1.msra.mxu0 %v92
    %273 = vmatprep.subr.mxu0 0.0
    %274 = vmatpush1.msra.mxu0 %v95
    %275 = vmatprep.subr.mxu0 0.0
    %276 = vmatpush1.msra.mxu0 %v98
    %277 = vmatprep.subr.mxu0 0.0
    %278 = vmatpush1.msra.mxu0 %v101
    %279 = vmatprep.subr.mxu0 0.0
    %280 = vmatpush1.msra.mxu0 %v104
    %281 = vmatprep.subr.mxu0 0.0
    %282 = vmatpush1.msra.mxu0 %v107
    %283 = vmatprep.subr.mxu0 0.0
    %284 = vmatpush1.msra.mxu0 %v110
    %285 = vmatprep.subr.mxu0 0.0
    %286 = vmatpush1.msra.mxu0 %v113
    %287 = vmatprep.subr.mxu0 0.0
    %288 = vmatpush1.msra.mxu0 %v116
    %289 = vmatprep.subr.mxu0 0.0
    %290 = vmatpush1.msra.mxu0 %v119
    %291 = vmatprep.subr.mxu0 0.0
    %292 = vmatpush1.msra.mxu0 %v122
    %293 = vmatprep.subr.mxu0 0.0
    %294 = vmatpush1.msra.mxu0 %v125
    %295 = vmatprep.subr.mxu0 0.0
    %296 = vmatpush1.msra.mxu0 0.0
    %297 = vmatprep.subr.mxu0 0.0
    %298 = vmatpush1.msra.mxu0 0.0
    %299 = vmatprep.subr.mxu0 0.0
    %300 = vmatpush1.msra.mxu0 0.0
    %301 = vmatprep.subr.mxu0 0.0
    %302 = vmatpush1.msra.mxu0 0.0
    %303 = vmatprep.subr.mxu0 0.0
    %304 = vmatpush1.msra.mxu0 0.0
    %305 = vmatprep.subr.mxu0 0.0
    %306 = vmatpush1.msra.mxu0 0.0
    %307 = vmatprep.subr.mxu0 0.0
    %308 = vmatpush1.msra.mxu0 0.0
    %309 = vmatprep.subr.mxu0 0.0
    %310 = vmatpush1.msra.mxu0 0.0
    %311 = vmatprep.subr.mxu0 0.0
    %312 = vmatpush1.msra.mxu0 0.0
    %313 = vmatprep.subr.mxu0 0.0
    %314 = vmatpush1.msra.mxu0 0.0
    %315 = vmatprep.subr.mxu0 0.0
    %316 = vmatpush1.msra.mxu0 0.0
    %317 = vmatprep.subr.mxu0 0.0
    %318 = vmatpush1.msra.mxu0 0.0
    %319 = vmatprep.subr.mxu0 0.0
    %320 = vmatpush1.msra.mxu0 0.0
    %321 = vmatprep.subr.mxu0 0.0
    %322 = vmatpush1.msra.mxu0 0.0
    %323 = vmatprep.subr.mxu0 0.0
    %324 = vmatpush1.msra.mxu0 0.0
    %325 = vmatprep.subr.mxu0 0.0
    %326 = vmatpush1.msra.mxu0 0.0
    %327 = vmatprep.mubr.f32.mxu0 0.0
    %328 = vmatmul.mubr.f32.gmra.mrb[0].mxu0 %v70
    %v329 = vpop.f32.mrb[0].mxu0
    %v330 = vadd.f32 0.0, %v329
    %v331 = vpop.f32.mrb[0].mxu0
    %332 = vmatprep.mubr.f32.mxu0 0.0
    %333 = vmatmul.mubr.f32.gmra.mrb[0].mxu0 %v71
    %v334 = vpop.f32.mrb[0].mxu0
    %v335 = vadd.f32 0.0, %v334
    %v336 = vpop.f32.mrb[0].mxu0
    %337 = vmatprep.mubr.f32.mxu0 0.0
    %338 = vmatmul.mubr.f32.gmra.mrb[0].mxu0 %v72
    %v339 = vpop.f32.mrb[0].mxu0
    %v340 = vadd.f32 0.0, %v339
    %v341 = vpop.f32.mrb[0].mxu0
    %342 = vmatprep.mubr.f32.mxu0 0.0
    %343 = vmatmul.mubr.f32.gmra.mrb[0].mxu0 %v73
    %v344 = vpop.f32.mrb[0].mxu0
    %v345 = vadd.f32 0.0, %v344
    %v346 = vpop.f32.mrb[0].mxu0
    %347 = vmatprep.mubr.f32.mxu0 0.0
    %348 = vmatmul.mubr.f32.gmra.mrb[0].mxu0 %v74
    %v349 = vpop.f32.mrb[0].mxu0
    %v350 = vadd.f32 0.0, %v349
    %v351 = vpop.f32.mrb[0].mxu0
    %352 = vmatprep.mubr.f32.mxu0 0.0
    %353 = vmatmul.mubr.f32.gmra.mrb[0].mxu0 %v75
    %v354 = vpop.f32.mrb[0].mxu0
    %v355 = vadd.f32 0.0, %v354
    %v356 = vpop.f32.mrb[0].mxu0
    %357 = vmatprep.mubr.f32.mxu0 0.0
    %358 = vmatmul.mubr.f32.gmra.mrb[0].mxu0 %v76
    %v359 = vpop.f32.mrb[0].mxu0
    %v360 = vadd.f32 0.0, %v359
    %v361 = vpop.f32.mrb[0].mxu0
    %362 = vmatprep.mubr.f32.mxu0 0.0
    %363 = vmatmul.mubr.f32.gmra.mrb[0].mxu0 %v77
    %v364 = vpop.f32.mrb[0].mxu0
    %v365 = vadd.f32 0.0, %v364
    %v366 = vpop.f32.mrb[0].mxu0
    %367 = vdwg.mxu0
    %v368 = vadd.f32 %v126, %v217
    %v369 = vadd.f32 %v127, %v219
    %v370 = vadd.f32 %v128, %v330
    %v371 = vadd.f32 %v129, %v223
    %v372 = vadd.f32 %v130, %v225
    %v373 = vadd.f32 %v131, %v335
    %v374 = vadd.f32 %v132, %v229
    %v375 = vadd.f32 %v133, %v231
    %v376 = vadd.f32 %v134, %v340
    %v377 = vadd.f32 %v135, %v235
    %v378 = vadd.f32 %v136, %v237
    %v379 = vadd.f32 %v137, %v345
    %v380 = vadd.f32 %v138, %v241
    %v381 = vadd.f32 %v139, %v243
    %v382 = vadd.f32 %v140, %v350
    %v383 = vadd.f32 %v141, %v247
    %v384 = vadd.f32 %v142, %v249
    %v385 = vadd.f32 %v143, %v355
    %v386 = vadd.f32 %v144, %v253
    %v387 = vadd.f32 %v145, %v255
    %v388 = vadd.f32 %v146, %v360
    %v389 = vadd.f32 %v147, %v259
    %v390 = vadd.f32 %v148, %v261
    %v391 = vadd.f32 %v149, %v365
    %392 = vst [vmem:[#allocation2] sm:$0xff] %v368
    %393 = vst [vmem:[#allocation2 + $0x8] sm:$0xff] %v369
    %394 = vst [vmem:[#allocation2 + $0x10] sm:$0xff] %v370
    %395 = vst [vmem:[#allocation2 + $0x18] sm:$0xff] %v371
    %396 = vst [vmem:[#allocation2 + $0x20] sm:$0xff] %v372
    %397 = vst [vmem:[#allocation2 + $0x28] sm:$0xff] %v373
    %398 = vst [vmem:[#allocation2 + $0x30] sm:$0xff] %v374
    %399 = vst [vmem:[#allocation2 + $0x38] sm:$0xff] %v375
    %400 = vst [vmem:[#allocation2 + $0x40] sm:$0xff] %v376
    %401 = vst [vmem:[#allocation2 + $0x48] sm:$0xff] %v377
    %402 = vst [vmem:[#allocation2 + $0x50] sm:$0xff] %v378
    %403 = vst [vmem:[#allocation2 + $0x58] sm:$0xff] %v379
    %404 = vst [vmem:[#allocation2 + $0x60] sm:$0xff] %v380
    %405 = vst [vmem:[#allocation2 + $0x68] sm:$0xff] %v381
    %406 = vst [vmem:[#allocation2 + $0x70] sm:$0xff] %v382
    %407 = vst [vmem:[#allocation2 + $0x78] sm:$0xff] %v383
    %408 = vst [vmem:[#allocation2 + $0x80] sm:$0xff] %v384
    %409 = vst [vmem:[#allocation2 + $0x88] sm:$0xff] %v385
    %410 = vst [vmem:[#allocation2 + $0x90] sm:$0xff] %v386
    %411 = vst [vmem:[#allocation2 + $0x98] sm:$0xff] %v387
    %412 = vst [vmem:[#allocation2 + $0xa0] sm:$0xff] %v388
    %413 = vst [vmem:[#allocation2 + $0xa8] sm:$0xff] %v389
    %414 = vst [vmem:[#allocation2 + $0xb0] sm:$0xff] %v390
    %415 = vst [vmem:[#allocation2 + $0xb8] sm:$0xff] %v391
    // Predicated region
    $region26: #{causal_self_attention.3} parent=1 // pred_check
      %p416 = pneg %p42
    $region27: #{causal_self_attention.3} parent=1 // pred_check_branch
      %418 = sbr.rel (%p416) target = $region29
    $region28: #{causal_self_attention.3} parent=1 // pred_region
      %v419 = vld [vmem:[#allocation2] sm:$0xff]
      %v420 = vld [vmem:[#allocation2 + $0x8] sm:$0xff]
      %v421 = vld [vmem:[#allocation2 + $0x10] sm:$0xff]
      %v422 = vld [vmem:[#allocation2 + $0x18] sm:$0xff]
      %v423 = vld [vmem:[#allocation2 + $0x20] sm:$0xff]
      %v424 = vld [vmem:[#allocation2 + $0x28] sm:$0xff]
      %v425 = vld [vmem:[#allocation2 + $0x30] sm:$0xff]
      %v426 = vld [vmem:[#allocation2 + $0x38] sm:$0xff]
      %v427 = vld [vmem:[#allocation2 + $0x40] sm:$0xff]
      %v428 = vld [vmem:[#allocation2 + $0x48] sm:$0xff]
      %v429 = vld [vmem:[#allocation2 + $0x50] sm:$0xff]
      %v430 = vld [vmem:[#allocation2 + $0x58] sm:$0xff]
      %v431 = vld [vmem:[#allocation2 + $0x60] sm:$0xff]
      %v432 = vld [vmem:[#allocation2 + $0x68] sm:$0xff]
      %v433 = vld [vmem:[#allocation2 + $0x70] sm:$0xff]
      %v434 = vld [vmem:[#allocation2 + $0x78] sm:$0xff]
      %v435 = vld [vmem:[#allocation2 + $0x80] sm:$0xff]
      %v436 = vld [vmem:[#allocation2 + $0x88] sm:$0xff]
      %v437 = vld [vmem:[#allocation2 + $0x90] sm:$0xff]
      %v438 = vld [vmem:[#allocation2 + $0x98] sm:$0xff]
      %v439 = vld [vmem:[#allocation2 + $0xa0] sm:$0xff]
      %v440 = vld [vmem:[#allocation2 + $0xa8] sm:$0xff]
      %v441 = vld [vmem:[#allocation2 + $0xb0] sm:$0xff]
      %v442 = vld [vmem:[#allocation2 + $0xb8] sm:$0xff]
      %v443 = vld [vmem:[%s2] sm:$0x7]
      %v445 = vlaneseq
      %v446 = vshrl.u32 %v445, 7
      %v447 = vsub.s32 0, %v446
      %v448 = vrot.slane %v443, %v447
      %v449 = vlaneseq
      %v450 = vshrl.u32 %v449, 7
      %v451 = vsub.s32 1, %v450
      %v452 = vrot.slane %v443, %v451
      %v453 = vlaneseq
      %v454 = vshrl.u32 %v453, 7
      %v455 = vsub.s32 2, %v454
      %v456 = vrot.slane %v443, %v455
      %v460 = vadd.f32 %v419, %v448
      %v461 = vadd.f32 %v420, %v452
      %v462 = vadd.f32 %v421, %v456
      %v463 = vadd.f32 %v422, %v448
      %v464 = vadd.f32 %v423, %v452
      %v465 = vadd.f32 %v424, %v456
      %v466 = vadd.f32 %v425, %v448
      %v467 = vadd.f32 %v426, %v452
      %v468 = vadd.f32 %v427, %v456
      %v469 = vadd.f32 %v428, %v448
      %v470 = vadd.f32 %v429, %v452
      %v471 = vadd.f32 %v430, %v456
      %v472 = vadd.f32 %v431, %v448
      %v473 = vadd.f32 %v432, %v452
      %v474 = vadd.f32 %v433, %v456
      %v475 = vadd.f32 %v434, %v448
      %v476 = vadd.f32 %v435, %v452
      %v477 = vadd.f32 %v436, %v456
      %v478 = vadd.f32 %v437, %v448
      %v479 = vadd.f32 %v438, %v452
      %v480 = vadd.f32 %v439, %v456
      %v481 = vadd.f32 %v440, %v448
      %v482 = vadd.f32 %v441, %v452
      %v483 = vadd.f32 %v442, %v456
      %484 = vst [vmem:[%s3] sm:$0xff] %v460
      %485 = vst [vmem:[%s3 + $0x8] sm:$0xff] %v461
      %486 = vst [vmem:[%s3 + $0x10] sm:$0xff] %v462
      %487 = vst [vmem:[%s3 + $0x18] sm:$0xff] %v463
      %488 = vst [vmem:[%s3 + $0x20] sm:$0xff] %v464
      %489 = vst [vmem:[%s3 + $0x28] sm:$0xff] %v465
      %490 = vst [vmem:[%s3 + $0x30] sm:$0xff] %v466
      %491 = vst [vmem:[%s3 + $0x38] sm:$0xff] %v467
      %492 = vst [vmem:[%s3 + $0x40] sm:$0xff] %v468
      %493 = vst [vmem:[%s3 + $0x48] sm:$0xff] %v469
      %494 = vst [vmem:[%s3 + $0x50] sm:$0xff] %v470
      %495 = vst [vmem:[%s3 + $0x58] sm:$0xff] %v471
      %496 = vst [vmem:[%s3 + $0x60] sm:$0xff] %v472
      %497 = vst [vmem:[%s3 + $0x68] sm:$0xff] %v473
      %498 = vst [vmem:[%s3 + $0x70] sm:$0xff] %v474
      %499 = vst [vmem:[%s3 + $0x78] sm:$0xff] %v475
      %500 = vst [vmem:[%s3 + $0x80] sm:$0xff] %v476
      %501 = vst [vmem:[%s3 + $0x88] sm:$0xff] %v477
      %502 = vst [vmem:[%s3 + $0x90] sm:$0xff] %v478
      %503 = vst [vmem:[%s3 + $0x98] sm:$0xff] %v479
      %504 = vst [vmem:[%s3 + $0xa0] sm:$0xff] %v480
      %505 = vst [vmem:[%s3 + $0xa8] sm:$0xff] %v481
      %506 = vst [vmem:[%s3 + $0xb0] sm:$0xff] %v482
      %507 = vst [vmem:[%s3 + $0xb8] sm:$0xff] %v483
    $region29: #{causal_self_attention.3} parent=1 // pred_fallthru
      _
    // Predicated region
    $region30: #{causal_self_attention.3} parent=1 // pred_check
      _
    $region31: #{causal_self_attention.3} parent=1 // pred_check_branch
      %509 = sbr.rel (0) target = $region33
    $region32: #{causal_self_attention.3} parent=1 // pred_region
      _
    $region33: #{causal_self_attention.3} parent=1 // pred_fallthru
      _
    // Predicated region
    $region34: #{causal_self_attention.3} parent=1 // pred_check
      _
    $region35: #{causal_self_attention.3} parent=1 // pred_check_branch
      %511 = sbr.rel (0) target = $region37
    $region36: #{causal_self_attention.3} parent=1 // pred_region
      _
    $region37: #{causal_self_attention.3} parent=1 // pred_fallthru
      _
    %512 = vsyncpa [#allocation4], 1
    %513 = vsyncpa [#allocation6], 1

// kernel: causal_self_attention.4
$region0: #{causal_self_attention.4}
  #allocation0 [shape = 'u32[]', space=smem, size = 0x4, offset = 0x4, fixed_abs, tag = 'smem constant byte address 0x4 - core index']
  #allocation1 [shape = 'u32[144,128]{1,0:T(1,128)}', space=vmem, size = 0x12000, scoped, tag = 'internal scratch']
  #allocation2 [shape = 'f32[4,8,32]{2,1,0:T(8,128)}', space=vmem, size = 0x4000, scoped, tag = 'scratch operand']
  #allocation3 [shape = 'f32[4,8,1]{2,1,0:T(8,128)}', space=vmem, size = 0x4000, scoped, tag = 'scratch operand']
  #allocation4 [shape = 'f32[4,8,1]{2,1,0:T(8,128)}', space=vmem, size = 0x4000, scoped, tag = 'scratch operand']
  #allocation5 [shape = 'f32[4,8,32]{2,1,0:T(8,128)}', space=vmem, size = 0x4000, scoped, tag = 'scratch operand']
  %s0 = inlined_call_operand.vmem [shape: f32[2,32,384], index: 0, kind: input, shape index: {}, may-alias: {0,1,2}]
  %s1 = inlined_call_operand.vmem [shape: f32[2,32,384], index: 1, kind: input, shape index: {}, may-alias: {0,1,2}]
  %s2 = inlined_call_operand.vmem [shape: f32[2,32,384], index: 2, kind: input, shape index: {}, may-alias: {0,1,2}]
  %s3 = inlined_call_operand.vmem [shape: f32[2,32,128], index: 3, kind: output, shape index: {}]
  %s4 = sld [smem:[#allocation0]]
  $region61: #{causal_self_attention.4} parent=0
    _
  %s6 = ssub.s32 1, %s4
  %s7 = scalar_select 0, %s6, %s4
  loop: start=0, step=1, limit=34
  $region2: #{causal_self_attention.4} parent=0 // loop_pre_header
    _
  $region3: #{causal_self_attention.4} parent=0 // loop_header
    %s9 = sphi 0, %s13
    %p10 = scmp.ge.s32.totalorder %s9, 34
    %s16 = sphi 0, %s35
    %s17 = sphi 0, %s31
    %s18 = sphi 0, %s27
    %s19 = sphi 0, %s16
    %s20 = sphi 0, %s17
    %s21 = sphi 0, %s18
    %s22 = sphi 0, %s19
    %s23 = sphi 0, %s20
    %s24 = sphi 0, %s21
    %s40 = sphi 0, %s42
    %s43 = sphi 0, %s40
    %s44 = sphi 0, %s43
    %s60 = sphi 0, %s44
    %s68 = sphi 0, %s70
    %s71 = sphi 0, %s68
    %s72 = sphi 0, %s71
    %s88 = sphi 0, %s72
    %s96 = sphi 0, %s98
    %s99 = sphi 0, %s96
    %s100 = sphi 0, %s99
    %s116 = sphi 0, %s100
    %s124 = sphi 0, %s126
    %s127 = sphi 0, %s124
    %s128 = sphi 0, %s127
    %s144 = sphi 0, %s128
  $region4: #{causal_self_attention.4} parent=0 // loop_header_branch
    %12 = sbr.rel (%p10) target = $region8
  $region5: #{causal_self_attention.4} parent=0 // loop_body
    %s14 = ssub.s32 %s9, 1
    %s15 = ssub.s32 %s9, 2
    %s25 = sadd.s32 1, %s18
    %p26 = scmp.ge.s32.totalorder %s25, 4
    %s27 = scalar_select %p26, 0, %s25
    %s28 = sadd.s32 1, %s17
    %s29 = scalar_select %p26, %s28, %s17
    %p30 = scmp.ge.s32.totalorder %s29, 4
    %s31 = scalar_select %p30, 0, %s29
    %s32 = sadd.s32 1, %s16
    %s33 = scalar_select %p30, %s32, %s16
    %p34 = scmp.ge.s32.totalorder %s33, 2
    %s35 = scalar_select %p34, 0, %s33
    %s36 = ssub.s32 %s16, %s35
    %s37 = ssub.s32 %s17, %s31
    %s38 = sor.u32 %s36, %s37
    %p39 = scmp.eq.s32.totalorder %s38, 0
    %s41 = sadd.s32 %s40, 1
    %s42 = scalar_select %p39, %s40, %s41
    %p45 = pneg %p39
    %p46 = scmp.eq.s32.totalorder %s9, 31
    %p47 = por %p45, %p46
    %p48 = scmp.ne.s32.totalorder %s40, %s43
    %p49 = scmp.eq.s32.totalorder %s9, 0
    %p50 = por %p48, %p49
    %p51 = scmp.ne.s32.totalorder %s40, %s43
    %p52 = scmp.eq.s32.totalorder %s14, 31
    %p53 = por %p51, %p52
    %p54 = scmp.ne.s32.totalorder %s43, %s44
    %p55 = scmp.eq.s32.totalorder %s14, 0
    %p56 = por %p54, %p55
    %p57 = scmp.ne.s32.totalorder %s43, %s44
    %p58 = scmp.eq.s32.totalorder %s15, 31
    %p59 = por %p57, %p58
    %p61 = scmp.ne.s32.totalorder %s44, %s60
    %p62 = scmp.eq.s32.totalorder %s15, 0
    %p63 = por %p61, %p62
    %s64 = ssub.s32 %s16, %s35
    %s65 = ssub.s32 %s18, %s27
    %s66 = sor.u32 %s64, %s65
    %p67 = scmp.eq.s32.totalorder %s66, 0
    %s69 = sadd.s32 %s68, 1
    %s70 = scalar_select %p67, %s68, %s69
    %p73 = pneg %p67
    %p74 = scmp.eq.s32.totalorder %s9, 31
    %p75 = por %p73, %p74
    %p76 = scmp.ne.s32.totalorder %s68, %s71
    %p77 = scmp.eq.s32.totalorder %s9, 0
    %p78 = por %p76, %p77
    %p79 = scmp.ne.s32.totalorder %s68, %s71
    %p80 = scmp.eq.s32.totalorder %s14, 31
    %p81 = por %p79, %p80
    %p82 = scmp.ne.s32.totalorder %s71, %s72
    %p83 = scmp.eq.s32.totalorder %s14, 0
    %p84 = por %p82, %p83
    %p85 = scmp.ne.s32.totalorder %s71, %s72
    %p86 = scmp.eq.s32.totalorder %s15, 31
    %p87 = por %p85, %p86
    %p89 = scmp.ne.s32.totalorder %s72, %s88
    %p90 = scmp.eq.s32.totalorder %s15, 0
    %p91 = por %p89, %p90
    %s92 = ssub.s32 %s16, %s35
    %s93 = ssub.s32 %s18, %s27
    %s94 = sor.u32 %s92, %s93
    %p95 = scmp.eq.s32.totalorder %s94, 0
    %s97 = sadd.s32 %s96, 1
    %s98 = scalar_select %p95, %s96, %s97
    %p101 = pneg %p95
    %p102 = scmp.eq.s32.totalorder %s9, 31
    %p103 = por %p101, %p102
    %p104 = scmp.ne.s32.totalorder %s96, %s99
    %p105 = scmp.eq.s32.totalorder %s9, 0
    %p106 = por %p104, %p105
    %p107 = scmp.ne.s32.totalorder %s96, %s99
    %p108 = scmp.eq.s32.totalorder %s14, 31
    %p109 = por %p107, %p108
    %p110 = scmp.ne.s32.totalorder %s99, %s100
    %p111 = scmp.eq.s32.totalorder %s14, 0
    %p112 = por %p110, %p111
    %p113 = scmp.ne.s32.totalorder %s99, %s100
    %p114 = scmp.eq.s32.totalorder %s15, 31
    %p115 = por %p113, %p114
    %p117 = scmp.ne.s32.totalorder %s100, %s116
    %p118 = scmp.eq.s32.totalorder %s15, 0
    %p119 = por %p117, %p118
    %s120 = ssub.s32 %s16, %s35
    %s121 = ssub.s32 %s17, %s31
    %s122 = sor.u32 %s120, %s121
    %p123 = scmp.eq.s32.totalorder %s122, 0
    %s125 = sadd.s32 %s124, 1
    %s126 = scalar_select %p123, %s124, %s125
    %p129 = pneg %p123
    %p130 = scmp.eq.s32.totalorder %s9, 31
    %p131 = por %p129, %p130
    %p132 = scmp.ne.s32.totalorder %s124, %s127
    %p133 = scmp.eq.s32.totalorder %s9, 0
    %p134 = por %p132, %p133
    %p135 = scmp.ne.s32.totalorder %s124, %s127
    %p136 = scmp.eq.s32.totalorder %s14, 31
    %p137 = por %p135, %p136
    %p138 = scmp.ne.s32.totalorder %s127, %s128
    %p139 = scmp.eq.s32.totalorder %s14, 0
    %p140 = por %p138, %p139
    %p141 = scmp.ne.s32.totalorder %s127, %s128
    %p142 = scmp.eq.s32.totalorder %s15, 31
    %p143 = por %p141, %p142
    %p145 = scmp.ne.s32.totalorder %s128, %s144
    %p146 = scmp.eq.s32.totalorder %s15, 0
    %p147 = por %p145, %p146
    %p148 = scmp.le.s32.totalorder 1, %s9
    %p149 = scmp.lt.s32.totalorder %s9, 33
    %p150 = pnand %p148, %p149
    %p151 = pneg %p150
    // Predicated region
    $region9: #{causal_self_attention.4} parent=5 // pred_check
      _
    $region10: #{causal_self_attention.4} parent=5 // pred_check_branch
      %153 = sbr.rel (%p150) target = $region12
    $region11: #{causal_self_attention.4} parent=5 // pred_region
      %s154 = ssub.s32 %s9, 1
    $region12: #{causal_self_attention.4} parent=5 // pred_fallthru
      _
    %p155 = scmp.lt.s32.totalorder %s9, 32
    // Predicated region
    $region13: #{causal_self_attention.4} parent=5 // pred_check
      %p156 = pneg %p155
    $region14: #{causal_self_attention.4} parent=5 // pred_check_branch
      %158 = sbr.rel (%p156) target = $region16
    $region15: #{causal_self_attention.4} parent=5 // pred_region
      // Predicated region
      $region17: #{causal_self_attention.4} parent=15 // pred_check
        %p159 = pneg %p50
      $region18: #{causal_self_attention.4} parent=15 // pred_check_branch
        %161 = sbr.rel (%p159) target = $region20
      $region19: #{causal_self_attention.4} parent=15 // pred_region
        %p162 = scmp.lt.s32.totalorder %s16, 1
        %s163 = scalar_select %p162, %s16, 1
        %p164 = scmp.lt.s32.totalorder %s17, 3
        %s165 = scalar_select %p164, %s17, 3
        %s166 = smul.addr %s165, 3
        %s167 = smul.addr %s163, 12
        %s168 = sadd.s32 %s166, %s167
        %s169 = smul.addr %s168, 8
        %s170 = scalar_lea.vmem %s0, %s169
      $region20: #{causal_self_attention.4} parent=15 // pred_fallthru
        _
      // Predicated region
      $region21: #{causal_self_attention.4} parent=15 // pred_check
        %p171 = pneg %p78
      $region22: #{causal_self_attention.4} parent=15 // pred_check_branch
        %173 = sbr.rel (%p171) target = $region24
      $region23: #{causal_self_attention.4} parent=15 // pred_region
        %p174 = scmp.lt.s32.totalorder %s16, 1
        %s175 = scalar_select %p174, %s16, 1
        %p176 = scmp.lt.s32.totalorder %s18, 3
        %s177 = scalar_select %p176, %s18, 3
        %s178 = smul.addr %s177, 3
        %s179 = sadd.s32 1, %s178
        %s180 = smul.addr %s175, 12
        %s181 = sadd.s32 %s179, %s180
        %s182 = smul.addr %s181, 8
        %s183 = scalar_lea.vmem %s1, %s182
      $region24: #{causal_self_attention.4} parent=15 // pred_fallthru
        _
      // Predicated region
      $region25: #{causal_self_attention.4} parent=15 // pred_check
        %p184 = pneg %p106
      $region26: #{causal_self_attention.4} parent=15 // pred_check_branch
        %186 = sbr.rel (%p184) target = $region28
      $region27: #{causal_self_attention.4} parent=15 // pred_region
        %p187 = scmp.lt.s32.totalorder %s16, 1
        %s188 = scalar_select %p187, %s16, 1
        %p189 = scmp.lt.s32.totalorder %s18, 3
        %s190 = scalar_select %p189, %s18, 3
        %s191 = smul.addr %s190, 3
        %s192 = sadd.s32 2, %s191
        %s193 = smul.addr %s188, 12
        %s194 = sadd.s32 %s192, %s193
        %s195 = smul.addr %s194, 8
        %s196 = scalar_lea.vmem %s2, %s195
      $region28: #{causal_self_attention.4} parent=15 // pred_fallthru
        _
    $region16: #{causal_self_attention.4} parent=5 // pred_fallthru
      _
    %p197 = scmp.le.s32.totalorder 1, %s9
    %p198 = scmp.lt.s32.totalorder %s9, 33
    %p199 = pnand %p197, %p198
    %p200 = pneg %p199
    // Predicated region
    $region29: #{causal_self_attention.4} parent=5 // pred_check
      _
    $region30: #{causal_self_attention.4} parent=5 // pred_check_branch
      %202 = sbr.rel (%p199) target = $region32
    $region31: #{causal_self_attention.4} parent=5 // pred_region
      %s203 = ssub.s32 %s9, 1
      %p204 = scmp.lt.s32.totalorder %s19, 1
      %s205 = scalar_select %p204, %s19, 1
      %p206 = scmp.lt.s32.totalorder %s20, 3
      %s207 = scalar_select %p206, %s20, 3
      %s208 = smul.addr %s207, 3
      %s209 = smul.addr %s205, 12
      %s210 = sadd.s32 %s208, %s209
      %s211 = smul.addr %s210, 8
      %s212 = scalar_lea.vmem %s0, %s211
      %p213 = pneg %p56
      %p214 = pneg %p53
      %p215 = scmp.lt.s32.totalorder %s19, 1
      %s216 = scalar_select %p215, %s19, 1
      %p217 = scmp.lt.s32.totalorder %s21, 3
      %s218 = scalar_select %p217, %s21, 3
      %s219 = smul.addr %s218, 3
      %s220 = sadd.s32 1, %s219
      %s221 = smul.addr %s216, 12
      %s222 = sadd.s32 %s220, %s221
      %s223 = smul.addr %s222, 8
      %s224 = scalar_lea.vmem %s1, %s223
      %p225 = pneg %p84
      %p226 = pneg %p81
      %p227 = scmp.lt.s32.totalorder %s19, 1
      %s228 = scalar_select %p227, %s19, 1
      %p229 = scmp.lt.s32.totalorder %s21, 3
      %s230 = scalar_select %p229, %s21, 3
      %s231 = smul.addr %s230, 3
      %s232 = sadd.s32 2, %s231
      %s233 = smul.addr %s228, 12
      %s234 = sadd.s32 %s232, %s233
      %s235 = smul.addr %s234, 8
      %s236 = scalar_lea.vmem %s2, %s235
      %p237 = pneg %p112
      %p238 = pneg %p109
      %p239 = pneg %p140
      %p240 = pneg %p137
      %p241 = scmp.lt.s32.totalorder %s19, 1
      %s242 = scalar_select %p241, %s19, 1
      %p243 = scmp.lt.s32.totalorder %s20, 3
      %s244 = scalar_select %p243, %s20, 3
      %s245 = smul.addr %s242, 4
      %s246 = sadd.s32 %s244, %s245
      %s247 = smul.addr %s246, 8
      %s248 = scalar_lea.vmem %s3, %s247
      %p249 = scmp.lt.s32.totalorder %s19, 1
      %s250 = scalar_select %p249, %s19, 1
      %p251 = scmp.lt.s32.totalorder %s20, 3
      %s252 = scalar_select %p251, %s20, 3
      %s253 = smul.addr %s252, 3
      %s254 = smul.addr %s250, 12
      %s255 = sadd.s32 %s253, %s254
      %s256 = smul.addr %s255, 8
      %s257 = scalar_lea.vmem %s0, %s256
      %p258 = scmp.lt.s32.totalorder %s19, 1
      %s259 = scalar_select %p258, %s19, 1
      %p260 = scmp.lt.s32.totalorder %s21, 3
      %s261 = scalar_select %p260, %s21, 3
      %s262 = smul.addr %s261, 3
      %s263 = sadd.s32 1, %s262
      %s264 = smul.addr %s259, 12
      %s265 = sadd.s32 %s263, %s264
      %s266 = smul.addr %s265, 8
      %s267 = scalar_lea.vmem %s1, %s266
      %p268 = scmp.lt.s32.totalorder %s19, 1
      %s269 = scalar_select %p268, %s19, 1
      %p270 = scmp.lt.s32.totalorder %s21, 3
      %s271 = scalar_select %p270, %s21, 3
      %s272 = smul.addr %s271, 3
      %s273 = sadd.s32 2, %s272
      %s274 = smul.addr %s269, 12
      %s275 = sadd.s32 %s273, %s274
      %s276 = smul.addr %s275, 8
      %s277 = scalar_lea.vmem %s2, %s276
      %p278 = scmp.lt.s32.totalorder %s19, 1
      %s279 = scalar_select %p278, %s19, 1
      %p280 = scmp.lt.s32.totalorder %s20, 3
      %s281 = scalar_select %p280, %s20, 3
      %s282 = smul.addr %s279, 4
      %s283 = sadd.s32 %s281, %s282
      %s284 = smul.addr %s283, 8
      %s285 = scalar_lea.vmem %s3, %s284
      %s286 = smul.u32 %s20, 8
      %s287 = smul.u32 %s21, 8
      %p288 = scmp.eq.s32.totalorder %s21, 0
      // Predicated region
      $region33: #{causal_self_attention.4} parent=31 // pred_check
        %p289 = pneg %p288
      $region34: #{causal_self_attention.4} parent=31 // pred_check_branch
        %291 = sbr.rel (%p289) target = $region36
      $region35: #{causal_self_attention.4} parent=31 // pred_region
        %vm292 = vcmask 7168
        %293 = vst.msk [vmem:[#allocation3] sm:$0xff] %vm292, -1e+30
        %294 = vst.msk [vmem:[#allocation3 + $0x8] sm:$0xff] %vm292, -1e+30
        %295 = vst.msk [vmem:[#allocation3 + $0x10] sm:$0xff] %vm292, -1e+30
        %296 = vst.msk [vmem:[#allocation3 + $0x18] sm:$0xff] %vm292, -1e+30
        %297 = vst.msk [vmem:[#allocation4] sm:$0xff] %vm292, 0.0
        %298 = vst.msk [vmem:[#allocation4 + $0x8] sm:$0xff] %vm292, 0.0
        %299 = vst.msk [vmem:[#allocation4 + $0x10] sm:$0xff] %vm292, 0.0
        %300 = vst.msk [vmem:[#allocation4 + $0x18] sm:$0xff] %vm292, 0.0
        %vm301 = vcmask 261120
        %302 = vst.msk [vmem:[#allocation5] sm:$0xff] %vm301, 0.0
        %303 = vst.msk [vmem:[#allocation5 + $0x8] sm:$0xff] %vm301, 0.0
        %304 = vst.msk [vmem:[#allocation5 + $0x10] sm:$0xff] %vm301, 0.0
        %305 = vst.msk [vmem:[#allocation5 + $0x18] sm:$0xff] %vm301, 0.0
        %v306 = vld [vmem:[%s257] sm:$0xff]
        %308 = vrot.lane.b32.xlu0 %v306, 96
        %v309 = vpop.permute.xlu0 %308
        %311 = vrot.lane.b32.xlu0 %v306, 64
        %v312 = vpop.permute.xlu0 %311
        %314 = vrot.lane.b32.xlu0 %v306, 32
        %v315 = vpop.permute.xlu0 %314
        %v317 = vcombine.low %v306, %v312
        %v318 = vcombine.high %v306, %v312
        %v320 = vunpack.c.l.s4 1983009808
        %v321 = vunpack.c.0.s8 %v320
        %v322 = vlaneseq
        %v323 = vshrl.u32 %v322, 7
        %v324 = vsub.s32 %v321, %v323
        %v325 = vrot.slane %v317, %v324
        %v327 = vunpack.c.l.s4 1983009808
        %v328 = vunpack.c.0.s8 %v327
        %v329 = vlaneseq
        %v330 = vshrl.u32 %v329, 7
        %v331 = vsub.s32 %v328, %v330
        %v332 = vrot.slane %v318, %v331
        %v333 = vcombine.low %v309, %v315
        %v334 = vcombine.high %v309, %v315
        %v336 = vunpack.c.l.s4 1983009808
        %v337 = vunpack.c.0.s8 %v336
        %v338 = vlaneseq
        %v339 = vshrl.u32 %v338, 7
        %v340 = vsub.s32 %v337, %v339
        %v341 = vrot.slane %v333, %v340
        %v343 = vunpack.c.l.s4 1983009808
        %v344 = vunpack.c.0.s8 %v343
        %v345 = vlaneseq
        %v346 = vshrl.u32 %v345, 7
        %v347 = vsub.s32 %v344, %v346
        %v348 = vrot.slane %v334, %v347
        %v349 = vcombine.low %v325, %v341
        %v350 = vcombine.high %v325, %v341
        %v352 = vunpack.c.l.s4 1934713408
        %v353 = vunpack.c.0.s8 %v352
        %v354 = vlaneseq
        %v355 = vshrl.u32 %v354, 7
        %v356 = vsub.s32 %v353, %v355
        %v357 = vrot.slane %v349, %v356
        %v359 = vunpack.c.l.s4 1934713408
        %v360 = vunpack.c.0.s8 %v359
        %v361 = vlaneseq
        %v362 = vshrl.u32 %v361, 7
        %v363 = vsub.s32 %v360, %v362
        %v364 = vrot.slane %v350, %v363
        %v365 = vcombine.low %v332, %v348
        %v366 = vcombine.high %v332, %v348
        %v368 = vunpack.c.l.s4 1934713408
        %v369 = vunpack.c.0.s8 %v368
        %v370 = vlaneseq
        %v371 = vshrl.u32 %v370, 7
        %v372 = vsub.s32 %v369, %v371
        %v373 = vrot.slane %v365, %v372
        %v375 = vunpack.c.l.s4 1934713408
        %v376 = vunpack.c.0.s8 %v375
        %v377 = vlaneseq
        %v378 = vshrl.u32 %v377, 7
        %v379 = vsub.s32 %v376, %v378
        %v380 = vrot.slane %v366, %v379
        %v381 = vcombine.high %v357, 0.0
        %v382 = vcombine.high %v364, 0.0
        %v383 = vcombine.high %v373, 0.0
        %v384 = vcombine.high %v380, 0.0
        %v385 = vcombine.low %v357, %v364
        %v387 = vunpack.c.l.s4 1983009808
        %v388 = vunpack.c.0.s8 %v387
        %v389 = vlaneseq
        %v390 = vshrl.u32 %v389, 7
        %v391 = vsub.s32 %v388, %v390
        %v392 = vrot.slane %v385, %v391
        %v393 = vcombine.low %v381, %v382
        %v395 = vunpack.c.l.s4 1983009808
        %v396 = vunpack.c.0.s8 %v395
        %v397 = vlaneseq
        %v398 = vshrl.u32 %v397, 7
        %v399 = vsub.s32 %v396, %v398
        %v400 = vrot.slane %v393, %v399
        %v401 = vcombine.low %v373, %v380
        %v403 = vunpack.c.l.s4 1983009808
        %v404 = vunpack.c.0.s8 %v403
        %v405 = vlaneseq
        %v406 = vshrl.u32 %v405, 7
        %v407 = vsub.s32 %v404, %v406
        %v408 = vrot.slane %v401, %v407
        %v409 = vcombine.low %v383, %v384
        %v411 = vunpack.c.l.s4 1983009808
        %v412 = vunpack.c.0.s8 %v411
        %v413 = vlaneseq
        %v414 = vshrl.u32 %v413, 7
        %v415 = vsub.s32 %v412, %v414
        %v416 = vrot.slane %v409, %v415
        %v417 = vcombine.low %v392, %v400
        %v418 = vcombine.high %v392, %v400
        %v420 = vunpack.c.l.s4 1934713408
        %v421 = vunpack.c.0.s8 %v420
        %v422 = vlaneseq
        %v423 = vshrl.u32 %v422, 7
        %v424 = vsub.s32 %v421, %v423
        %v425 = vrot.slane %v417, %v424
        %v427 = vunpack.c.l.s4 1934713408
        %v428 = vunpack.c.0.s8 %v427
        %v429 = vlaneseq
        %v430 = vshrl.u32 %v429, 7
        %v431 = vsub.s32 %v428, %v430
        %v432 = vrot.slane %v418, %v431
        %v433 = vcombine.low %v408, %v416
        %v434 = vcombine.high %v408, %v416
        %v436 = vunpack.c.l.s4 1934713408
        %v437 = vunpack.c.0.s8 %v436
        %v438 = vlaneseq
        %v439 = vshrl.u32 %v438, 7
        %v440 = vsub.s32 %v437, %v439
        %v441 = vrot.slane %v433, %v440
        %v443 = vunpack.c.l.s4 1934713408
        %v444 = vunpack.c.0.s8 %v443
        %v445 = vlaneseq
        %v446 = vshrl.u32 %v445, 7
        %v447 = vsub.s32 %v444, %v446
        %v448 = vrot.slane %v434, %v447
        %v449 = vcombine.low %v425, %v441
        %v450 = vcombine.high %v425, %v441
        %v451 = vcombine.low %v432, %v448
        %v452 = vcombine.high %v432, %v448
        %v453 = vmul.f32 %v449, 0.17677669
        %v454 = vmul.f32 %v450, 0.17677669
        %v455 = vmul.f32 %v451, 0.17677669
        %v456 = vmul.f32 %v452, 0.17677669
        %457 = vst.msk [vmem:[#allocation2] sm:$0xff] %vm301, %v453
        %458 = vst.msk [vmem:[#allocation2 + $0x8] sm:$0xff] %vm301, %v454
        %459 = vst.msk [vmem:[#allocation2 + $0x10] sm:$0xff] %vm301, %v455
        %460 = vst.msk [vmem:[#allocation2 + $0x18] sm:$0xff] %vm301, %v456
      $region36: #{causal_self_attention.4} parent=31 // pred_fallthru
        _
      %s461 = sadd.s32 %s287, 7
      %p462 = scmp.le.s32.totalorder %s461, %s286
      // Predicated region
      $region37: #{causal_self_attention.4} parent=31 // pred_check
        %p463 = pneg %p462
      $region38: #{causal_self_attention.4} parent=31 // pred_check_branch
        %465 = sbr.rel (%p463) target = $region40
      $region39: #{causal_self_attention.4} parent=31 // pred_region
        %v466 = vld [vmem:[%s267] sm:$0xff]
        %468 = vrot.lane.b32.xlu0 %v466, 96
        %v469 = vpop.permute.xlu0 %468
        %471 = vrot.lane.b32.xlu0 %v466, 64
        %v472 = vpop.permute.xlu0 %471
        %474 = vrot.lane.b32.xlu0 %v466, 32
        %v475 = vpop.permute.xlu0 %474
        %v477 = vcombine.low %v466, %v472
        %v478 = vcombine.high %v466, %v472
        %v480 = vunpack.c.l.s4 1983009808
        %v481 = vunpack.c.0.s8 %v480
        %v482 = vlaneseq
        %v483 = vshrl.u32 %v482, 7
        %v484 = vsub.s32 %v481, %v483
        %v485 = vrot.slane %v477, %v484
        %v487 = vunpack.c.l.s4 1983009808
        %v488 = vunpack.c.0.s8 %v487
        %v489 = vlaneseq
        %v490 = vshrl.u32 %v489, 7
        %v491 = vsub.s32 %v488, %v490
        %v492 = vrot.slane %v478, %v491
        %v493 = vcombine.low %v469, %v475
        %v494 = vcombine.high %v469, %v475
        %v496 = vunpack.c.l.s4 1983009808
        %v497 = vunpack.c.0.s8 %v496
        %v498 = vlaneseq
        %v499 = vshrl.u32 %v498, 7
        %v500 = vsub.s32 %v497, %v499
        %v501 = vrot.slane %v493, %v500
        %v503 = vunpack.c.l.s4 1983009808
        %v504 = vunpack.c.0.s8 %v503
        %v505 = vlaneseq
        %v506 = vshrl.u32 %v505, 7
        %v507 = vsub.s32 %v504, %v506
        %v508 = vrot.slane %v494, %v507
        %v509 = vcombine.low %v485, %v501
        %v510 = vcombine.high %v485, %v501
        %v512 = vunpack.c.l.s4 1934713408
        %v513 = vunpack.c.0.s8 %v512
        %v514 = vlaneseq
        %v515 = vshrl.u32 %v514, 7
        %v516 = vsub.s32 %v513, %v515
        %v517 = vrot.slane %v509, %v516
        %v519 = vunpack.c.l.s4 1934713408
        %v520 = vunpack.c.0.s8 %v519
        %v521 = vlaneseq
        %v522 = vshrl.u32 %v521, 7
        %v523 = vsub.s32 %v520, %v522
        %v524 = vrot.slane %v510, %v523
        %v525 = vcombine.low %v492, %v508
        %v526 = vcombine.high %v492, %v508
        %v528 = vunpack.c.l.s4 1934713408
        %v529 = vunpack.c.0.s8 %v528
        %v530 = vlaneseq
        %v531 = vshrl.u32 %v530, 7
        %v532 = vsub.s32 %v529, %v531
        %v533 = vrot.slane %v525, %v532
        %v535 = vunpack.c.l.s4 1934713408
        %v536 = vunpack.c.0.s8 %v535
        %v537 = vlaneseq
        %v538 = vshrl.u32 %v537, 7
        %v539 = vsub.s32 %v536, %v538
        %v540 = vrot.slane %v526, %v539
        %v541 = vcombine.high %v517, 0.0
        %v542 = vcombine.high %v524, 0.0
        %v543 = vcombine.high %v533, 0.0
        %v544 = vcombine.high %v540, 0.0
        %v545 = vcombine.low %v517, %v524
        %v547 = vunpack.c.l.s4 1983009808
        %v548 = vunpack.c.0.s8 %v547
        %v549 = vlaneseq
        %v550 = vshrl.u32 %v549, 7
        %v551 = vsub.s32 %v548, %v550
        %v552 = vrot.slane %v545, %v551
        %v553 = vcombine.low %v541, %v542
        %v555 = vunpack.c.l.s4 1983009808
        %v556 = vunpack.c.0.s8 %v555
        %v557 = vlaneseq
        %v558 = vshrl.u32 %v557, 7
        %v559 = vsub.s32 %v556, %v558
        %v560 = vrot.slane %v553, %v559
        %v561 = vcombine.low %v533, %v540
        %v563 = vunpack.c.l.s4 1983009808
        %v564 = vunpack.c.0.s8 %v563
        %v565 = vlaneseq
        %v566 = vshrl.u32 %v565, 7
        %v567 = vsub.s32 %v564, %v566
        %v568 = vrot.slane %v561, %v567
        %v569 = vcombine.low %v543, %v544
        %v571 = vunpack.c.l.s4 1983009808
        %v572 = vunpack.c.0.s8 %v571
        %v573 = vlaneseq
        %v574 = vshrl.u32 %v573, 7
        %v575 = vsub.s32 %v572, %v574
        %v576 = vrot.slane %v569, %v575
        %v577 = vcombine.low %v552, %v560
        %v578 = vcombine.high %v552, %v560
        %v580 = vunpack.c.l.s4 1934713408
        %v581 = vunpack.c.0.s8 %v580
        %v582 = vlaneseq
        %v583 = vshrl.u32 %v582, 7
        %v584 = vsub.s32 %v581, %v583
        %v585 = vrot.slane %v577, %v584
        %v587 = vunpack.c.l.s4 1934713408
        %v588 = vunpack.c.0.s8 %v587
        %v589 = vlaneseq
        %v590 = vshrl.u32 %v589, 7
        %v591 = vsub.s32 %v588, %v590
        %v592 = vrot.slane %v578, %v591
        %v593 = vcombine.low %v568, %v576
        %v594 = vcombine.high %v568, %v576
        %v596 = vunpack.c.l.s4 1934713408
        %v597 = vunpack.c.0.s8 %v596
        %v598 = vlaneseq
        %v599 = vshrl.u32 %v598, 7
        %v600 = vsub.s32 %v597, %v599
        %v601 = vrot.slane %v593, %v600
        %v603 = vunpack.c.l.s4 1934713408
        %v604 = vunpack.c.0.s8 %v603
        %v605 = vlaneseq
        %v606 = vshrl.u32 %v605, 7
        %v607 = vsub.s32 %v604, %v606
        %v608 = vrot.slane %v594, %v607
        %v609 = vcombine.low %v585, %v601
        %v610 = vcombine.high %v585, %v601
        %v611 = vcombine.low %v592, %v608
        %v612 = vcombine.high %v592, %v608
        %v613 = vld [vmem:[%s277] sm:$0xff]
        %615 = vrot.lane.b32.xlu0 %v613, 96
        %v616 = vpop.permute.xlu0 %615
        %618 = vrot.lane.b32.xlu0 %v613, 64
        %v619 = vpop.permute.xlu0 %618
        %621 = vrot.lane.b32.xlu0 %v613, 32
        %v622 = vpop.permute.xlu0 %621
        %v624 = vcombine.low %v613, %v619
        %v625 = vcombine.high %v613, %v619
        %v627 = vunpack.c.l.s4 1983009808
        %v628 = vunpack.c.0.s8 %v627
        %v629 = vlaneseq
        %v630 = vshrl.u32 %v629, 7
        %v631 = vsub.s32 %v628, %v630
        %v632 = vrot.slane %v624, %v631
        %v634 = vunpack.c.l.s4 1983009808
        %v635 = vunpack.c.0.s8 %v634
        %v636 = vlaneseq
        %v637 = vshrl.u32 %v636, 7
        %v638 = vsub.s32 %v635, %v637
        %v639 = vrot.slane %v625, %v638
        %v640 = vcombine.low %v616, %v622
        %v641 = vcombine.high %v616, %v622
        %v643 = vunpack.c.l.s4 1983009808
        %v644 = vunpack.c.0.s8 %v643
        %v645 = vlaneseq
        %v646 = vshrl.u32 %v645, 7
        %v647 = vsub.s32 %v644, %v646
        %v648 = vrot.slane %v640, %v647
        %v650 = vunpack.c.l.s4 1983009808
        %v651 = vunpack.c.0.s8 %v650
        %v652 = vlaneseq
        %v653 = vshrl.u32 %v652, 7
        %v654 = vsub.s32 %v651, %v653
        %v655 = vrot.slane %v641, %v654
        %v656 = vcombine.low %v632, %v648
        %v657 = vcombine.high %v632, %v648
        %v659 = vunpack.c.l.s4 1934713408
        %v660 = vunpack.c.0.s8 %v659
        %v661 = vlaneseq
        %v662 = vshrl.u32 %v661, 7
        %v663 = vsub.s32 %v660, %v662
        %v664 = vrot.slane %v656, %v663
        %v666 = vunpack.c.l.s4 1934713408
        %v667 = vunpack.c.0.s8 %v666
        %v668 = vlaneseq
        %v669 = vshrl.u32 %v668, 7
        %v670 = vsub.s32 %v667, %v669
        %v671 = vrot.slane %v657, %v670
        %v672 = vcombine.low %v639, %v655
        %v673 = vcombine.high %v639, %v655
        %v675 = vunpack.c.l.s4 1934713408
        %v676 = vunpack.c.0.s8 %v675
        %v677 = vlaneseq
        %v678 = vshrl.u32 %v677, 7
        %v679 = vsub.s32 %v676, %v678
        %v680 = vrot.slane %v672, %v679
        %v682 = vunpack.c.l.s4 1934713408
        %v683 = vunpack.c.0.s8 %v682
        %v684 = vlaneseq
        %v685 = vshrl.u32 %v684, 7
        %v686 = vsub.s32 %v683, %v685
        %v687 = vrot.slane %v673, %v686
        %v688 = vcombine.high %v664, 0.0
        %v689 = vcombine.high %v671, 0.0
        %v690 = vcombine.high %v680, 0.0
        %v691 = vcombine.high %v687, 0.0
        %v692 = vcombine.low %v664, %v671
        %v694 = vunpack.c.l.s4 1983009808
        %v695 = vunpack.c.0.s8 %v694
        %v696 = vlaneseq
        %v697 = vshrl.u32 %v696, 7
        %v698 = vsub.s32 %v695, %v697
        %v699 = vrot.slane %v692, %v698
        %v700 = vcombine.low %v688, %v689
        %v702 = vunpack.c.l.s4 1983009808
        %v703 = vunpack.c.0.s8 %v702
        %v704 = vlaneseq
        %v705 = vshrl.u32 %v704, 7
        %v706 = vsub.s32 %v703, %v705
        %v707 = vrot.slane %v700, %v706
        %v708 = vcombine.low %v680, %v687
        %v710 = vunpack.c.l.s4 1983009808
        %v711 = vunpack.c.0.s8 %v710
        %v712 = vlaneseq
        %v713 = vshrl.u32 %v712, 7
        %v714 = vsub.s32 %v711, %v713
        %v715 = vrot.slane %v708, %v714
        %v716 = vcombine.low %v690, %v691
        %v718 = vunpack.c.l.s4 1983009808
        %v719 = vunpack.c.0.s8 %v718
        %v720 = vlaneseq
        %v721 = vshrl.u32 %v720, 7
        %v722 = vsub.s32 %v719, %v721
        %v723 = vrot.slane %v716, %v722
        %v724 = vcombine.low %v699, %v707
        %v725 = vcombine.high %v699, %v707
        %v727 = vunpack.c.l.s4 1934713408
        %v728 = vunpack.c.0.s8 %v727
        %v729 = vlaneseq
        %v730 = vshrl.u32 %v729, 7
        %v731 = vsub.s32 %v728, %v730
        %v732 = vrot.slane %v724, %v731
        %v734 = vunpack.c.l.s4 1934713408
        %v735 = vunpack.c.0.s8 %v734
        %v736 = vlaneseq
        %v737 = vshrl.u32 %v736, 7
        %v738 = vsub.s32 %v735, %v737
        %v739 = vrot.slane %v725, %v738
        %v740 = vcombine.low %v715, %v723
        %v741 = vcombine.high %v715, %v723
        %v743 = vunpack.c.l.s4 1934713408
        %v744 = vunpack.c.0.s8 %v743
        %v745 = vlaneseq
        %v746 = vshrl.u32 %v745, 7
        %v747 = vsub.s32 %v744, %v746
        %v748 = vrot.slane %v740, %v747
        %v750 = vunpack.c.l.s4 1934713408
        %v751 = vunpack.c.0.s8 %v750
        %v752 = vlaneseq
        %v753 = vshrl.u32 %v752, 7
        %v754 = vsub.s32 %v751, %v753
        %v755 = vrot.slane %v741, %v754
        %v756 = vcombine.low %v732, %v748
        %v757 = vcombine.high %v732, %v748
        %v758 = vcombine.low %v739, %v755
        %v759 = vcombine.high %v739, %v755
        %v760 = vld [vmem:[#allocation2] sm:$0xff]
        %v761 = vld [vmem:[#allocation2 + $0x8] sm:$0xff]
        %v762 = vld [vmem:[#allocation2 + $0x10] sm:$0xff]
        %v763 = vld [vmem:[#allocation2 + $0x18] sm:$0xff]
        %vm764 = vcmask 261120
        %v766 = vsel %vm764, %v760, 0
        %v769 = vsel %vm764, %v609, 0
        %771 = vmatprep.subr.mxu0 0.0
        %772 = vmatpush1.xpose.msra.mxu0 %v769
        %773 = vmatprep.subr.mxu0 0.0
        %774 = vmatpush1.xpose.msra.mxu0 0.0
        %775 = vmatprep.subr.mxu0 0.0
        %776 = vmatpush1.xpose.msra.mxu0 0.0
        %777 = vmatprep.subr.mxu0 0.0
        %778 = vmatpush1.xpose.msra.mxu0 0.0
        %779 = vmatprep.subr.mxu0 0.0
        %780 = vmatpush1.xpose.msra.mxu0 0.0
        %781 = vmatprep.subr.mxu0 0.0
        %782 = vmatpush1.xpose.msra.mxu0 0.0
        %783 = vmatprep.subr.mxu0 0.0
        %784 = vmatpush1.xpose.msra.mxu0 0.0
        %785 = vmatprep.subr.mxu0 0.0
        %786 = vmatpush1.xpose.msra.mxu0 0.0
        %787 = vmatprep.subr.mxu0 0.0
        %788 = vmatpush1.xpose.msra.mxu0 0.0
        %789 = vmatprep.subr.mxu0 0.0
        %790 = vmatpush1.xpose.msra.mxu0 0.0
        %791 = vmatprep.subr.mxu0 0.0
        %792 = vmatpush1.xpose.msra.mxu0 0.0
        %793 = vmatprep.subr.mxu0 0.0
        %794 = vmatpush1.xpose.msra.mxu0 0.0
        %795 = vmatprep.subr.mxu0 0.0
        %796 = vmatpush1.xpose.msra.mxu0 0.0
        %797 = vmatprep.subr.mxu0 0.0
        %798 = vmatpush1.xpose.msra.mxu0 0.0
        %799 = vmatprep.subr.mxu0 0.0
        %800 = vmatpush1.xpose.msra.mxu0 0.0
        %801 = vmatprep.subr.mxu0 0.0
        %802 = vmatpush1.xpose.msra.mxu0 0.0
        %803 = vmatprep.subr.mxu0 0.0
        %804 = vmatpush1.xpose.msra.mxu0 0.0
        %805 = vmatprep.subr.mxu0 0.0
        %806 = vmatpush1.xpose.msra.mxu0 0.0
        %807 = vmatprep.subr.mxu0 0.0
        %808 = vmatpush1.xpose.msra.mxu0 0.0
        %809 = vmatprep.subr.mxu0 0.0
        %810 = vmatpush1.xpose.msra.mxu0 0.0
        %811 = vmatprep.subr.mxu0 0.0
        %812 = vmatpush1.xpose.msra.mxu0 0.0
        %813 = vmatprep.subr.mxu0 0.0
        %814 = vmatpush1.xpose.msra.mxu0 0.0
        %815 = vmatprep.subr.mxu0 0.0
        %816 = vmatpush1.xpose.msra.mxu0 0.0
        %817 = vmatprep.subr.mxu0 0.0
        %818 = vmatpush1.xpose.msra.mxu0 0.0
        %819 = vmatprep.subr.mxu0 0.0
        %820 = vmatpush1.xpose.msra.mxu0 0.0
        %821 = vmatprep.subr.mxu0 0.0
        %822 = vmatpush1.xpose.msra.mxu0 0.0
        %823 = vmatprep.subr.mxu0 0.0
        %824 = vmatpush1.xpose.msra.mxu0 0.0
        %825 = vmatprep.subr.mxu0 0.0
        %826 = vmatpush1.xpose.msra.mxu0 0.0
        %827 = vmatprep.subr.mxu0 0.0
        %828 = vmatpush1.xpose.msra.mxu0 0.0
        %829 = vmatprep.subr.mxu0 0.0
        %830 = vmatpush1.xpose.msra.mxu0 0.0
        %831 = vmatprep.subr.mxu0 0.0
        %832 = vmatpush1.xpose.msra.mxu0 0.0
        %833 = vmatprep.subr.mxu0 0.0
        %834 = vmatpush1.xpose.msra.mxu0 0.0
        %835 = vmatprep.mubr.f32.mxu0 0.0
        %836 = vmatmul.mubr.f32.gmra.mrb[0].mxu0 %v766
        %v837 = vpop.f32.mrb[0].mxu0
        %v838 = vadd.f32 0.0, %v837
        %v839 = vpop.f32.mrb[0].mxu0
        %840 = vdwg.mxu0
        %v842 = vsel %vm764, %v761, 0
        %v845 = vsel %vm764, %v610, 0
        %847 = vmatprep.subr.mxu0 0.0
        %848 = vmatpush1.xpose.msra.mxu0 %v845
        %849 = vmatprep.subr.mxu0 0.0
        %850 = vmatpush1.xpose.msra.mxu0 0.0
        %851 = vmatprep.subr.mxu0 0.0
        %852 = vmatpush1.xpose.msra.mxu0 0.0
        %853 = vmatprep.subr.mxu0 0.0
        %854 = vmatpush1.xpose.msra.mxu0 0.0
        %855 = vmatprep.subr.mxu0 0.0
        %856 = vmatpush1.xpose.msra.mxu0 0.0
        %857 = vmatprep.subr.mxu0 0.0
        %858 = vmatpush1.xpose.msra.mxu0 0.0
        %859 = vmatprep.subr.mxu0 0.0
        %860 = vmatpush1.xpose.msra.mxu0 0.0
        %861 = vmatprep.subr.mxu0 0.0
        %862 = vmatpush1.xpose.msra.mxu0 0.0
        %863 = vmatprep.subr.mxu0 0.0
        %864 = vmatpush1.xpose.msra.mxu0 0.0
        %865 = vmatprep.subr.mxu0 0.0
        %866 = vmatpush1.xpose.msra.mxu0 0.0
        %867 = vmatprep.subr.mxu0 0.0
        %868 = vmatpush1.xpose.msra.mxu0 0.0
        %869 = vmatprep.subr.mxu0 0.0
        %870 = vmatpush1.xpose.msra.mxu0 0.0
        %871 = vmatprep.subr.mxu0 0.0
        %872 = vmatpush1.xpose.msra.mxu0 0.0
        %873 = vmatprep.subr.mxu0 0.0
        %874 = vmatpush1.xpose.msra.mxu0 0.0
        %875 = vmatprep.subr.mxu0 0.0
        %876 = vmatpush1.xpose.msra.mxu0 0.0
        %877 = vmatprep.subr.mxu0 0.0
        %878 = vmatpush1.xpose.msra.mxu0 0.0
        %879 = vmatprep.subr.mxu0 0.0
        %880 = vmatpush1.xpose.msra.mxu0 0.0
        %881 = vmatprep.subr.mxu0 0.0
        %882 = vmatpush1.xpose.msra.mxu0 0.0
        %883 = vmatprep.subr.mxu0 0.0
        %884 = vmatpush1.xpose.msra.mxu0 0.0
        %885 = vmatprep.subr.mxu0 0.0
        %886 = vmatpush1.xpose.msra.mxu0 0.0
        %887 = vmatprep.subr.mxu0 0.0
        %888 = vmatpush1.xpose.msra.mxu0 0.0
        %889 = vmatprep.subr.mxu0 0.0
        %890 = vmatpush1.xpose.msra.mxu0 0.0
        %891 = vmatprep.subr.mxu0 0.0
        %892 = vmatpush1.xpose.msra.mxu0 0.0
        %893 = vmatprep.subr.mxu0 0.0
        %894 = vmatpush1.xpose.msra.mxu0 0.0
        %895 = vmatprep.subr.mxu0 0.0
        %896 = vmatpush1.xpose.msra.mxu0 0.0
        %897 = vmatprep.subr.mxu0 0.0
        %898 = vmatpush1.xpose.msra.mxu0 0.0
        %899 = vmatprep.subr.mxu0 0.0
        %900 = vmatpush1.xpose.msra.mxu0 0.0
        %901 = vmatprep.subr.mxu0 0.0
        %902 = vmatpush1.xpose.msra.mxu0 0.0
        %903 = vmatprep.subr.mxu0 0.0
        %904 = vmatpush1.xpose.msra.mxu0 0.0
        %905 = vmatprep.subr.mxu0 0.0
        %906 = vmatpush1.xpose.msra.mxu0 0.0
        %907 = vmatprep.subr.mxu0 0.0
        %908 = vmatpush1.xpose.msra.mxu0 0.0
        %909 = vmatprep.subr.mxu0 0.0
        %910 = vmatpush1.xpose.msra.mxu0 0.0
        %911 = vmatprep.mubr.f32.mxu0 0.0
        %912 = vmatmul.mubr.f32.gmra.mrb[0].mxu0 %v842
        %v913 = vpop.f32.mrb[0].mxu0
        %v914 = vadd.f32 0.0, %v913
        %v915 = vpop.f32.mrb[0].mxu0
        %916 = vdwg.mxu0
        %v918 = vsel %vm764, %v762, 0
        %v921 = vsel %vm764, %v611, 0
        %923 = vmatprep.subr.mxu0 0.0
        %924 = vmatpush1.xpose.msra.mxu0 %v921
        %925 = vmatprep.subr.mxu0 0.0
        %926 = vmatpush1.xpose.msra.mxu0 0.0
        %927 = vmatprep.subr.mxu0 0.0
        %928 = vmatpush1.xpose.msra.mxu0 0.0
        %929 = vmatprep.subr.mxu0 0.0
        %930 = vmatpush1.xpose.msra.mxu0 0.0
        %931 = vmatprep.subr.mxu0 0.0
        %932 = vmatpush1.xpose.msra.mxu0 0.0
        %933 = vmatprep.subr.mxu0 0.0
        %934 = vmatpush1.xpose.msra.mxu0 0.0
        %935 = vmatprep.subr.mxu0 0.0
        %936 = vmatpush1.xpose.msra.mxu0 0.0
        %937 = vmatprep.subr.mxu0 0.0
        %938 = vmatpush1.xpose.msra.mxu0 0.0
        %939 = vmatprep.subr.mxu0 0.0
        %940 = vmatpush1.xpose.msra.mxu0 0.0
        %941 = vmatprep.subr.mxu0 0.0
        %942 = vmatpush1.xpose.msra.mxu0 0.0
        %943 = vmatprep.subr.mxu0 0.0
        %944 = vmatpush1.xpose.msra.mxu0 0.0
        %945 = vmatprep.subr.mxu0 0.0
        %946 = vmatpush1.xpose.msra.mxu0 0.0
        %947 = vmatprep.subr.mxu0 0.0
        %948 = vmatpush1.xpose.msra.mxu0 0.0
        %949 = vmatprep.subr.mxu0 0.0
        %950 = vmatpush1.xpose.msra.mxu0 0.0
        %951 = vmatprep.subr.mxu0 0.0
        %952 = vmatpush1.xpose.msra.mxu0 0.0
        %953 = vmatprep.subr.mxu0 0.0
        %954 = vmatpush1.xpose.msra.mxu0 0.0
        %955 = vmatprep.subr.mxu0 0.0
        %956 = vmatpush1.xpose.msra.mxu0 0.0
        %957 = vmatprep.subr.mxu0 0.0
        %958 = vmatpush1.xpose.msra.mxu0 0.0
        %959 = vmatprep.subr.mxu0 0.0
        %960 = vmatpush1.xpose.msra.mxu0 0.0
        %961 = vmatprep.subr.mxu0 0.0
        %962 = vmatpush1.xpose.msra.mxu0 0.0
        %963 = vmatprep.subr.mxu0 0.0
        %964 = vmatpush1.xpose.msra.mxu0 0.0
        %965 = vmatprep.subr.mxu0 0.0
        %966 = vmatpush1.xpose.msra.mxu0 0.0
        %967 = vmatprep.subr.mxu0 0.0
        %968 = vmatpush1.xpose.msra.mxu0 0.0
        %969 = vmatprep.subr.mxu0 0.0
        %970 = vmatpush1.xpose.msra.mxu0 0.0
        %971 = vmatprep.subr.mxu0 0.0
        %972 = vmatpush1.xpose.msra.mxu0 0.0
        %973 = vmatprep.subr.mxu0 0.0
        %974 = vmatpush1.xpose.msra.mxu0 0.0
        %975 = vmatprep.subr.mxu0 0.0
        %976 = vmatpush1.xpose.msra.mxu0 0.0
        %977 = vmatprep.subr.mxu0 0.0
        %978 = vmatpush1.xpose.msra.mxu0 0.0
        %979 = vmatprep.subr.mxu0 0.0
        %980 = vmatpush1.xpose.msra.mxu0 0.0
        %981 = vmatprep.subr.mxu0 0.0
        %982 = vmatpush1.xpose.msra.mxu0 0.0
        %983 = vmatprep.subr.mxu0 0.0
        %984 = vmatpush1.xpose.msra.mxu0 0.0
        %985 = vmatprep.subr.mxu0 0.0
        %986 = vmatpush1.xpose.msra.mxu0 0.0
        %987 = vmatprep.mubr.f32.mxu0 0.0
        %988 = vmatmul.mubr.f32.gmra.mrb[0].mxu0 %v918
        %v989 = vpop.f32.mrb[0].mxu0
        %v990 = vadd.f32 0.0, %v989
        %v991 = vpop.f32.mrb[0].mxu0
        %992 = vdwg.mxu0
        %v994 = vsel %vm764, %v763, 0
        %v997 = vsel %vm764, %v612, 0
        %999 = vmatprep.subr.mxu0 0.0
        %1000 = vmatpush1.xpose.msra.mxu0 %v997
        %1001 = vmatprep.subr.mxu0 0.0
        %1002 = vmatpush1.xpose.msra.mxu0 0.0
        %1003 = vmatprep.subr.mxu0 0.0
        %1004 = vmatpush1.xpose.msra.mxu0 0.0
        %1005 = vmatprep.subr.mxu0 0.0
        %1006 = vmatpush1.xpose.msra.mxu0 0.0
        %1007 = vmatprep.subr.mxu0 0.0
        %1008 = vmatpush1.xpose.msra.mxu0 0.0
        %1009 = vmatprep.subr.mxu0 0.0
        %1010 = vmatpush1.xpose.msra.mxu0 0.0
        %1011 = vmatprep.subr.mxu0 0.0
        %1012 = vmatpush1.xpose.msra.mxu0 0.0
        %1013 = vmatprep.subr.mxu0 0.0
        %1014 = vmatpush1.xpose.msra.mxu0 0.0
        %1015 = vmatprep.subr.mxu0 0.0
        %1016 = vmatpush1.xpose.msra.mxu0 0.0
        %1017 = vmatprep.subr.mxu0 0.0
        %1018 = vmatpush1.xpose.msra.mxu0 0.0
        %1019 = vmatprep.subr.mxu0 0.0
        %1020 = vmatpush1.xpose.msra.mxu0 0.0
        %1021 = vmatprep.subr.mxu0 0.0
        %1022 = vmatpush1.xpose.msra.mxu0 0.0
        %1023 = vmatprep.subr.mxu0 0.0
        %1024 = vmatpush1.xpose.msra.mxu0 0.0
        %1025 = vmatprep.subr.mxu0 0.0
        %1026 = vmatpush1.xpose.msra.mxu0 0.0
        %1027 = vmatprep.subr.mxu0 0.0
        %1028 = vmatpush1.xpose.msra.mxu0 0.0
        %1029 = vmatprep.subr.mxu0 0.0
        %1030 = vmatpush1.xpose.msra.mxu0 0.0
        %1031 = vmatprep.subr.mxu0 0.0
        %1032 = vmatpush1.xpose.msra.mxu0 0.0
        %1033 = vmatprep.subr.mxu0 0.0
        %1034 = vmatpush1.xpose.msra.mxu0 0.0
        %1035 = vmatprep.subr.mxu0 0.0
        %1036 = vmatpush1.xpose.msra.mxu0 0.0
        %1037 = vmatprep.subr.mxu0 0.0
        %1038 = vmatpush1.xpose.msra.mxu0 0.0
        %1039 = vmatprep.subr.mxu0 0.0
        %1040 = vmatpush1.xpose.msra.mxu0 0.0
        %1041 = vmatprep.subr.mxu0 0.0
        %1042 = vmatpush1.xpose.msra.mxu0 0.0
        %1043 = vmatprep.subr.mxu0 0.0
        %1044 = vmatpush1.xpose.msra.mxu0 0.0
        %1045 = vmatprep.subr.mxu0 0.0
        %1046 = vmatpush1.xpose.msra.mxu0 0.0
        %1047 = vmatprep.subr.mxu0 0.0
        %1048 = vmatpush1.xpose.msra.mxu0 0.0
        %1049 = vmatprep.subr.mxu0 0.0
        %1050 = vmatpush1.xpose.msra.mxu0 0.0
        %1051 = vmatprep.subr.mxu0 0.0
        %1052 = vmatpush1.xpose.msra.mxu0 0.0
        %1053 = vmatprep.subr.mxu0 0.0
        %1054 = vmatpush1.xpose.msra.mxu0 0.0
        %1055 = vmatprep.subr.mxu0 0.0
        %1056 = vmatpush1.xpose.msra.mxu0 0.0
        %1057 = vmatprep.subr.mxu0 0.0
        %1058 = vmatpush1.xpose.msra.mxu0 0.0
        %1059 = vmatprep.subr.mxu0 0.0
        %1060 = vmatpush1.xpose.msra.mxu0 0.0
        %1061 = vmatprep.subr.mxu0 0.0
        %1062 = vmatpush1.xpose.msra.mxu0 0.0
        %1063 = vmatprep.mubr.f32.mxu0 0.0
        %1064 = vmatmul.mubr.f32.gmra.mrb[0].mxu0 %v994
        %v1065 = vpop.f32.mrb[0].mxu0
        %v1066 = vadd.f32 0.0, %v1065
        %v1067 = vpop.f32.mrb[0].mxu0
        %1068 = vdwg.mxu0
        %v1069 = vld [vmem:[#allocation3] sm:$0xff]
        %v1070 = vld [vmem:[#allocation3 + $0x8] sm:$0xff]
        %v1071 = vld [vmem:[#allocation3 + $0x10] sm:$0xff]
        %v1072 = vld [vmem:[#allocation3 + $0x18] sm:$0xff]
        %vm1073 = vcmask 64512
        %v1074 = vsel %vm1073, %v838, -inf
        %1075 = vmax.xlane.f32.xlu0 %v1074
        %v1076 = vpop.xlane.xlu0 %1075
        %v1077 = vsel %vm1073, %v914, -inf
        %1078 = vmax.xlane.f32.xlu0 %v1077
        %v1079 = vpop.xlane.xlu0 %1078
        %v1080 = vsel %vm1073, %v990, -inf
        %1081 = vmax.xlane.f32.xlu0 %v1080
        %v1082 = vpop.xlane.xlu0 %1081
        %v1083 = vsel %vm1073, %v1066, -inf
        %1084 = vmax.xlane.f32.xlu0 %v1083
        %v1085 = vpop.xlane.xlu0 %1084
        %v1086 = vmax.f32 %v1069, %v1076
        %v1087 = vmax.f32 %v1070, %v1079
        %v1088 = vmax.f32 %v1071, %v1082
        %v1089 = vmax.f32 %v1072, %v1085
        %v1090 = vsub.f32 %v1069, %v1086
        %v1091 = vsub.f32 %v1070, %v1087
        %v1092 = vsub.f32 %v1071, %v1088
        %v1093 = vsub.f32 %v1072, %v1089
        %v1094 = vmul.f32 %v1090, 1.442695
        %v1095 = vpow.pop %v1094
        %v1096 = vmul.f32 %v1091, 1.442695
        %v1097 = vpow.pop %v1096
        %v1098 = vmul.f32 %v1092, 1.442695
        %v1099 = vpow.pop %v1098
        %v1100 = vmul.f32 %v1093, 1.442695
        %v1101 = vpow.pop %v1100
        %1103 = vset.pattern.permute.xlu0 0
        %1104 = vperm.xlu0 %1103, %v1086
        %v1105 = vpop.permute.xlu0 %1104
        %1108 = vset.pattern.permute.xlu0 0
        %1109 = vperm.xlu0 %1108, %v1087
        %v1110 = vpop.permute.xlu0 %1109
        %1113 = vset.pattern.permute.xlu0 0
        %1114 = vperm.xlu0 %1113, %v1088
        %v1115 = vpop.permute.xlu0 %1114
        %1118 = vset.pattern.permute.xlu0 0
        %1119 = vperm.xlu0 %1118, %v1089
        %v1120 = vpop.permute.xlu0 %1119
        %v1122 = vsub.f32 %v838, %v1105
        %v1123 = vsub.f32 %v914, %v1110
        %v1124 = vsub.f32 %v990, %v1115
        %v1125 = vsub.f32 %v1066, %v1120
        %v1126 = vmul.f32 %v1122, 1.442695
        %v1127 = vpow.pop %v1126
        %v1128 = vmul.f32 %v1123, 1.442695
        %v1129 = vpow.pop %v1128
        %v1130 = vmul.f32 %v1124, 1.442695
        %v1131 = vpow.pop %v1130
        %v1132 = vmul.f32 %v1125, 1.442695
        %v1133 = vpow.pop %v1132
        %v1134 = vld [vmem:[#allocation4] sm:$0xff]
        %v1135 = vld [vmem:[#allocation4 + $0x8] sm:$0xff]
        %v1136 = vld [vmem:[#allocation4 + $0x10] sm:$0xff]
        %v1137 = vld [vmem:[#allocation4 + $0x18] sm:$0xff]
        %v1138 = vmul.f32 %v1095, %v1134
        %v1139 = vmul.f32 %v1097, %v1135
        %v1140 = vmul.f32 %v1099, %v1136
        %v1141 = vmul.f32 %v1101, %v1137
        %v1142 = vsel %vm1073, %v1127, 0.0
        %1143 = vadd.xlane.f32.xlu0 %v1142
        %v1144 = vpop.xlane.xlu0 %1143
        %v1145 = vsel %vm1073, %v1129, 0.0
        %1146 = vadd.xlane.f32.xlu0 %v1145
        %v1147 = vpop.xlane.xlu0 %1146
        %v1148 = vsel %vm1073, %v1131, 0.0
        %1149 = vadd.xlane.f32.xlu0 %v1148
        %v1150 = vpop.xlane.xlu0 %1149
        %v1151 = vsel %vm1073, %v1133, 0.0
        %1152 = vadd.xlane.f32.xlu0 %v1151
        %v1153 = vpop.xlane.xlu0 %1152
        %v1154 = vadd.f32 %v1138, %v1144
        %v1155 = vadd.f32 %v1139, %v1147
        %v1156 = vadd.f32 %v1140, %v1150
        %v1157 = vadd.f32 %v1141, %v1153
        %vm1158 = vcmask 7168
        %1159 = vst.msk [vmem:[#allocation4] sm:$0xff] %vm1158, %v1154
        %1160 = vst.msk [vmem:[#allocation4 + $0x8] sm:$0xff] %vm1158, %v1155
        %1161 = vst.msk [vmem:[#allocation4 + $0x10] sm:$0xff] %vm1158, %v1156
        %1162 = vst.msk [vmem:[#allocation4 + $0x18] sm:$0xff] %vm1158, %v1157
        %v1164 = vsel %vm1073, %v1127, 0
        %1166 = vmatprep.subr.mxu0 0.0
        %1167 = vmatpush1.msra.mxu0 %v756
        %1168 = vmatprep.subr.mxu0 0.0
        %1169 = vmatpush1.msra.mxu0 0.0
        %1170 = vmatprep.subr.mxu0 0.0
        %1171 = vmatpush1.msra.mxu0 0.0
        %1172 = vmatprep.subr.mxu0 0.0
        %1173 = vmatpush1.msra.mxu0 0.0
        %1174 = vmatprep.subr.mxu0 0.0
        %1175 = vmatpush1.msra.mxu0 0.0
        %1176 = vmatprep.subr.mxu0 0.0
        %1177 = vmatpush1.msra.mxu0 0.0
        %1178 = vmatprep.subr.mxu0 0.0
        %1179 = vmatpush1.msra.mxu0 0.0
        %1180 = vmatprep.subr.mxu0 0.0
        %1181 = vmatpush1.msra.mxu0 0.0
        %1182 = vmatprep.subr.mxu0 0.0
        %1183 = vmatpush1.msra.mxu0 0.0
        %1184 = vmatprep.subr.mxu0 0.0
        %1185 = vmatpush1.msra.mxu0 0.0
        %1186 = vmatprep.subr.mxu0 0.0
        %1187 = vmatpush1.msra.mxu0 0.0
        %1188 = vmatprep.subr.mxu0 0.0
        %1189 = vmatpush1.msra.mxu0 0.0
        %1190 = vmatprep.subr.mxu0 0.0
        %1191 = vmatpush1.msra.mxu0 0.0
        %1192 = vmatprep.subr.mxu0 0.0
        %1193 = vmatpush1.msra.mxu0 0.0
        %1194 = vmatprep.subr.mxu0 0.0
        %1195 = vmatpush1.msra.mxu0 0.0
        %1196 = vmatprep.subr.mxu0 0.0
        %1197 = vmatpush1.msra.mxu0 0.0
        %1198 = vmatprep.subr.mxu0 0.0
        %1199 = vmatpush1.msra.mxu0 0.0
        %1200 = vmatprep.subr.mxu0 0.0
        %1201 = vmatpush1.msra.mxu0 0.0
        %1202 = vmatprep.subr.mxu0 0.0
        %1203 = vmatpush1.msra.mxu0 0.0
        %1204 = vmatprep.subr.mxu0 0.0
        %1205 = vmatpush1.msra.mxu0 0.0
        %1206 = vmatprep.subr.mxu0 0.0
        %1207 = vmatpush1.msra.mxu0 0.0
        %1208 = vmatprep.subr.mxu0 0.0
        %1209 = vmatpush1.msra.mxu0 0.0
        %1210 = vmatprep.subr.mxu0 0.0
        %1211 = vmatpush1.msra.mxu0 0.0
        %1212 = vmatprep.subr.mxu0 0.0
        %1213 = vmatpush1.msra.mxu0 0.0
        %1214 = vmatprep.subr.mxu0 0.0
        %1215 = vmatpush1.msra.mxu0 0.0
        %1216 = vmatprep.subr.mxu0 0.0
        %1217 = vmatpush1.msra.mxu0 0.0
        %1218 = vmatprep.subr.mxu0 0.0
        %1219 = vmatpush1.msra.mxu0 0.0
        %1220 = vmatprep.subr.mxu0 0.0
        %1221 = vmatpush1.msra.mxu0 0.0
        %1222 = vmatprep.subr.mxu0 0.0
        %1223 = vmatpush1.msra.mxu0 0.0
        %1224 = vmatprep.subr.mxu0 0.0
        %1225 = vmatpush1.msra.mxu0 0.0
        %1226 = vmatprep.subr.mxu0 0.0
        %1227 = vmatpush1.msra.mxu0 0.0
        %1228 = vmatprep.subr.mxu0 0.0
        %1229 = vmatpush1.msra.mxu0 0.0
        %1230 = vmatprep.mubr.f32.mxu0 0.0
        %1231 = vmatmul.mubr.f32.gmra.mrb[0].mxu0 %v1164
        %v1232 = vpop.f32.mrb[0].mxu0
        %v1233 = vadd.f32 0.0, %v1232
        %v1234 = vpop.f32.mrb[0].mxu0
        %1235 = vdwg.mxu0
        %v1237 = vsel %vm1073, %v1129, 0
        %1239 = vmatprep.subr.mxu0 0.0
        %1240 = vmatpush1.msra.mxu0 %v757
        %1241 = vmatprep.subr.mxu0 0.0
        %1242 = vmatpush1.msra.mxu0 0.0
        %1243 = vmatprep.subr.mxu0 0.0
        %1244 = vmatpush1.msra.mxu0 0.0
        %1245 = vmatprep.subr.mxu0 0.0
        %1246 = vmatpush1.msra.mxu0 0.0
        %1247 = vmatprep.subr.mxu0 0.0
        %1248 = vmatpush1.msra.mxu0 0.0
        %1249 = vmatprep.subr.mxu0 0.0
        %1250 = vmatpush1.msra.mxu0 0.0
        %1251 = vmatprep.subr.mxu0 0.0
        %1252 = vmatpush1.msra.mxu0 0.0
        %1253 = vmatprep.subr.mxu0 0.0
        %1254 = vmatpush1.msra.mxu0 0.0
        %1255 = vmatprep.subr.mxu0 0.0
        %1256 = vmatpush1.msra.mxu0 0.0
        %1257 = vmatprep.subr.mxu0 0.0
        %1258 = vmatpush1.msra.mxu0 0.0
        %1259 = vmatprep.subr.mxu0 0.0
        %1260 = vmatpush1.msra.mxu0 0.0
        %1261 = vmatprep.subr.mxu0 0.0
        %1262 = vmatpush1.msra.mxu0 0.0
        %1263 = vmatprep.subr.mxu0 0.0
        %1264 = vmatpush1.msra.mxu0 0.0
        %1265 = vmatprep.subr.mxu0 0.0
        %1266 = vmatpush1.msra.mxu0 0.0
        %1267 = vmatprep.subr.mxu0 0.0
        %1268 = vmatpush1.msra.mxu0 0.0
        %1269 = vmatprep.subr.mxu0 0.0
        %1270 = vmatpush1.msra.mxu0 0.0
        %1271 = vmatprep.subr.mxu0 0.0
        %1272 = vmatpush1.msra.mxu0 0.0
        %1273 = vmatprep.subr.mxu0 0.0
        %1274 = vmatpush1.msra.mxu0 0.0
        %1275 = vmatprep.subr.mxu0 0.0
        %1276 = vmatpush1.msra.mxu0 0.0
        %1277 = vmatprep.subr.mxu0 0.0
        %1278 = vmatpush1.msra.mxu0 0.0
        %1279 = vmatprep.subr.mxu0 0.0
        %1280 = vmatpush1.msra.mxu0 0.0
        %1281 = vmatprep.subr.mxu0 0.0
        %1282 = vmatpush1.msra.mxu0 0.0
        %1283 = vmatprep.subr.mxu0 0.0
        %1284 = vmatpush1.msra.mxu0 0.0
        %1285 = vmatprep.subr.mxu0 0.0
        %1286 = vmatpush1.msra.mxu0 0.0
        %1287 = vmatprep.subr.mxu0 0.0
        %1288 = vmatpush1.msra.mxu0 0.0
        %1289 = vmatprep.subr.mxu0 0.0
        %1290 = vmatpush1.msra.mxu0 0.0
        %1291 = vmatprep.subr.mxu0 0.0
        %1292 = vmatpush1.msra.mxu0 0.0
        %1293 = vmatprep.subr.mxu0 0.0
        %1294 = vmatpush1.msra.mxu0 0.0
        %1295 = vmatprep.subr.mxu0 0.0
        %1296 = vmatpush1.msra.mxu0 0.0
        %1297 = vmatprep.subr.mxu0 0.0
        %1298 = vmatpush1.msra.mxu0 0.0
        %1299 = vmatprep.subr.mxu0 0.0
        %1300 = vmatpush1.msra.mxu0 0.0
        %1301 = vmatprep.subr.mxu0 0.0
        %1302 = vmatpush1.msra.mxu0 0.0
        %1303 = vmatprep.mubr.f32.mxu0 0.0
        %1304 = vmatmul.mubr.f32.gmra.mrb[0].mxu0 %v1237
        %v1305 = vpop.f32.mrb[0].mxu0
        %v1306 = vadd.f32 0.0, %v1305
        %v1307 = vpop.f32.mrb[0].mxu0
        %1308 = vdwg.mxu0
        %v1310 = vsel %vm1073, %v1131, 0
        %1312 = vmatprep.subr.mxu0 0.0
        %1313 = vmatpush1.msra.mxu0 %v758
        %1314 = vmatprep.subr.mxu0 0.0
        %1315 = vmatpush1.msra.mxu0 0.0
        %1316 = vmatprep.subr.mxu0 0.0
        %1317 = vmatpush1.msra.mxu0 0.0
        %1318 = vmatprep.subr.mxu0 0.0
        %1319 = vmatpush1.msra.mxu0 0.0
        %1320 = vmatprep.subr.mxu0 0.0
        %1321 = vmatpush1.msra.mxu0 0.0
        %1322 = vmatprep.subr.mxu0 0.0
        %1323 = vmatpush1.msra.mxu0 0.0
        %1324 = vmatprep.subr.mxu0 0.0
        %1325 = vmatpush1.msra.mxu0 0.0
        %1326 = vmatprep.subr.mxu0 0.0
        %1327 = vmatpush1.msra.mxu0 0.0
        %1328 = vmatprep.subr.mxu0 0.0
        %1329 = vmatpush1.msra.mxu0 0.0
        %1330 = vmatprep.subr.mxu0 0.0
        %1331 = vmatpush1.msra.mxu0 0.0
        %1332 = vmatprep.subr.mxu0 0.0
        %1333 = vmatpush1.msra.mxu0 0.0
        %1334 = vmatprep.subr.mxu0 0.0
        %1335 = vmatpush1.msra.mxu0 0.0
        %1336 = vmatprep.subr.mxu0 0.0
        %1337 = vmatpush1.msra.mxu0 0.0
        %1338 = vmatprep.subr.mxu0 0.0
        %1339 = vmatpush1.msra.mxu0 0.0
        %1340 = vmatprep.subr.mxu0 0.0
        %1341 = vmatpush1.msra.mxu0 0.0
        %1342 = vmatprep.subr.mxu0 0.0
        %1343 = vmatpush1.msra.mxu0 0.0
        %1344 = vmatprep.subr.mxu0 0.0
        %1345 = vmatpush1.msra.mxu0 0.0
        %1346 = vmatprep.subr.mxu0 0.0
        %1347 = vmatpush1.msra.mxu0 0.0
        %1348 = vmatprep.subr.mxu0 0.0
        %1349 = vmatpush1.msra.mxu0 0.0
        %1350 = vmatprep.subr.mxu0 0.0
        %1351 = vmatpush1.msra.mxu0 0.0
        %1352 = vmatprep.subr.mxu0 0.0
        %1353 = vmatpush1.msra.mxu0 0.0
        %1354 = vmatprep.subr.mxu0 0.0
        %1355 = vmatpush1.msra.mxu0 0.0
        %1356 = vmatprep.subr.mxu0 0.0
        %1357 = vmatpush1.msra.mxu0 0.0
        %1358 = vmatprep.subr.mxu0 0.0
        %1359 = vmatpush1.msra.mxu0 0.0
        %1360 = vmatprep.subr.mxu0 0.0
        %1361 = vmatpush1.msra.mxu0 0.0
        %1362 = vmatprep.subr.mxu0 0.0
        %1363 = vmatpush1.msra.mxu0 0.0
        %1364 = vmatprep.subr.mxu0 0.0
        %1365 = vmatpush1.msra.mxu0 0.0
        %1366 = vmatprep.subr.mxu0 0.0
        %1367 = vmatpush1.msra.mxu0 0.0
        %1368 = vmatprep.subr.mxu0 0.0
        %1369 = vmatpush1.msra.mxu0 0.0
        %1370 = vmatprep.subr.mxu0 0.0
        %1371 = vmatpush1.msra.mxu0 0.0
        %1372 = vmatprep.subr.mxu0 0.0
        %1373 = vmatpush1.msra.mxu0 0.0
        %1374 = vmatprep.subr.mxu0 0.0
        %1375 = vmatpush1.msra.mxu0 0.0
        %1376 = vmatprep.mubr.f32.mxu0 0.0
        %1377 = vmatmul.mubr.f32.gmra.mrb[0].mxu0 %v1310
        %v1378 = vpop.f32.mrb[0].mxu0
        %v1379 = vadd.f32 0.0, %v1378
        %v1380 = vpop.f32.mrb[0].mxu0
        %1381 = vdwg.mxu0
        %v1383 = vsel %vm1073, %v1133, 0
        %1385 = vmatprep.subr.mxu0 0.0
        %1386 = vmatpush1.msra.mxu0 %v759
        %1387 = vmatprep.subr.mxu0 0.0
        %1388 = vmatpush1.msra.mxu0 0.0
        %1389 = vmatprep.subr.mxu0 0.0
        %1390 = vmatpush1.msra.mxu0 0.0
        %1391 = vmatprep.subr.mxu0 0.0
        %1392 = vmatpush1.msra.mxu0 0.0
        %1393 = vmatprep.subr.mxu0 0.0
        %1394 = vmatpush1.msra.mxu0 0.0
        %1395 = vmatprep.subr.mxu0 0.0
        %1396 = vmatpush1.msra.mxu0 0.0
        %1397 = vmatprep.subr.mxu0 0.0
        %1398 = vmatpush1.msra.mxu0 0.0
        %1399 = vmatprep.subr.mxu0 0.0
        %1400 = vmatpush1.msra.mxu0 0.0
        %1401 = vmatprep.subr.mxu0 0.0
        %1402 = vmatpush1.msra.mxu0 0.0
        %1403 = vmatprep.subr.mxu0 0.0
        %1404 = vmatpush1.msra.mxu0 0.0
        %1405 = vmatprep.subr.mxu0 0.0
        %1406 = vmatpush1.msra.mxu0 0.0
        %1407 = vmatprep.subr.mxu0 0.0
        %1408 = vmatpush1.msra.mxu0 0.0
        %1409 = vmatprep.subr.mxu0 0.0
        %1410 = vmatpush1.msra.mxu0 0.0
        %1411 = vmatprep.subr.mxu0 0.0
        %1412 = vmatpush1.msra.mxu0 0.0
        %1413 = vmatprep.subr.mxu0 0.0
        %1414 = vmatpush1.msra.mxu0 0.0
        %1415 = vmatprep.subr.mxu0 0.0
        %1416 = vmatpush1.msra.mxu0 0.0
        %1417 = vmatprep.subr.mxu0 0.0
        %1418 = vmatpush1.msra.mxu0 0.0
        %1419 = vmatprep.subr.mxu0 0.0
        %1420 = vmatpush1.msra.mxu0 0.0
        %1421 = vmatprep.subr.mxu0 0.0
        %1422 = vmatpush1.msra.mxu0 0.0
        %1423 = vmatprep.subr.mxu0 0.0
        %1424 = vmatpush1.msra.mxu0 0.0
        %1425 = vmatprep.subr.mxu0 0.0
        %1426 = vmatpush1.msra.mxu0 0.0
        %1427 = vmatprep.subr.mxu0 0.0
        %1428 = vmatpush1.msra.mxu0 0.0
        %1429 = vmatprep.subr.mxu0 0.0
        %1430 = vmatpush1.msra.mxu0 0.0
        %1431 = vmatprep.subr.mxu0 0.0
        %1432 = vmatpush1.msra.mxu0 0.0
        %1433 = vmatprep.subr.mxu0 0.0
        %1434 = vmatpush1.msra.mxu0 0.0
        %1435 = vmatprep.subr.mxu0 0.0
        %1436 = vmatpush1.msra.mxu0 0.0
        %1437 = vmatprep.subr.mxu0 0.0
        %1438 = vmatpush1.msra.mxu0 0.0
        %1439 = vmatprep.subr.mxu0 0.0
        %1440 = vmatpush1.msra.mxu0 0.0
        %1441 = vmatprep.subr.mxu0 0.0
        %1442 = vmatpush1.msra.mxu0 0.0
        %1443 = vmatprep.subr.mxu0 0.0
        %1444 = vmatpush1.msra.mxu0 0.0
        %1445 = vmatprep.subr.mxu0 0.0
        %1446 = vmatpush1.msra.mxu0 0.0
        %1447 = vmatprep.subr.mxu0 0.0
        %1448 = vmatpush1.msra.mxu0 0.0
        %1449 = vmatprep.mubr.f32.mxu0 0.0
        %1450 = vmatmul.mubr.f32.gmra.mrb[0].mxu0 %v1383
        %v1451 = vpop.f32.mrb[0].mxu0
        %v1452 = vadd.f32 0.0, %v1451
        %v1453 = vpop.f32.mrb[0].mxu0
        %1454 = vdwg.mxu0
        %v1455 = vld [vmem:[#allocation5] sm:$0xff]
        %v1456 = vld [vmem:[#allocation5 + $0x8] sm:$0xff]
        %v1457 = vld [vmem:[#allocation5 + $0x10] sm:$0xff]
        %v1458 = vld [vmem:[#allocation5 + $0x18] sm:$0xff]
        %1460 = vset.pattern.permute.xlu0 0
        %1461 = vperm.xlu0 %1460, %v1095
        %v1462 = vpop.permute.xlu0 %1461
        %1465 = vset.pattern.permute.xlu0 0
        %1466 = vperm.xlu0 %1465, %v1097
        %v1467 = vpop.permute.xlu0 %1466
        %1470 = vset.pattern.permute.xlu0 0
        %1471 = vperm.xlu0 %1470, %v1099
        %v1472 = vpop.permute.xlu0 %1471
        %1475 = vset.pattern.permute.xlu0 0
        %1476 = vperm.xlu0 %1475, %v1101
        %v1477 = vpop.permute.xlu0 %1476
        %v1479 = vmul.f32 %v1462, %v1455
        %v1480 = vmul.f32 %v1467, %v1456
        %v1481 = vmul.f32 %v1472, %v1457
        %v1482 = vmul.f32 %v1477, %v1458
        %v1483 = vadd.f32 %v1479, %v1233
        %v1484 = vadd.f32 %v1480, %v1306
        %v1485 = vadd.f32 %v1481, %v1379
        %v1486 = vadd.f32 %v1482, %v1452
        %1487 = vst.msk [vmem:[#allocation5] sm:$0xff] %vm764, %v1483
        %1488 = vst.msk [vmem:[#allocation5 + $0x8] sm:$0xff] %vm764, %v1484
        %1489 = vst.msk [vmem:[#allocation5 + $0x10] sm:$0xff] %vm764, %v1485
        %1490 = vst.msk [vmem:[#allocation5 + $0x18] sm:$0xff] %vm764, %v1486
        %1491 = vst.msk [vmem:[#allocation3] sm:$0xff] %vm1158, %v1086
        %1492 = vst.msk [vmem:[#allocation3 + $0x8] sm:$0xff] %vm1158, %v1087
        %1493 = vst.msk [vmem:[#allocation3 + $0x10] sm:$0xff] %vm1158, %v1088
        %1494 = vst.msk [vmem:[#allocation3 + $0x18] sm:$0xff] %vm1158, %v1089
      $region40: #{causal_self_attention.4} parent=31 // pred_fallthru
        _
      %s1495 = sadd.s32 %s286, 7
      %p1496 = scmp.le.s32.totalorder %s287, %s1495
      %p1497 = scmp.gt.s32.totalorder %s461, %s286
      %p1498 = pnand %p1496, %p1497
      %p1499 = pneg %p1498
      // Predicated region
      $region41: #{causal_self_attention.4} parent=31 // pred_check
        _
      $region42: #{causal_self_attention.4} parent=31 // pred_check_branch
        %1501 = sbr.rel (%p1498) target = $region44
      $region43: #{causal_self_attention.4} parent=31 // pred_region
        %v1502 = vld [vmem:[%s267] sm:$0xff]
        %1504 = vrot.lane.b32.xlu0 %v1502, 96
        %v1505 = vpop.permute.xlu0 %1504
        %1507 = vrot.lane.b32.xlu0 %v1502, 64
        %v1508 = vpop.permute.xlu0 %1507
        %1510 = vrot.lane.b32.xlu0 %v1502, 32
        %v1511 = vpop.permute.xlu0 %1510
        %v1513 = vcombine.low %v1502, %v1508
        %v1514 = vcombine.high %v1502, %v1508
        %v1516 = vunpack.c.l.s4 1983009808
        %v1517 = vunpack.c.0.s8 %v1516
        %v1518 = vlaneseq
        %v1519 = vshrl.u32 %v1518, 7
        %v1520 = vsub.s32 %v1517, %v1519
        %v1521 = vrot.slane %v1513, %v1520
        %v1523 = vunpack.c.l.s4 1983009808
        %v1524 = vunpack.c.0.s8 %v1523
        %v1525 = vlaneseq
        %v1526 = vshrl.u32 %v1525, 7
        %v1527 = vsub.s32 %v1524, %v1526
        %v1528 = vrot.slane %v1514, %v1527
        %v1529 = vcombine.low %v1505, %v1511
        %v1530 = vcombine.high %v1505, %v1511
        %v1532 = vunpack.c.l.s4 1983009808
        %v1533 = vunpack.c.0.s8 %v1532
        %v1534 = vlaneseq
        %v1535 = vshrl.u32 %v1534, 7
        %v1536 = vsub.s32 %v1533, %v1535
        %v1537 = vrot.slane %v1529, %v1536
        %v1539 = vunpack.c.l.s4 1983009808
        %v1540 = vunpack.c.0.s8 %v1539
        %v1541 = vlaneseq
        %v1542 = vshrl.u32 %v1541, 7
        %v1543 = vsub.s32 %v1540, %v1542
        %v1544 = vrot.slane %v1530, %v1543
        %v1545 = vcombine.low %v1521, %v1537
        %v1546 = vcombine.high %v1521, %v1537
        %v1548 = vunpack.c.l.s4 1934713408
        %v1549 = vunpack.c.0.s8 %v1548
        %v1550 = vlaneseq
        %v1551 = vshrl.u32 %v1550, 7
        %v1552 = vsub.s32 %v1549, %v1551
        %v1553 = vrot.slane %v1545, %v1552
        %v1555 = vunpack.c.l.s4 1934713408
        %v1556 = vunpack.c.0.s8 %v1555
        %v1557 = vlaneseq
        %v1558 = vshrl.u32 %v1557, 7
        %v1559 = vsub.s32 %v1556, %v1558
        %v1560 = vrot.slane %v1546, %v1559
        %v1561 = vcombine.low %v1528, %v1544
        %v1562 = vcombine.high %v1528, %v1544
        %v1564 = vunpack.c.l.s4 1934713408
        %v1565 = vunpack.c.0.s8 %v1564
        %v1566 = vlaneseq
        %v1567 = vshrl.u32 %v1566, 7
        %v1568 = vsub.s32 %v1565, %v1567
        %v1569 = vrot.slane %v1561, %v1568
        %v1571 = vunpack.c.l.s4 1934713408
        %v1572 = vunpack.c.0.s8 %v1571
        %v1573 = vlaneseq
        %v1574 = vshrl.u32 %v1573, 7
        %v1575 = vsub.s32 %v1572, %v1574
        %v1576 = vrot.slane %v1562, %v1575
        %v1577 = vcombine.high %v1553, 0.0
        %v1578 = vcombine.high %v1560, 0.0
        %v1579 = vcombine.high %v1569, 0.0
        %v1580 = vcombine.high %v1576, 0.0
        %v1581 = vcombine.low %v1553, %v1560
        %v1583 = vunpack.c.l.s4 1983009808
        %v1584 = vunpack.c.0.s8 %v1583
        %v1585 = vlaneseq
        %v1586 = vshrl.u32 %v1585, 7
        %v1587 = vsub.s32 %v1584, %v1586
        %v1588 = vrot.slane %v1581, %v1587
        %v1589 = vcombine.low %v1577, %v1578
        %v1591 = vunpack.c.l.s4 1983009808
        %v1592 = vunpack.c.0.s8 %v1591
        %v1593 = vlaneseq
        %v1594 = vshrl.u32 %v1593, 7
        %v1595 = vsub.s32 %v1592, %v1594
        %v1596 = vrot.slane %v1589, %v1595
        %v1597 = vcombine.low %v1569, %v1576
        %v1599 = vunpack.c.l.s4 1983009808
        %v1600 = vunpack.c.0.s8 %v1599
        %v1601 = vlaneseq
        %v1602 = vshrl.u32 %v1601, 7
        %v1603 = vsub.s32 %v1600, %v1602
        %v1604 = vrot.slane %v1597, %v1603
        %v1605 = vcombine.low %v1579, %v1580
        %v1607 = vunpack.c.l.s4 1983009808
        %v1608 = vunpack.c.0.s8 %v1607
        %v1609 = vlaneseq
        %v1610 = vshrl.u32 %v1609, 7
        %v1611 = vsub.s32 %v1608, %v1610
        %v1612 = vrot.slane %v1605, %v1611
        %v1613 = vcombine.low %v1588, %v1596
        %v1614 = vcombine.high %v1588, %v1596
        %v1616 = vunpack.c.l.s4 1934713408
        %v1617 = vunpack.c.0.s8 %v1616
        %v1618 = vlaneseq
        %v1619 = vshrl.u32 %v1618, 7
        %v1620 = vsub.s32 %v1617, %v1619
        %v1621 = vrot.slane %v1613, %v1620
        %v1623 = vunpack.c.l.s4 1934713408
        %v1624 = vunpack.c.0.s8 %v1623
        %v1625 = vlaneseq
        %v1626 = vshrl.u32 %v1625, 7
        %v1627 = vsub.s32 %v1624, %v1626
        %v1628 = vrot.slane %v1614, %v1627
        %v1629 = vcombine.low %v1604, %v1612
        %v1630 = vcombine.high %v1604, %v1612
        %v1632 = vunpack.c.l.s4 1934713408
        %v1633 = vunpack.c.0.s8 %v1632
        %v1634 = vlaneseq
        %v1635 = vshrl.u32 %v1634, 7
        %v1636 = vsub.s32 %v1633, %v1635
        %v1637 = vrot.slane %v1629, %v1636
        %v1639 = vunpack.c.l.s4 1934713408
        %v1640 = vunpack.c.0.s8 %v1639
        %v1641 = vlaneseq
        %v1642 = vshrl.u32 %v1641, 7
        %v1643 = vsub.s32 %v1640, %v1642
        %v1644 = vrot.slane %v1630, %v1643
        %v1645 = vcombine.low %v1621, %v1637
        %v1646 = vcombine.high %v1621, %v1637
        %v1647 = vcombine.low %v1628, %v1644
        %v1648 = vcombine.high %v1628, %v1644
        %v1649 = vld [vmem:[%s277] sm:$0xff]
        %1651 = vrot.lane.b32.xlu0 %v1649, 96
        %v1652 = vpop.permute.xlu0 %1651
        %1654 = vrot.lane.b32.xlu0 %v1649, 64
        %v1655 = vpop.permute.xlu0 %1654
        %1657 = vrot.lane.b32.xlu0 %v1649, 32
        %v1658 = vpop.permute.xlu0 %1657
        %v1660 = vcombine.low %v1649, %v1655
        %v1661 = vcombine.high %v1649, %v1655
        %v1663 = vunpack.c.l.s4 1983009808
        %v1664 = vunpack.c.0.s8 %v1663
        %v1665 = vlaneseq
        %v1666 = vshrl.u32 %v1665, 7
        %v1667 = vsub.s32 %v1664, %v1666
        %v1668 = vrot.slane %v1660, %v1667
        %v1670 = vunpack.c.l.s4 1983009808
        %v1671 = vunpack.c.0.s8 %v1670
        %v1672 = vlaneseq
        %v1673 = vshrl.u32 %v1672, 7
        %v1674 = vsub.s32 %v1671, %v1673
        %v1675 = vrot.slane %v1661, %v1674
        %v1676 = vcombine.low %v1652, %v1658
        %v1677 = vcombine.high %v1652, %v1658
        %v1679 = vunpack.c.l.s4 1983009808
        %v1680 = vunpack.c.0.s8 %v1679
        %v1681 = vlaneseq
        %v1682 = vshrl.u32 %v1681, 7
        %v1683 = vsub.s32 %v1680, %v1682
        %v1684 = vrot.slane %v1676, %v1683
        %v1686 = vunpack.c.l.s4 1983009808
        %v1687 = vunpack.c.0.s8 %v1686
        %v1688 = vlaneseq
        %v1689 = vshrl.u32 %v1688, 7
        %v1690 = vsub.s32 %v1687, %v1689
        %v1691 = vrot.slane %v1677, %v1690
        %v1692 = vcombine.low %v1668, %v1684
        %v1693 = vcombine.high %v1668, %v1684
        %v1695 = vunpack.c.l.s4 1934713408
        %v1696 = vunpack.c.0.s8 %v1695
        %v1697 = vlaneseq
        %v1698 = vshrl.u32 %v1697, 7
        %v1699 = vsub.s32 %v1696, %v1698
        %v1700 = vrot.slane %v1692, %v1699
        %v1702 = vunpack.c.l.s4 1934713408
        %v1703 = vunpack.c.0.s8 %v1702
        %v1704 = vlaneseq
        %v1705 = vshrl.u32 %v1704, 7
        %v1706 = vsub.s32 %v1703, %v1705
        %v1707 = vrot.slane %v1693, %v1706
        %v1708 = vcombine.low %v1675, %v1691
        %v1709 = vcombine.high %v1675, %v1691
        %v1711 = vunpack.c.l.s4 1934713408
        %v1712 = vunpack.c.0.s8 %v1711
        %v1713 = vlaneseq
        %v1714 = vshrl.u32 %v1713, 7
        %v1715 = vsub.s32 %v1712, %v1714
        %v1716 = vrot.slane %v1708, %v1715
        %v1718 = vunpack.c.l.s4 1934713408
        %v1719 = vunpack.c.0.s8 %v1718
        %v1720 = vlaneseq
        %v1721 = vshrl.u32 %v1720, 7
        %v1722 = vsub.s32 %v1719, %v1721
        %v1723 = vrot.slane %v1709, %v1722
        %v1724 = vcombine.high %v1700, 0.0
        %v1725 = vcombine.high %v1707, 0.0
        %v1726 = vcombine.high %v1716, 0.0
        %v1727 = vcombine.high %v1723, 0.0
        %v1728 = vcombine.low %v1700, %v1707
        %v1730 = vunpack.c.l.s4 1983009808
        %v1731 = vunpack.c.0.s8 %v1730
        %v1732 = vlaneseq
        %v1733 = vshrl.u32 %v1732, 7
        %v1734 = vsub.s32 %v1731, %v1733
        %v1735 = vrot.slane %v1728, %v1734
        %v1736 = vcombine.low %v1724, %v1725
        %v1738 = vunpack.c.l.s4 1983009808
        %v1739 = vunpack.c.0.s8 %v1738
        %v1740 = vlaneseq
        %v1741 = vshrl.u32 %v1740, 7
        %v1742 = vsub.s32 %v1739, %v1741
        %v1743 = vrot.slane %v1736, %v1742
        %v1744 = vcombine.low %v1716, %v1723
        %v1746 = vunpack.c.l.s4 1983009808
        %v1747 = vunpack.c.0.s8 %v1746
        %v1748 = vlaneseq
        %v1749 = vshrl.u32 %v1748, 7
        %v1750 = vsub.s32 %v1747, %v1749
        %v1751 = vrot.slane %v1744, %v1750
        %v1752 = vcombine.low %v1726, %v1727
        %v1754 = vunpack.c.l.s4 1983009808
        %v1755 = vunpack.c.0.s8 %v1754
        %v1756 = vlaneseq
        %v1757 = vshrl.u32 %v1756, 7
        %v1758 = vsub.s32 %v1755, %v1757
        %v1759 = vrot.slane %v1752, %v1758
        %v1760 = vcombine.low %v1735, %v1743
        %v1761 = vcombine.high %v1735, %v1743
        %v1763 = vunpack.c.l.s4 1934713408
        %v1764 = vunpack.c.0.s8 %v1763
        %v1765 = vlaneseq
        %v1766 = vshrl.u32 %v1765, 7
        %v1767 = vsub.s32 %v1764, %v1766
        %v1768 = vrot.slane %v1760, %v1767
        %v1770 = vunpack.c.l.s4 1934713408
        %v1771 = vunpack.c.0.s8 %v1770
        %v1772 = vlaneseq
        %v1773 = vshrl.u32 %v1772, 7
        %v1774 = vsub.s32 %v1771, %v1773
        %v1775 = vrot.slane %v1761, %v1774
        %v1776 = vcombine.low %v1751, %v1759
        %v1777 = vcombine.high %v1751, %v1759
        %v1779 = vunpack.c.l.s4 1934713408
        %v1780 = vunpack.c.0.s8 %v1779
        %v1781 = vlaneseq
        %v1782 = vshrl.u32 %v1781, 7
        %v1783 = vsub.s32 %v1780, %v1782
        %v1784 = vrot.slane %v1776, %v1783
        %v1786 = vunpack.c.l.s4 1934713408
        %v1787 = vunpack.c.0.s8 %v1786
        %v1788 = vlaneseq
        %v1789 = vshrl.u32 %v1788, 7
        %v1790 = vsub.s32 %v1787, %v1789
        %v1791 = vrot.slane %v1777, %v1790
        %v1792 = vcombine.low %v1768, %v1784
        %v1793 = vcombine.high %v1768, %v1784
        %v1794 = vcombine.low %v1775, %v1791
        %v1795 = vcombine.high %v1775, %v1791
        %v1796 = vld [vmem:[#allocation2] sm:$0xff]
        %v1797 = vld [vmem:[#allocation2 + $0x8] sm:$0xff]
        %v1798 = vld [vmem:[#allocation2 + $0x10] sm:$0xff]
        %v1799 = vld [vmem:[#allocation2 + $0x18] sm:$0xff]
        %vm1800 = vcmask 261120
        %v1802 = vsel %vm1800, %v1796, 0
        %v1805 = vsel %vm1800, %v1645, 0
        %1807 = vmatprep.subr.mxu0 0.0
        %1808 = vmatpush1.xpose.msra.mxu0 %v1805
        %1809 = vmatprep.subr.mxu0 0.0
        %1810 = vmatpush1.xpose.msra.mxu0 0.0
        %1811 = vmatprep.subr.mxu0 0.0
        %1812 = vmatpush1.xpose.msra.mxu0 0.0
        %1813 = vmatprep.subr.mxu0 0.0
        %1814 = vmatpush1.xpose.msra.mxu0 0.0
        %1815 = vmatprep.subr.mxu0 0.0
        %1816 = vmatpush1.xpose.msra.mxu0 0.0
        %1817 = vmatprep.subr.mxu0 0.0
        %1818 = vmatpush1.xpose.msra.mxu0 0.0
        %1819 = vmatprep.subr.mxu0 0.0
        %1820 = vmatpush1.xpose.msra.mxu0 0.0
        %1821 = vmatprep.subr.mxu0 0.0
        %1822 = vmatpush1.xpose.msra.mxu0 0.0
        %1823 = vmatprep.subr.mxu0 0.0
        %1824 = vmatpush1.xpose.msra.mxu0 0.0
        %1825 = vmatprep.subr.mxu0 0.0
        %1826 = vmatpush1.xpose.msra.mxu0 0.0
        %1827 = vmatprep.subr.mxu0 0.0
        %1828 = vmatpush1.xpose.msra.mxu0 0.0
        %1829 = vmatprep.subr.mxu0 0.0
        %1830 = vmatpush1.xpose.msra.mxu0 0.0
        %1831 = vmatprep.subr.mxu0 0.0
        %1832 = vmatpush1.xpose.msra.mxu0 0.0
        %1833 = vmatprep.subr.mxu0 0.0
        %1834 = vmatpush1.xpose.msra.mxu0 0.0
        %1835 = vmatprep.subr.mxu0 0.0
        %1836 = vmatpush1.xpose.msra.mxu0 0.0
        %1837 = vmatprep.subr.mxu0 0.0
        %1838 = vmatpush1.xpose.msra.mxu0 0.0
        %1839 = vmatprep.subr.mxu0 0.0
        %1840 = vmatpush1.xpose.msra.mxu0 0.0
        %1841 = vmatprep.subr.mxu0 0.0
        %1842 = vmatpush1.xpose.msra.mxu0 0.0
        %1843 = vmatprep.subr.mxu0 0.0
        %1844 = vmatpush1.xpose.msra.mxu0 0.0
        %1845 = vmatprep.subr.mxu0 0.0
        %1846 = vmatpush1.xpose.msra.mxu0 0.0
        %1847 = vmatprep.subr.mxu0 0.0
        %1848 = vmatpush1.xpose.msra.mxu0 0.0
        %1849 = vmatprep.subr.mxu0 0.0
        %1850 = vmatpush1.xpose.msra.mxu0 0.0
        %1851 = vmatprep.subr.mxu0 0.0
        %1852 = vmatpush1.xpose.msra.mxu0 0.0
        %1853 = vmatprep.subr.mxu0 0.0
        %1854 = vmatpush1.xpose.msra.mxu0 0.0
        %1855 = vmatprep.subr.mxu0 0.0
        %1856 = vmatpush1.xpose.msra.mxu0 0.0
        %1857 = vmatprep.subr.mxu0 0.0
        %1858 = vmatpush1.xpose.msra.mxu0 0.0
        %1859 = vmatprep.subr.mxu0 0.0
        %1860 = vmatpush1.xpose.msra.mxu0 0.0
        %1861 = vmatprep.subr.mxu0 0.0
        %1862 = vmatpush1.xpose.msra.mxu0 0.0
        %1863 = vmatprep.subr.mxu0 0.0
        %1864 = vmatpush1.xpose.msra.mxu0 0.0
        %1865 = vmatprep.subr.mxu0 0.0
        %1866 = vmatpush1.xpose.msra.mxu0 0.0
        %1867 = vmatprep.subr.mxu0 0.0
        %1868 = vmatpush1.xpose.msra.mxu0 0.0
        %1869 = vmatprep.subr.mxu0 0.0
        %1870 = vmatpush1.xpose.msra.mxu0 0.0
        %1871 = vmatprep.mubr.f32.mxu0 0.0
        %1872 = vmatmul.mubr.f32.gmra.mrb[0].mxu0 %v1802
        %v1873 = vpop.f32.mrb[0].mxu0
        %v1874 = vadd.f32 0.0, %v1873
        %v1875 = vpop.f32.mrb[0].mxu0
        %1876 = vdwg.mxu0
        %v1878 = vsel %vm1800, %v1797, 0
        %v1881 = vsel %vm1800, %v1646, 0
        %1883 = vmatprep.subr.mxu0 0.0
        %1884 = vmatpush1.xpose.msra.mxu0 %v1881
        %1885 = vmatprep.subr.mxu0 0.0
        %1886 = vmatpush1.xpose.msra.mxu0 0.0
        %1887 = vmatprep.subr.mxu0 0.0
        %1888 = vmatpush1.xpose.msra.mxu0 0.0
        %1889 = vmatprep.subr.mxu0 0.0
        %1890 = vmatpush1.xpose.msra.mxu0 0.0
        %1891 = vmatprep.subr.mxu0 0.0
        %1892 = vmatpush1.xpose.msra.mxu0 0.0
        %1893 = vmatprep.subr.mxu0 0.0
        %1894 = vmatpush1.xpose.msra.mxu0 0.0
        %1895 = vmatprep.subr.mxu0 0.0
        %1896 = vmatpush1.xpose.msra.mxu0 0.0
        %1897 = vmatprep.subr.mxu0 0.0
        %1898 = vmatpush1.xpose.msra.mxu0 0.0
        %1899 = vmatprep.subr.mxu0 0.0
        %1900 = vmatpush1.xpose.msra.mxu0 0.0
        %1901 = vmatprep.subr.mxu0 0.0
        %1902 = vmatpush1.xpose.msra.mxu0 0.0
        %1903 = vmatprep.subr.mxu0 0.0
        %1904 = vmatpush1.xpose.msra.mxu0 0.0
        %1905 = vmatprep.subr.mxu0 0.0
        %1906 = vmatpush1.xpose.msra.mxu0 0.0
        %1907 = vmatprep.subr.mxu0 0.0
        %1908 = vmatpush1.xpose.msra.mxu0 0.0
        %1909 = vmatprep.subr.mxu0 0.0
        %1910 = vmatpush1.xpose.msra.mxu0 0.0
        %1911 = vmatprep.subr.mxu0 0.0
        %1912 = vmatpush1.xpose.msra.mxu0 0.0
        %1913 = vmatprep.subr.mxu0 0.0
        %1914 = vmatpush1.xpose.msra.mxu0 0.0
        %1915 = vmatprep.subr.mxu0 0.0
        %1916 = vmatpush1.xpose.msra.mxu0 0.0
        %1917 = vmatprep.subr.mxu0 0.0
        %1918 = vmatpush1.xpose.msra.mxu0 0.0
        %1919 = vmatprep.subr.mxu0 0.0
        %1920 = vmatpush1.xpose.msra.mxu0 0.0
        %1921 = vmatprep.subr.mxu0 0.0
        %1922 = vmatpush1.xpose.msra.mxu0 0.0
        %1923 = vmatprep.subr.mxu0 0.0
        %1924 = vmatpush1.xpose.msra.mxu0 0.0
        %1925 = vmatprep.subr.mxu0 0.0
        %1926 = vmatpush1.xpose.msra.mxu0 0.0
        %1927 = vmatprep.subr.mxu0 0.0
        %1928 = vmatpush1.xpose.msra.mxu0 0.0
        %1929 = vmatprep.subr.mxu0 0.0
        %1930 = vmatpush1.xpose.msra.mxu0 0.0
        %1931 = vmatprep.subr.mxu0 0.0
        %1932 = vmatpush1.xpose.msra.mxu0 0.0
        %1933 = vmatprep.subr.mxu0 0.0
        %1934 = vmatpush1.xpose.msra.mxu0 0.0
        %1935 = vmatprep.subr.mxu0 0.0
        %1936 = vmatpush1.xpose.msra.mxu0 0.0
        %1937 = vmatprep.subr.mxu0 0.0
        %1938 = vmatpush1.xpose.msra.mxu0 0.0
        %1939 = vmatprep.subr.mxu0 0.0
        %1940 = vmatpush1.xpose.msra.mxu0 0.0
        %1941 = vmatprep.subr.mxu0 0.0
        %1942 = vmatpush1.xpose.msra.mxu0 0.0
        %1943 = vmatprep.subr.mxu0 0.0
        %1944 = vmatpush1.xpose.msra.mxu0 0.0
        %1945 = vmatprep.subr.mxu0 0.0
        %1946 = vmatpush1.xpose.msra.mxu0 0.0
        %1947 = vmatprep.mubr.f32.mxu0 0.0
        %1948 = vmatmul.mubr.f32.gmra.mrb[0].mxu0 %v1878
        %v1949 = vpop.f32.mrb[0].mxu0
        %v1950 = vadd.f32 0.0, %v1949
        %v1951 = vpop.f32.mrb[0].mxu0
        %1952 = vdwg.mxu0
        %v1954 = vsel %vm1800, %v1798, 0
        %v1957 = vsel %vm1800, %v1647, 0
        %1959 = vmatprep.subr.mxu0 0.0
        %1960 = vmatpush1.xpose.msra.mxu0 %v1957
        %1961 = vmatprep.subr.mxu0 0.0
        %1962 = vmatpush1.xpose.msra.mxu0 0.0
        %1963 = vmatprep.subr.mxu0 0.0
        %1964 = vmatpush1.xpose.msra.mxu0 0.0
        %1965 = vmatprep.subr.mxu0 0.0
        %1966 = vmatpush1.xpose.msra.mxu0 0.0
        %1967 = vmatprep.subr.mxu0 0.0
        %1968 = vmatpush1.xpose.msra.mxu0 0.0
        %1969 = vmatprep.subr.mxu0 0.0
        %1970 = vmatpush1.xpose.msra.mxu0 0.0
        %1971 = vmatprep.subr.mxu0 0.0
        %1972 = vmatpush1.xpose.msra.mxu0 0.0
        %1973 = vmatprep.subr.mxu0 0.0
        %1974 = vmatpush1.xpose.msra.mxu0 0.0
        %1975 = vmatprep.subr.mxu0 0.0
        %1976 = vmatpush1.xpose.msra.mxu0 0.0
        %1977 = vmatprep.subr.mxu0 0.0
        %1978 = vmatpush1.xpose.msra.mxu0 0.0
        %1979 = vmatprep.subr.mxu0 0.0
        %1980 = vmatpush1.xpose.msra.mxu0 0.0
        %1981 = vmatprep.subr.mxu0 0.0
        %1982 = vmatpush1.xpose.msra.mxu0 0.0
        %1983 = vmatprep.subr.mxu0 0.0
        %1984 = vmatpush1.xpose.msra.mxu0 0.0
        %1985 = vmatprep.subr.mxu0 0.0
        %1986 = vmatpush1.xpose.msra.mxu0 0.0
        %1987 = vmatprep.subr.mxu0 0.0
        %1988 = vmatpush1.xpose.msra.mxu0 0.0
        %1989 = vmatprep.subr.mxu0 0.0
        %1990 = vmatpush1.xpose.msra.mxu0 0.0
        %1991 = vmatprep.subr.mxu0 0.0
        %1992 = vmatpush1.xpose.msra.mxu0 0.0
        %1993 = vmatprep.subr.mxu0 0.0
        %1994 = vmatpush1.xpose.msra.mxu0 0.0
        %1995 = vmatprep.subr.mxu0 0.0
        %1996 = vmatpush1.xpose.msra.mxu0 0.0
        %1997 = vmatprep.subr.mxu0 0.0
        %1998 = vmatpush1.xpose.msra.mxu0 0.0
        %1999 = vmatprep.subr.mxu0 0.0
        %2000 = vmatpush1.xpose.msra.mxu0 0.0
        %2001 = vmatprep.subr.mxu0 0.0
        %2002 = vmatpush1.xpose.msra.mxu0 0.0
        %2003 = vmatprep.subr.mxu0 0.0
        %2004 = vmatpush1.xpose.msra.mxu0 0.0
        %2005 = vmatprep.subr.mxu0 0.0
        %2006 = vmatpush1.xpose.msra.mxu0 0.0
        %2007 = vmatprep.subr.mxu0 0.0
        %2008 = vmatpush1.xpose.msra.mxu0 0.0
        %2009 = vmatprep.subr.mxu0 0.0
        %2010 = vmatpush1.xpose.msra.mxu0 0.0
        %2011 = vmatprep.subr.mxu0 0.0
        %2012 = vmatpush1.xpose.msra.mxu0 0.0
        %2013 = vmatprep.subr.mxu0 0.0
        %2014 = vmatpush1.xpose.msra.mxu0 0.0
        %2015 = vmatprep.subr.mxu0 0.0
        %2016 = vmatpush1.xpose.msra.mxu0 0.0
        %2017 = vmatprep.subr.mxu0 0.0
        %2018 = vmatpush1.xpose.msra.mxu0 0.0
        %2019 = vmatprep.subr.mxu0 0.0
        %2020 = vmatpush1.xpose.msra.mxu0 0.0
        %2021 = vmatprep.subr.mxu0 0.0
        %2022 = vmatpush1.xpose.msra.mxu0 0.0
        %2023 = vmatprep.mubr.f32.mxu0 0.0
        %2024 = vmatmul.mubr.f32.gmra.mrb[0].mxu0 %v1954
        %v2025 = vpop.f32.mrb[0].mxu0
        %v2026 = vadd.f32 0.0, %v2025
        %v2027 = vpop.f32.mrb[0].mxu0
        %2028 = vdwg.mxu0
        %v2030 = vsel %vm1800, %v1799, 0
        %v2033 = vsel %vm1800, %v1648, 0
        %2035 = vmatprep.subr.mxu0 0.0
        %2036 = vmatpush1.xpose.msra.mxu0 %v2033
        %2037 = vmatprep.subr.mxu0 0.0
        %2038 = vmatpush1.xpose.msra.mxu0 0.0
        %2039 = vmatprep.subr.mxu0 0.0
        %2040 = vmatpush1.xpose.msra.mxu0 0.0
        %2041 = vmatprep.subr.mxu0 0.0
        %2042 = vmatpush1.xpose.msra.mxu0 0.0
        %2043 = vmatprep.subr.mxu0 0.0
        %2044 = vmatpush1.xpose.msra.mxu0 0.0
        %2045 = vmatprep.subr.mxu0 0.0
        %2046 = vmatpush1.xpose.msra.mxu0 0.0
        %2047 = vmatprep.subr.mxu0 0.0
        %2048 = vmatpush1.xpose.msra.mxu0 0.0
        %2049 = vmatprep.subr.mxu0 0.0
        %2050 = vmatpush1.xpose.msra.mxu0 0.0
        %2051 = vmatprep.subr.mxu0 0.0
        %2052 = vmatpush1.xpose.msra.mxu0 0.0
        %2053 = vmatprep.subr.mxu0 0.0
        %2054 = vmatpush1.xpose.msra.mxu0 0.0
        %2055 = vmatprep.subr.mxu0 0.0
        %2056 = vmatpush1.xpose.msra.mxu0 0.0
        %2057 = vmatprep.subr.mxu0 0.0
        %2058 = vmatpush1.xpose.msra.mxu0 0.0
        %2059 = vmatprep.subr.mxu0 0.0
        %2060 = vmatpush1.xpose.msra.mxu0 0.0
        %2061 = vmatprep.subr.mxu0 0.0
        %2062 = vmatpush1.xpose.msra.mxu0 0.0
        %2063 = vmatprep.subr.mxu0 0.0
        %2064 = vmatpush1.xpose.msra.mxu0 0.0
        %2065 = vmatprep.subr.mxu0 0.0
        %2066 = vmatpush1.xpose.msra.mxu0 0.0
        %2067 = vmatprep.subr.mxu0 0.0
        %2068 = vmatpush1.xpose.msra.mxu0 0.0
        %2069 = vmatprep.subr.mxu0 0.0
        %2070 = vmatpush1.xpose.msra.mxu0 0.0
        %2071 = vmatprep.subr.mxu0 0.0
        %2072 = vmatpush1.xpose.msra.mxu0 0.0
        %2073 = vmatprep.subr.mxu0 0.0
        %2074 = vmatpush1.xpose.msra.mxu0 0.0
        %2075 = vmatprep.subr.mxu0 0.0
        %2076 = vmatpush1.xpose.msra.mxu0 0.0
        %2077 = vmatprep.subr.mxu0 0.0
        %2078 = vmatpush1.xpose.msra.mxu0 0.0
        %2079 = vmatprep.subr.mxu0 0.0
        %2080 = vmatpush1.xpose.msra.mxu0 0.0
        %2081 = vmatprep.subr.mxu0 0.0
        %2082 = vmatpush1.xpose.msra.mxu0 0.0
        %2083 = vmatprep.subr.mxu0 0.0
        %2084 = vmatpush1.xpose.msra.mxu0 0.0
        %2085 = vmatprep.subr.mxu0 0.0
        %2086 = vmatpush1.xpose.msra.mxu0 0.0
        %2087 = vmatprep.subr.mxu0 0.0
        %2088 = vmatpush1.xpose.msra.mxu0 0.0
        %2089 = vmatprep.subr.mxu0 0.0
        %2090 = vmatpush1.xpose.msra.mxu0 0.0
        %2091 = vmatprep.subr.mxu0 0.0
        %2092 = vmatpush1.xpose.msra.mxu0 0.0
        %2093 = vmatprep.subr.mxu0 0.0
        %2094 = vmatpush1.xpose.msra.mxu0 0.0
        %2095 = vmatprep.subr.mxu0 0.0
        %2096 = vmatpush1.xpose.msra.mxu0 0.0
        %2097 = vmatprep.subr.mxu0 0.0
        %2098 = vmatpush1.xpose.msra.mxu0 0.0
        %2099 = vmatprep.mubr.f32.mxu0 0.0
        %2100 = vmatmul.mubr.f32.gmra.mrb[0].mxu0 %v2030
        %v2101 = vpop.f32.mrb[0].mxu0
        %v2102 = vadd.f32 0.0, %v2101
        %v2103 = vpop.f32.mrb[0].mxu0
        %2104 = vdwg.mxu0
        %v2105 = vlaneseq
        %v2106 = vshrl.u32 %v2105, 7
        %v2107 = vstv %s286
        %v2108 = vadd.s32 %v2107, %v2106
        %v2109 = vlaneseq
        %v2110 = vand.u32 %v2109, 127
        %v2111 = vstv %s287
        %v2112 = vadd.s32 %v2111, %v2110
        %vm2113 = vcmp.le.s32.totalorder %v2112, %v2108
        %v2114 = vsel %vm2113, 1, 0
        %vm2115 = vcmp.eq.s32.totalorder %v2114, 1
        %v2116 = vsel %vm2115, %v1874, -1e+30
        %v2117 = vsel %vm2115, %v1950, -1e+30
        %v2118 = vsel %vm2115, %v2026, -1e+30
        %v2119 = vsel %vm2115, %v2102, -1e+30
        %v2120 = vld [vmem:[#allocation3] sm:$0xff]
        %v2121 = vld [vmem:[#allocation3 + $0x8] sm:$0xff]
        %v2122 = vld [vmem:[#allocation3 + $0x10] sm:$0xff]
        %v2123 = vld [vmem:[#allocation3 + $0x18] sm:$0xff]
        %vm2124 = vcmask 64512
        %v2125 = vsel %vm2124, %v2116, -inf
        %2126 = vmax.xlane.f32.xlu0 %v2125
        %v2127 = vpop.xlane.xlu0 %2126
        %v2128 = vsel %vm2124, %v2117, -inf
        %2129 = vmax.xlane.f32.xlu0 %v2128
        %v2130 = vpop.xlane.xlu0 %2129
        %v2131 = vsel %vm2124, %v2118, -inf
        %2132 = vmax.xlane.f32.xlu0 %v2131
        %v2133 = vpop.xlane.xlu0 %2132
        %v2134 = vsel %vm2124, %v2119, -inf
        %2135 = vmax.xlane.f32.xlu0 %v2134
        %v2136 = vpop.xlane.xlu0 %2135
        %v2137 = vmax.f32 %v2120, %v2127
        %v2138 = vmax.f32 %v2121, %v2130
        %v2139 = vmax.f32 %v2122, %v2133
        %v2140 = vmax.f32 %v2123, %v2136
        %v2141 = vsub.f32 %v2120, %v2137
        %v2142 = vsub.f32 %v2121, %v2138
        %v2143 = vsub.f32 %v2122, %v2139
        %v2144 = vsub.f32 %v2123, %v2140
        %v2145 = vmul.f32 %v2141, 1.442695
        %v2146 = vpow.pop %v2145
        %v2147 = vmul.f32 %v2142, 1.442695
        %v2148 = vpow.pop %v2147
        %v2149 = vmul.f32 %v2143, 1.442695
        %v2150 = vpow.pop %v2149
        %v2151 = vmul.f32 %v2144, 1.442695
        %v2152 = vpow.pop %v2151
        %2154 = vset.pattern.permute.xlu0 0
        %2155 = vperm.xlu0 %2154, %v2137
        %v2156 = vpop.permute.xlu0 %2155
        %2159 = vset.pattern.permute.xlu0 0
        %2160 = vperm.xlu0 %2159, %v2138
        %v2161 = vpop.permute.xlu0 %2160
        %2164 = vset.pattern.permute.xlu0 0
        %2165 = vperm.xlu0 %2164, %v2139
        %v2166 = vpop.permute.xlu0 %2165
        %2169 = vset.pattern.permute.xlu0 0
        %2170 = vperm.xlu0 %2169, %v2140
        %v2171 = vpop.permute.xlu0 %2170
        %v2173 = vsub.f32 %v2116, %v2156
        %v2174 = vsub.f32 %v2117, %v2161
        %v2175 = vsub.f32 %v2118, %v2166
        %v2176 = vsub.f32 %v2119, %v2171
        %v2177 = vmul.f32 %v2173, 1.442695
        %v2178 = vpow.pop %v2177
        %v2179 = vmul.f32 %v2174, 1.442695
        %v2180 = vpow.pop %v2179
        %v2181 = vmul.f32 %v2175, 1.442695
        %v2182 = vpow.pop %v2181
        %v2183 = vmul.f32 %v2176, 1.442695
        %v2184 = vpow.pop %v2183
        %v2185 = vld [vmem:[#allocation4] sm:$0xff]
        %v2186 = vld [vmem:[#allocation4 + $0x8] sm:$0xff]
        %v2187 = vld [vmem:[#allocation4 + $0x10] sm:$0xff]
        %v2188 = vld [vmem:[#allocation4 + $0x18] sm:$0xff]
        %v2189 = vmul.f32 %v2146, %v2185
        %v2190 = vmul.f32 %v2148, %v2186
        %v2191 = vmul.f32 %v2150, %v2187
        %v2192 = vmul.f32 %v2152, %v2188
        %v2193 = vsel %vm2124, %v2178, 0.0
        %2194 = vadd.xlane.f32.xlu0 %v2193
        %v2195 = vpop.xlane.xlu0 %2194
        %v2196 = vsel %vm2124, %v2180, 0.0
        %2197 = vadd.xlane.f32.xlu0 %v2196
        %v2198 = vpop.xlane.xlu0 %2197
        %v2199 = vsel %vm2124, %v2182, 0.0
        %2200 = vadd.xlane.f32.xlu0 %v2199
        %v2201 = vpop.xlane.xlu0 %2200
        %v2202 = vsel %vm2124, %v2184, 0.0
        %2203 = vadd.xlane.f32.xlu0 %v2202
        %v2204 = vpop.xlane.xlu0 %2203
        %v2205 = vadd.f32 %v2189, %v2195
        %v2206 = vadd.f32 %v2190, %v2198
        %v2207 = vadd.f32 %v2191, %v2201
        %v2208 = vadd.f32 %v2192, %v2204
        %vm2209 = vcmask 7168
        %2210 = vst.msk [vmem:[#allocation4] sm:$0xff] %vm2209, %v2205
        %2211 = vst.msk [vmem:[#allocation4 + $0x8] sm:$0xff] %vm2209, %v2206
        %2212 = vst.msk [vmem:[#allocation4 + $0x10] sm:$0xff] %vm2209, %v2207
        %2213 = vst.msk [vmem:[#allocation4 + $0x18] sm:$0xff] %vm2209, %v2208
        %v2215 = vsel %vm2124, %v2178, 0
        %2217 = vmatprep.subr.mxu0 0.0
        %2218 = vmatpush1.msra.mxu0 %v1792
        %2219 = vmatprep.subr.mxu0 0.0
        %2220 = vmatpush1.msra.mxu0 0.0
        %2221 = vmatprep.subr.mxu0 0.0
        %2222 = vmatpush1.msra.mxu0 0.0
        %2223 = vmatprep.subr.mxu0 0.0
        %2224 = vmatpush1.msra.mxu0 0.0
        %2225 = vmatprep.subr.mxu0 0.0
        %2226 = vmatpush1.msra.mxu0 0.0
        %2227 = vmatprep.subr.mxu0 0.0
        %2228 = vmatpush1.msra.mxu0 0.0
        %2229 = vmatprep.subr.mxu0 0.0
        %2230 = vmatpush1.msra.mxu0 0.0
        %2231 = vmatprep.subr.mxu0 0.0
        %2232 = vmatpush1.msra.mxu0 0.0
        %2233 = vmatprep.subr.mxu0 0.0
        %2234 = vmatpush1.msra.mxu0 0.0
        %2235 = vmatprep.subr.mxu0 0.0
        %2236 = vmatpush1.msra.mxu0 0.0
        %2237 = vmatprep.subr.mxu0 0.0
        %2238 = vmatpush1.msra.mxu0 0.0
        %2239 = vmatprep.subr.mxu0 0.0
        %2240 = vmatpush1.msra.mxu0 0.0
        %2241 = vmatprep.subr.mxu0 0.0
        %2242 = vmatpush1.msra.mxu0 0.0
        %2243 = vmatprep.subr.mxu0 0.0
        %2244 = vmatpush1.msra.mxu0 0.0
        %2245 = vmatprep.subr.mxu0 0.0
        %2246 = vmatpush1.msra.mxu0 0.0
        %2247 = vmatprep.subr.mxu0 0.0
        %2248 = vmatpush1.msra.mxu0 0.0
        %2249 = vmatprep.subr.mxu0 0.0
        %2250 = vmatpush1.msra.mxu0 0.0
        %2251 = vmatprep.subr.mxu0 0.0
        %2252 = vmatpush1.msra.mxu0 0.0
        %2253 = vmatprep.subr.mxu0 0.0
        %2254 = vmatpush1.msra.mxu0 0.0
        %2255 = vmatprep.subr.mxu0 0.0
        %2256 = vmatpush1.msra.mxu0 0.0
        %2257 = vmatprep.subr.mxu0 0.0
        %2258 = vmatpush1.msra.mxu0 0.0
        %2259 = vmatprep.subr.mxu0 0.0
        %2260 = vmatpush1.msra.mxu0 0.0
        %2261 = vmatprep.subr.mxu0 0.0
        %2262 = vmatpush1.msra.mxu0 0.0
        %2263 = vmatprep.subr.mxu0 0.0
        %2264 = vmatpush1.msra.mxu0 0.0
        %2265 = vmatprep.subr.mxu0 0.0
        %2266 = vmatpush1.msra.mxu0 0.0
        %2267 = vmatprep.subr.mxu0 0.0
        %2268 = vmatpush1.msra.mxu0 0.0
        %2269 = vmatprep.subr.mxu0 0.0
        %2270 = vmatpush1.msra.mxu0 0.0
        %2271 = vmatprep.subr.mxu0 0.0
        %2272 = vmatpush1.msra.mxu0 0.0
        %2273 = vmatprep.subr.mxu0 0.0
        %2274 = vmatpush1.msra.mxu0 0.0
        %2275 = vmatprep.subr.mxu0 0.0
        %2276 = vmatpush1.msra.mxu0 0.0
        %2277 = vmatprep.subr.mxu0 0.0
        %2278 = vmatpush1.msra.mxu0 0.0
        %2279 = vmatprep.subr.mxu0 0.0
        %2280 = vmatpush1.msra.mxu0 0.0
        %2281 = vmatprep.mubr.f32.mxu0 0.0
        %2282 = vmatmul.mubr.f32.gmra.mrb[0].mxu0 %v2215
        %v2283 = vpop.f32.mrb[0].mxu0
        %v2284 = vadd.f32 0.0, %v2283
        %v2285 = vpop.f32.mrb[0].mxu0
        %2286 = vdwg.mxu0
        %v2288 = vsel %vm2124, %v2180, 0
        %2290 = vmatprep.subr.mxu0 0.0
        %2291 = vmatpush1.msra.mxu0 %v1793
        %2292 = vmatprep.subr.mxu0 0.0
        %2293 = vmatpush1.msra.mxu0 0.0
        %2294 = vmatprep.subr.mxu0 0.0
        %2295 = vmatpush1.msra.mxu0 0.0
        %2296 = vmatprep.subr.mxu0 0.0
        %2297 = vmatpush1.msra.mxu0 0.0
        %2298 = vmatprep.subr.mxu0 0.0
        %2299 = vmatpush1.msra.mxu0 0.0
        %2300 = vmatprep.subr.mxu0 0.0
        %2301 = vmatpush1.msra.mxu0 0.0
        %2302 = vmatprep.subr.mxu0 0.0
        %2303 = vmatpush1.msra.mxu0 0.0
        %2304 = vmatprep.subr.mxu0 0.0
        %2305 = vmatpush1.msra.mxu0 0.0
        %2306 = vmatprep.subr.mxu0 0.0
        %2307 = vmatpush1.msra.mxu0 0.0
        %2308 = vmatprep.subr.mxu0 0.0
        %2309 = vmatpush1.msra.mxu0 0.0
        %2310 = vmatprep.subr.mxu0 0.0
        %2311 = vmatpush1.msra.mxu0 0.0
        %2312 = vmatprep.subr.mxu0 0.0
        %2313 = vmatpush1.msra.mxu0 0.0
        %2314 = vmatprep.subr.mxu0 0.0
        %2315 = vmatpush1.msra.mxu0 0.0
        %2316 = vmatprep.subr.mxu0 0.0
        %2317 = vmatpush1.msra.mxu0 0.0
        %2318 = vmatprep.subr.mxu0 0.0
        %2319 = vmatpush1.msra.mxu0 0.0
        %2320 = vmatprep.subr.mxu0 0.0
        %2321 = vmatpush1.msra.mxu0 0.0
        %2322 = vmatprep.subr.mxu0 0.0
        %2323 = vmatpush1.msra.mxu0 0.0
        %2324 = vmatprep.subr.mxu0 0.0
        %2325 = vmatpush1.msra.mxu0 0.0
        %2326 = vmatprep.subr.mxu0 0.0
        %2327 = vmatpush1.msra.mxu0 0.0
        %2328 = vmatprep.subr.mxu0 0.0
        %2329 = vmatpush1.msra.mxu0 0.0
        %2330 = vmatprep.subr.mxu0 0.0
        %2331 = vmatpush1.msra.mxu0 0.0
        %2332 = vmatprep.subr.mxu0 0.0
        %2333 = vmatpush1.msra.mxu0 0.0
        %2334 = vmatprep.subr.mxu0 0.0
        %2335 = vmatpush1.msra.mxu0 0.0
        %2336 = vmatprep.subr.mxu0 0.0
        %2337 = vmatpush1.msra.mxu0 0.0
        %2338 = vmatprep.subr.mxu0 0.0
        %2339 = vmatpush1.msra.mxu0 0.0
        %2340 = vmatprep.subr.mxu0 0.0
        %2341 = vmatpush1.msra.mxu0 0.0
        %2342 = vmatprep.subr.mxu0 0.0
        %2343 = vmatpush1.msra.mxu0 0.0
        %2344 = vmatprep.subr.mxu0 0.0
        %2345 = vmatpush1.msra.mxu0 0.0
        %2346 = vmatprep.subr.mxu0 0.0
        %2347 = vmatpush1.msra.mxu0 0.0
        %2348 = vmatprep.subr.mxu0 0.0
        %2349 = vmatpush1.msra.mxu0 0.0
        %2350 = vmatprep.subr.mxu0 0.0
        %2351 = vmatpush1.msra.mxu0 0.0
        %2352 = vmatprep.subr.mxu0 0.0
        %2353 = vmatpush1.msra.mxu0 0.0
        %2354 = vmatprep.mubr.f32.mxu0 0.0
        %2355 = vmatmul.mubr.f32.gmra.mrb[0].mxu0 %v2288
        %v2356 = vpop.f32.mrb[0].mxu0
        %v2357 = vadd.f32 0.0, %v2356
        %v2358 = vpop.f32.mrb[0].mxu0
        %2359 = vdwg.mxu0
        %v2361 = vsel %vm2124, %v2182, 0
        %2363 = vmatprep.subr.mxu0 0.0
        %2364 = vmatpush1.msra.mxu0 %v1794
        %2365 = vmatprep.subr.mxu0 0.0
        %2366 = vmatpush1.msra.mxu0 0.0
        %2367 = vmatprep.subr.mxu0 0.0
        %2368 = vmatpush1.msra.mxu0 0.0
        %2369 = vmatprep.subr.mxu0 0.0
        %2370 = vmatpush1.msra.mxu0 0.0
        %2371 = vmatprep.subr.mxu0 0.0
        %2372 = vmatpush1.msra.mxu0 0.0
        %2373 = vmatprep.subr.mxu0 0.0
        %2374 = vmatpush1.msra.mxu0 0.0
        %2375 = vmatprep.subr.mxu0 0.0
        %2376 = vmatpush1.msra.mxu0 0.0
        %2377 = vmatprep.subr.mxu0 0.0
        %2378 = vmatpush1.msra.mxu0 0.0
        %2379 = vmatprep.subr.mxu0 0.0
        %2380 = vmatpush1.msra.mxu0 0.0
        %2381 = vmatprep.subr.mxu0 0.0
        %2382 = vmatpush1.msra.mxu0 0.0
        %2383 = vmatprep.subr.mxu0 0.0
        %2384 = vmatpush1.msra.mxu0 0.0
        %2385 = vmatprep.subr.mxu0 0.0
        %2386 = vmatpush1.msra.mxu0 0.0
        %2387 = vmatprep.subr.mxu0 0.0
        %2388 = vmatpush1.msra.mxu0 0.0
        %2389 = vmatprep.subr.mxu0 0.0
        %2390 = vmatpush1.msra.mxu0 0.0
        %2391 = vmatprep.subr.mxu0 0.0
        %2392 = vmatpush1.msra.mxu0 0.0
        %2393 = vmatprep.subr.mxu0 0.0
        %2394 = vmatpush1.msra.mxu0 0.0
        %2395 = vmatprep.subr.mxu0 0.0
        %2396 = vmatpush1.msra.mxu0 0.0
        %2397 = vmatprep.subr.mxu0 0.0
        %2398 = vmatpush1.msra.mxu0 0.0
        %2399 = vmatprep.subr.mxu0 0.0
        %2400 = vmatpush1.msra.mxu0 0.0
        %2401 = vmatprep.subr.mxu0 0.0
        %2402 = vmatpush1.msra.mxu0 0.0
        %2403 = vmatprep.subr.mxu0 0.0
        %2404 = vmatpush1.msra.mxu0 0.0
        %2405 = vmatprep.subr.mxu0 0.0
        %2406 = vmatpush1.msra.mxu0 0.0
        %2407 = vmatprep.subr.mxu0 0.0
        %2408 = vmatpush1.msra.mxu0 0.0
        %2409 = vmatprep.subr.mxu0 0.0
        %2410 = vmatpush1.msra.mxu0 0.0
        %2411 = vmatprep.subr.mxu0 0.0
        %2412 = vmatpush1.msra.mxu0 0.0
        %2413 = vmatprep.subr.mxu0 0.0
        %2414 = vmatpush1.msra.mxu0 0.0
        %2415 = vmatprep.subr.mxu0 0.0
        %2416 = vmatpush1.msra.mxu0 0.0
        %2417 = vmatprep.subr.mxu0 0.0
        %2418 = vmatpush1.msra.mxu0 0.0
        %2419 = vmatprep.subr.mxu0 0.0
        %2420 = vmatpush1.msra.mxu0 0.0
        %2421 = vmatprep.subr.mxu0 0.0
        %2422 = vmatpush1.msra.mxu0 0.0
        %2423 = vmatprep.subr.mxu0 0.0
        %2424 = vmatpush1.msra.mxu0 0.0
        %2425 = vmatprep.subr.mxu0 0.0
        %2426 = vmatpush1.msra.mxu0 0.0
        %2427 = vmatprep.mubr.f32.mxu0 0.0
        %2428 = vmatmul.mubr.f32.gmra.mrb[0].mxu0 %v2361
        %v2429 = vpop.f32.mrb[0].mxu0
        %v2430 = vadd.f32 0.0, %v2429
        %v2431 = vpop.f32.mrb[0].mxu0
        %2432 = vdwg.mxu0
        %v2434 = vsel %vm2124, %v2184, 0
        %2436 = vmatprep.subr.mxu0 0.0
        %2437 = vmatpush1.msra.mxu0 %v1795
        %2438 = vmatprep.subr.mxu0 0.0
        %2439 = vmatpush1.msra.mxu0 0.0
        %2440 = vmatprep.subr.mxu0 0.0
        %2441 = vmatpush1.msra.mxu0 0.0
        %2442 = vmatprep.subr.mxu0 0.0
        %2443 = vmatpush1.msra.mxu0 0.0
        %2444 = vmatprep.subr.mxu0 0.0
        %2445 = vmatpush1.msra.mxu0 0.0
        %2446 = vmatprep.subr.mxu0 0.0
        %2447 = vmatpush1.msra.mxu0 0.0
        %2448 = vmatprep.subr.mxu0 0.0
        %2449 = vmatpush1.msra.mxu0 0.0
        %2450 = vmatprep.subr.mxu0 0.0
        %2451 = vmatpush1.msra.mxu0 0.0
        %2452 = vmatprep.subr.mxu0 0.0
        %2453 = vmatpush1.msra.mxu0 0.0
        %2454 = vmatprep.subr.mxu0 0.0
        %2455 = vmatpush1.msra.mxu0 0.0
        %2456 = vmatprep.subr.mxu0 0.0
        %2457 = vmatpush1.msra.mxu0 0.0
        %2458 = vmatprep.subr.mxu0 0.0
        %2459 = vmatpush1.msra.mxu0 0.0
        %2460 = vmatprep.subr.mxu0 0.0
        %2461 = vmatpush1.msra.mxu0 0.0
        %2462 = vmatprep.subr.mxu0 0.0
        %2463 = vmatpush1.msra.mxu0 0.0
        %2464 = vmatprep.subr.mxu0 0.0
        %2465 = vmatpush1.msra.mxu0 0.0
        %2466 = vmatprep.subr.mxu0 0.0
        %2467 = vmatpush1.msra.mxu0 0.0
        %2468 = vmatprep.subr.mxu0 0.0
        %2469 = vmatpush1.msra.mxu0 0.0
        %2470 = vmatprep.subr.mxu0 0.0
        %2471 = vmatpush1.msra.mxu0 0.0
        %2472 = vmatprep.subr.mxu0 0.0
        %2473 = vmatpush1.msra.mxu0 0.0
        %2474 = vmatprep.subr.mxu0 0.0
        %2475 = vmatpush1.msra.mxu0 0.0
        %2476 = vmatprep.subr.mxu0 0.0
        %2477 = vmatpush1.msra.mxu0 0.0
        %2478 = vmatprep.subr.mxu0 0.0
        %2479 = vmatpush1.msra.mxu0 0.0
        %2480 = vmatprep.subr.mxu0 0.0
        %2481 = vmatpush1.msra.mxu0 0.0
        %2482 = vmatprep.subr.mxu0 0.0
        %2483 = vmatpush1.msra.mxu0 0.0
        %2484 = vmatprep.subr.mxu0 0.0
        %2485 = vmatpush1.msra.mxu0 0.0
        %2486 = vmatprep.subr.mxu0 0.0
        %2487 = vmatpush1.msra.mxu0 0.0
        %2488 = vmatprep.subr.mxu0 0.0
        %2489 = vmatpush1.msra.mxu0 0.0
        %2490 = vmatprep.subr.mxu0 0.0
        %2491 = vmatpush1.msra.mxu0 0.0
        %2492 = vmatprep.subr.mxu0 0.0
        %2493 = vmatpush1.msra.mxu0 0.0
        %2494 = vmatprep.subr.mxu0 0.0
        %2495 = vmatpush1.msra.mxu0 0.0
        %2496 = vmatprep.subr.mxu0 0.0
        %2497 = vmatpush1.msra.mxu0 0.0
        %2498 = vmatprep.subr.mxu0 0.0
        %2499 = vmatpush1.msra.mxu0 0.0
        %2500 = vmatprep.mubr.f32.mxu0 0.0
        %2501 = vmatmul.mubr.f32.gmra.mrb[0].mxu0 %v2434
        %v2502 = vpop.f32.mrb[0].mxu0
        %v2503 = vadd.f32 0.0, %v2502
        %v2504 = vpop.f32.mrb[0].mxu0
        %2505 = vdwg.mxu0
        %v2506 = vld [vmem:[#allocation5] sm:$0xff]
        %v2507 = vld [vmem:[#allocation5 + $0x8] sm:$0xff]
        %v2508 = vld [vmem:[#allocation5 + $0x10] sm:$0xff]
        %v2509 = vld [vmem:[#allocation5 + $0x18] sm:$0xff]
        %2511 = vset.pattern.permute.xlu0 0
        %2512 = vperm.xlu0 %2511, %v2146
        %v2513 = vpop.permute.xlu0 %2512
        %2516 = vset.pattern.permute.xlu0 0
        %2517 = vperm.xlu0 %2516, %v2148
        %v2518 = vpop.permute.xlu0 %2517
        %2521 = vset.pattern.permute.xlu0 0
        %2522 = vperm.xlu0 %2521, %v2150
        %v2523 = vpop.permute.xlu0 %2522
        %2526 = vset.pattern.permute.xlu0 0
        %2527 = vperm.xlu0 %2526, %v2152
        %v2528 = vpop.permute.xlu0 %2527
        %v2530 = vmul.f32 %v2513, %v2506
        %v2531 = vmul.f32 %v2518, %v2507
        %v2532 = vmul.f32 %v2523, %v2508
        %v2533 = vmul.f32 %v2528, %v2509
        %v2534 = vadd.f32 %v2530, %v2284
        %v2535 = vadd.f32 %v2531, %v2357
        %v2536 = vadd.f32 %v2532, %v2430
        %v2537 = vadd.f32 %v2533, %v2503
        %2538 = vst.msk [vmem:[#allocation5] sm:$0xff] %vm1800, %v2534
        %2539 = vst.msk [vmem:[#allocation5 + $0x8] sm:$0xff] %vm1800, %v2535
        %2540 = vst.msk [vmem:[#allocation5 + $0x10] sm:$0xff] %vm1800, %v2536
        %2541 = vst.msk [vmem:[#allocation5 + $0x18] sm:$0xff] %vm1800, %v2537
        %2542 = vst.msk [vmem:[#allocation3] sm:$0xff] %vm2209, %v2137
        %2543 = vst.msk [vmem:[#allocation3 + $0x8] sm:$0xff] %vm2209, %v2138
        %2544 = vst.msk [vmem:[#allocation3 + $0x10] sm:$0xff] %vm2209, %v2139
        %2545 = vst.msk [vmem:[#allocation3 + $0x18] sm:$0xff] %vm2209, %v2140
      $region44: #{causal_self_attention.4} parent=31 // pred_fallthru
        _
      %p2546 = scmp.eq.s32.totalorder %s21, 3
      // Predicated region
      $region45: #{causal_self_attention.4} parent=31 // pred_check
        %p2547 = pneg %p2546
      $region46: #{causal_self_attention.4} parent=31 // pred_check_branch
        %2549 = sbr.rel (%p2547) target = $region48
      $region47: #{causal_self_attention.4} parent=31 // pred_region
        %v2550 = vld [vmem:[#allocation4] sm:$0xff]
        %v2551 = vld [vmem:[#allocation4 + $0x8] sm:$0xff]
        %v2552 = vld [vmem:[#allocation4 + $0x10] sm:$0xff]
        %v2553 = vld [vmem:[#allocation4 + $0x18] sm:$0xff]
        %v2554 = vrcp.pop %v2550
        %v2555 = vrcp.pop %v2551
        %v2556 = vrcp.pop %v2552
        %v2557 = vrcp.pop %v2553
        %v2558 = vld [vmem:[#allocation5] sm:$0xff]
        %v2559 = vld [vmem:[#allocation5 + $0x8] sm:$0xff]
        %v2560 = vld [vmem:[#allocation5 + $0x10] sm:$0xff]
        %v2561 = vld [vmem:[#allocation5 + $0x18] sm:$0xff]
        %2563 = vset.pattern.permute.xlu0 0
        %2564 = vperm.xlu0 %2563, %v2554
        %v2565 = vpop.permute.xlu0 %2564
        %2568 = vset.pattern.permute.xlu0 0
        %2569 = vperm.xlu0 %2568, %v2555
        %v2570 = vpop.permute.xlu0 %2569
        %2573 = vset.pattern.permute.xlu0 0
        %2574 = vperm.xlu0 %2573, %v2556
        %v2575 = vpop.permute.xlu0 %2574
        %2578 = vset.pattern.permute.xlu0 0
        %2579 = vperm.xlu0 %2578, %v2557
        %v2580 = vpop.permute.xlu0 %2579
        %v2582 = vmul.f32 %v2558, %v2565
        %v2583 = vmul.f32 %v2559, %v2570
        %v2584 = vmul.f32 %v2560, %v2575
        %v2585 = vmul.f32 %v2561, %v2580
        %v2586 = vcombine.low %v2582, %v2584
        %v2587 = vcombine.high %v2582, %v2584
        %v2589 = vunpack.c.l.s4 1983009808
        %v2590 = vunpack.c.0.s8 %v2589
        %v2591 = vlaneseq
        %v2592 = vshrl.u32 %v2591, 7
        %v2593 = vsub.s32 %v2590, %v2592
        %v2594 = vrot.slane %v2586, %v2593
        %v2596 = vunpack.c.l.s4 1983009808
        %v2597 = vunpack.c.0.s8 %v2596
        %v2598 = vlaneseq
        %v2599 = vshrl.u32 %v2598, 7
        %v2600 = vsub.s32 %v2597, %v2599
        %v2601 = vrot.slane %v2587, %v2600
        %v2602 = vcombine.low %v2583, %v2585
        %v2603 = vcombine.high %v2583, %v2585
        %v2605 = vunpack.c.l.s4 1983009808
        %v2606 = vunpack.c.0.s8 %v2605
        %v2607 = vlaneseq
        %v2608 = vshrl.u32 %v2607, 7
        %v2609 = vsub.s32 %v2606, %v2608
        %v2610 = vrot.slane %v2602, %v2609
        %v2612 = vunpack.c.l.s4 1983009808
        %v2613 = vunpack.c.0.s8 %v2612
        %v2614 = vlaneseq
        %v2615 = vshrl.u32 %v2614, 7
        %v2616 = vsub.s32 %v2613, %v2615
        %v2617 = vrot.slane %v2603, %v2616
        %v2618 = vcombine.low %v2594, %v2610
        %v2619 = vcombine.high %v2594, %v2610
        %v2621 = vunpack.c.l.s4 1934713408
        %v2622 = vunpack.c.0.s8 %v2621
        %v2623 = vlaneseq
        %v2624 = vshrl.u32 %v2623, 7
        %v2625 = vsub.s32 %v2622, %v2624
        %v2626 = vrot.slane %v2618, %v2625
        %v2628 = vunpack.c.l.s4 1934713408
        %v2629 = vunpack.c.0.s8 %v2628
        %v2630 = vlaneseq
        %v2631 = vshrl.u32 %v2630, 7
        %v2632 = vsub.s32 %v2629, %v2631
        %v2633 = vrot.slane %v2619, %v2632
        %v2634 = vcombine.low %v2601, %v2617
        %v2635 = vcombine.high %v2601, %v2617
        %v2637 = vunpack.c.l.s4 1934713408
        %v2638 = vunpack.c.0.s8 %v2637
        %v2639 = vlaneseq
        %v2640 = vshrl.u32 %v2639, 7
        %v2641 = vsub.s32 %v2638, %v2640
        %v2642 = vrot.slane %v2634, %v2641
        %v2644 = vunpack.c.l.s4 1934713408
        %v2645 = vunpack.c.0.s8 %v2644
        %v2646 = vlaneseq
        %v2647 = vshrl.u32 %v2646, 7
        %v2648 = vsub.s32 %v2645, %v2647
        %v2649 = vrot.slane %v2635, %v2648
        %v2650 = vcombine.high %v2626, 0.0
        %v2651 = vcombine.high %v2633, 0.0
        %v2652 = vcombine.high %v2642, 0.0
        %v2653 = vcombine.high %v2649, 0.0
        %v2654 = vcombine.low %v2626, %v2633
        %v2656 = vunpack.c.l.s4 1983009808
        %v2657 = vunpack.c.0.s8 %v2656
        %v2658 = vlaneseq
        %v2659 = vshrl.u32 %v2658, 7
        %v2660 = vsub.s32 %v2657, %v2659
        %v2661 = vrot.slane %v2654, %v2660
        %v2662 = vcombine.low %v2650, %v2651
        %v2664 = vunpack.c.l.s4 1983009808
        %v2665 = vunpack.c.0.s8 %v2664
        %v2666 = vlaneseq
        %v2667 = vshrl.u32 %v2666, 7
        %v2668 = vsub.s32 %v2665, %v2667
        %v2669 = vrot.slane %v2662, %v2668
        %v2670 = vcombine.low %v2642, %v2649
        %v2672 = vunpack.c.l.s4 1983009808
        %v2673 = vunpack.c.0.s8 %v2672
        %v2674 = vlaneseq
        %v2675 = vshrl.u32 %v2674, 7
        %v2676 = vsub.s32 %v2673, %v2675
        %v2677 = vrot.slane %v2670, %v2676
        %v2678 = vcombine.low %v2652, %v2653
        %v2680 = vunpack.c.l.s4 1983009808
        %v2681 = vunpack.c.0.s8 %v2680
        %v2682 = vlaneseq
        %v2683 = vshrl.u32 %v2682, 7
        %v2684 = vsub.s32 %v2681, %v2683
        %v2685 = vrot.slane %v2678, %v2684
        %v2686 = vcombine.low %v2661, %v2669
        %v2687 = vcombine.high %v2661, %v2669
        %v2689 = vunpack.c.l.s4 1934713408
        %v2690 = vunpack.c.0.s8 %v2689
        %v2691 = vlaneseq
        %v2692 = vshrl.u32 %v2691, 7
        %v2693 = vsub.s32 %v2690, %v2692
        %v2694 = vrot.slane %v2686, %v2693
        %v2696 = vunpack.c.l.s4 1934713408
        %v2697 = vunpack.c.0.s8 %v2696
        %v2698 = vlaneseq
        %v2699 = vshrl.u32 %v2698, 7
        %v2700 = vsub.s32 %v2697, %v2699
        %v2701 = vrot.slane %v2687, %v2700
        %v2702 = vcombine.low %v2677, %v2685
        %v2703 = vcombine.high %v2677, %v2685
        %v2705 = vunpack.c.l.s4 1934713408
        %v2706 = vunpack.c.0.s8 %v2705
        %v2707 = vlaneseq
        %v2708 = vshrl.u32 %v2707, 7
        %v2709 = vsub.s32 %v2706, %v2708
        %v2710 = vrot.slane %v2702, %v2709
        %v2712 = vunpack.c.l.s4 1934713408
        %v2713 = vunpack.c.0.s8 %v2712
        %v2714 = vlaneseq
        %v2715 = vshrl.u32 %v2714, 7
        %v2716 = vsub.s32 %v2713, %v2715
        %v2717 = vrot.slane %v2703, %v2716
        %v2718 = vcombine.low %v2694, %v2710
        %v2719 = vcombine.high %v2694, %v2710
        %v2720 = vcombine.low %v2701, %v2717
        %v2721 = vcombine.high %v2701, %v2717
        %2723 = vrot.lane.b32.xlu0 %v2719, 32
        %v2724 = vpop.permute.xlu0 %2723
        %2727 = vrot.lane.b32.xlu0 %v2720, 64
        %v2728 = vpop.permute.xlu0 %2727
        %2731 = vrot.lane.b32.xlu0 %v2721, 96
        %v2732 = vpop.permute.xlu0 %2731
        %vm2734 = vcmask 261120
        %v2735 = vsel %vm2734, %v2718, %v2724
        %vm2736 = vcmask 523264
        %v2737 = vsel %vm2736, %v2735, %v2728
        %vm2738 = vcmask 785408
        %v2739 = vsel %vm2738, %v2737, %v2732
        %2740 = vst [vmem:[%s285] sm:$0xff] %v2739
      $region48: #{causal_self_attention.4} parent=31 // pred_fallthru
        _
      %p2741 = scmp.lt.s32.totalorder %s19, 1
      %s2742 = scalar_select %p2741, %s19, 1
      %p2743 = scmp.lt.s32.totalorder %s20, 3
      %s2744 = scalar_select %p2743, %s20, 3
      %s2745 = smul.addr %s2742, 4
      %s2746 = sadd.s32 %s2744, %s2745
      %s2747 = smul.addr %s2746, 8
      %s2748 = scalar_lea.vmem %s3, %s2747
      // Predicated region
      $region49: #{causal_self_attention.4} parent=31 // pred_check
        %p2749 = pneg %p137
      $region50: #{causal_self_attention.4} parent=31 // pred_check_branch
        %2751 = sbr.rel (%p2749) target = $region52
      $region51: #{causal_self_attention.4} parent=31 // pred_region
        _
      $region52: #{causal_self_attention.4} parent=31 // pred_fallthru
        _
    $region32: #{causal_self_attention.4} parent=5 // pred_fallthru
      _
    %p2752 = scmp.le.s32.totalorder 2, %s9
    // Predicated region
    $region53: #{causal_self_attention.4} parent=5 // pred_check
      %p2753 = pneg %p2752
    $region54: #{causal_self_attention.4} parent=5 // pred_check_branch
      %2755 = sbr.rel (%p2753) target = $region56
    $region55: #{causal_self_attention.4} parent=5 // pred_region
      %s2756 = ssub.s32 %s9, 2
      // Predicated region
      $region57: #{causal_self_attention.4} parent=55 // pred_check
        %p2757 = pneg %p143
      $region58: #{causal_self_attention.4} parent=55 // pred_check_branch
        %2759 = sbr.rel (%p2757) target = $region60
      $region59: #{causal_self_attention.4} parent=55 // pred_region
        %p2760 = scmp.lt.s32.totalorder %s22, 1
        %s2761 = scalar_select %p2760, %s22, 1
        %p2762 = scmp.lt.s32.totalorder %s23, 3
        %s2763 = scalar_select %p2762, %s23, 3
        %s2764 = smul.addr %s2761, 4
        %s2765 = sadd.s32 %s2763, %s2764
        %s2766 = smul.addr %s2765, 8
        %s2767 = scalar_lea.vmem %s3, %s2766
      $region60: #{causal_self_attention.4} parent=55 // pred_fallthru
        _
    $region56: #{causal_self_attention.4} parent=5 // pred_fallthru
      _
  $region6: #{causal_self_attention.4} parent=0 // loop_footer
    %s13 = sadd.s32 1, %s9
  $region7: #{causal_self_attention.4} parent=0 // loop_footer_branch
    %8 = sbr.rel target = $region3
  $region8: #{causal_self_attention.4} parent=0 // loop_exit
    _

</llo_original>
